<compile_context>
chip_gen: v5e
topology: v5e:2x2
jax: 0.10.0
libtpu: 0.0.40
codegen_flags: <defaults>
</compile_context>

<pallas_src>
import functools

import jax
import jax.numpy as jnp
from jax import lax
from jax.experimental import pallas as pl
from jax.experimental.pallas import tpu as pltpu


# ----------------------------------------------------------------------------
# Tiled matmul + bias:  y = x @ w + b   (bf16 operands OK, f32 output/accum)
# Accumulates directly into the resident output block (index constant along k).
# ----------------------------------------------------------------------------
def _matmul_bias_kernel(x_ref, w_ref, b_ref, o_ref):
    k = pl.program_id(2)

    @pl.when(k == 0)
    def _():
        o_ref[...] = jnp.broadcast_to(b_ref[...], o_ref.shape).astype(o_ref.dtype)

    o_ref[...] += jnp.dot(x_ref[...], w_ref[...],
                          preferred_element_type=jnp.float32)


def _tile(dim, target, base):
    """Largest tile <= target that divides dim (dim assumed multiple of base
    whenever dim > target)."""
    if dim <= target:
        return dim
    t = (target // base) * base
    while t > base and dim % t:
        t -= base
    assert dim % t == 0, f"dim {dim} must be a multiple of {base}"
    return t


def matmul_bias(x, w, b):
    """x: (M, K); w: (K, N); b: (1, N) f32.  Returns (M, N) f32."""
    M, K = x.shape
    K2, N = w.shape
    assert K == K2 and b.shape == (1, N)
    # Big lane-dense tiles: fewer grid steps, fewer K-axis re-reads of W for
    # large vocab; at these sizes the double-buffered tiles stay well below the
    # 48 MiB limit (which itself leaves headroom on v7x's 64 MiB VMEM).
    tm = _tile(M, 512, 8)
    tk = _tile(K, 512, 128)
    tn = _tile(N, 1024, 128)
    grid = (M // tm, N // tn, K // tk)
    return pl.pallas_call(
        _matmul_bias_kernel,
        out_shape=jax.ShapeDtypeStruct((M, N), jnp.float32),
        grid_spec=pltpu.PrefetchScalarGridSpec(
            num_scalar_prefetch=0,
            grid=grid,
            in_specs=[
                pl.BlockSpec((tm, tk), lambda i, j, k: (i, k)),
                pl.BlockSpec((tk, tn), lambda i, j, k: (k, j)),
                pl.BlockSpec((1, tn), lambda i, j, k: (0, j)),
            ],
            out_specs=pl.BlockSpec((tm, tn), lambda i, j, k: (i, j))),
        compiler_params=pltpu.CompilerParams(
            dimension_semantics=("parallel", "parallel", "arbitrary"),
            vmem_limit_bytes=48 * 1024 * 1024),
    )(x, w, b)


# ----------------------------------------------------------------------------
# LSTM recurrence with pre-computed input gates.
# PyTorch gate order: i, f, g, o
#   gates_t = gates_x_t + h_{t-1} @ W_hh
#   c_t = sigmoid(f)*c_{t-1} + sigmoid(i)*tanh(g);  h_t = sigmoid(o)*tanh(c_t)
# ----------------------------------------------------------------------------
def _sigmoid(x):
    # single-tanh form: one EUP op per element instead of exp + reciprocal
    return 0.5 * jnp.tanh(0.5 * x) + 0.5


def _lstm_kernel(gx_ref, whh_ref, h0_ref, c0_ref, *refs, collect_outputs):
    if collect_outputs:
        out_ref, hN_ref, cN_ref, h_sc, c_sc = refs
    else:
        out_ref = None
        hN_ref, cN_ref, h_sc, c_sc = refs

    t_blk = pl.program_id(1)

    @pl.when(t_blk == 0)
    def _():
        h_sc[...] = h0_ref[...].astype(h_sc.dtype)   # bf16 carry
        c_sc[...] = c0_ref[...]                      # f32 carry

    Tc = gx_ref.shape[0]
    H = c_sc.shape[-1]

    # Loop-invariant recurrent weight: load ONCE per grid step, not per t.
    whh = whh_ref[...]

    def step(t, carry):
        h_prev, c_prev = carry                       # bf16, f32
        gates = gx_ref[t] + jnp.dot(h_prev, whh,
                                    preferred_element_type=jnp.float32)
        i_g = _sigmoid(gates[:, 0 * H:1 * H])
        f_g = _sigmoid(gates[:, 1 * H:2 * H])
        g_g = jnp.tanh(gates[:, 2 * H:3 * H])
        o_g = _sigmoid(gates[:, 3 * H:4 * H])
        c_new = f_g * c_prev + i_g * g_g
        h_new = (o_g * jnp.tanh(c_new)).astype(jnp.bfloat16)
        if collect_outputs:
            out_ref[t] = h_new
        return h_new, c_new

    h_last, c_last = lax.fori_loop(0, Tc, step, (h_sc[...], c_sc[...]),
                                   unroll=True)
    h_sc[...] = h_last
    c_sc[...] = c_last

    @pl.when(t_blk == pl.num_programs(1) - 1)
    def _():
        hN_ref[...] = h_last.astype(hN_ref.dtype)
        cN_ref[...] = c_last


def _recurrence_blocks(T, B, H, budget_bytes=40 << 20):
    """Pick (Tc, Bb): prefer the FULL batch per block (MXU row utilization,
    fewest grid steps), else the largest multiple of 16 dividing B (legal bf16
    store tile).  Shrink the time chunk before shrinking the batch block so the
    double-buffered gx stream + output block + W_hh fit the VMEM budget
    (sized for v7x's 64 MiB; trivially fits v5e/v6e's 128 MiB)."""
    def cost(tc, bb):
        gx = 2 * tc * bb * 4 * H * 4            # f32 input-gate stream, 2 bufs
        out = 2 * tc * bb * H * 2               # bf16 output stream, 2 bufs
        whh = 2 * H * 4 * H * 2                 # bf16 recurrent weight, 2 bufs
        state = bb * H * 16                     # h0/c0/hN/cN blocks + scratch
        return gx + out + whh + state

    def bb_candidates():
        yield B
        bb = (B // 16) * 16
        while bb >= 16:
            if B % bb == 0:
                yield bb
            bb -= 16

    for bb in bb_candidates():
        tc = min(T, 16)
        while tc >= 1:
            if T % tc == 0 and cost(tc, bb) <= budget_bytes:
                return tc, bb
            tc -= 1
    return 1, B   # tiny shapes always fit


def lstm_layer(gates_x, w_hh, h0, c0, collect_outputs=True,
               out_dtype=jnp.bfloat16):
    """gates_x: (T, B, 4H) f32 (x@W_ih + bias precomputed); w_hh: (H, 4H) bf16;
    h0, c0: (B, H) f32.
    Returns (outputs (T,B,H) out_dtype or None, h_N f32, c_N f32)."""
    T, B, G = gates_x.shape
    H = h0.shape[-1]
    assert G == 4 * H

    Tc, Bb = _recurrence_blocks(T, B, H)
    grid = (B // Bb, T // Tc)

    out_shapes = []
    out_specs = []
    if collect_outputs:
        out_shapes.append(jax.ShapeDtypeStruct((T, B, H), out_dtype))
        out_specs.append(pl.BlockSpec((Tc, Bb, H), lambda b, t: (t, b, 0)))
    out_shapes += [jax.ShapeDtypeStruct((B, H), jnp.float32),
                   jax.ShapeDtypeStruct((B, H), jnp.float32)]
    out_specs += [pl.BlockSpec((Bb, H), lambda b, t: (b, 0)),
                  pl.BlockSpec((Bb, H), lambda b, t: (b, 0))]

    kernel = functools.partial(_lstm_kernel, collect_outputs=collect_outputs)

    results = pl.pallas_call(
        kernel,
        out_shape=tuple(out_shapes),
        grid_spec=pltpu.PrefetchScalarGridSpec(
            num_scalar_prefetch=0,
            grid=grid,
            in_specs=[
                pl.BlockSpec((Tc, Bb, 4 * H), lambda b, t: (t, b, 0)),
                pl.BlockSpec((H, 4 * H), lambda b, t: (0, 0)),
                pl.BlockSpec((Bb, H), lambda b, t: (b, 0)),
                pl.BlockSpec((Bb, H), lambda b, t: (b, 0)),
            ],
            out_specs=tuple(out_specs),
            scratch_shapes=[pltpu.VMEM((Bb, H), jnp.bfloat16),   # h carry
                            pltpu.VMEM((Bb, H), jnp.float32)]),  # c carry
        compiler_params=pltpu.CompilerParams(
            dimension_semantics=("parallel", "arbitrary"),   # batch ||, time seq
            vmem_limit_bytes=48 * 1024 * 1024),
    )(gates_x, w_hh, h0, c0)

    if collect_outputs:
        return results
    h_n, c_n = results
    return None, h_n, c_n


# ----------------------------------------------------------------------------
# Seq2Seq forward (LSTM encoder -> LSTM decoder -> linear head)
# ----------------------------------------------------------------------------
def init_params(key, input_vocab, output_vocab, emb_dim, hidden):
    ks = jax.random.split(key, 10)
    s = 0.1
    bf = jnp.bfloat16
    p = {
        "src_emb": (jax.random.normal(ks[0], (input_vocab, emb_dim)) * s).astype(bf),
        "tgt_emb": (jax.random.normal(ks[1], (output_vocab, emb_dim)) * s).astype(bf),
        # encoder LSTM (stored transposed: (E,4H), (H,4H)); bias = b_ih + b_hh
        "enc_wih": (jax.random.normal(ks[2], (emb_dim, 4 * hidden)) * s).astype(bf),
        "enc_whh": (jax.random.normal(ks[3], (hidden, 4 * hidden)) * s).astype(bf),
        "enc_b": (jax.random.normal(ks[4], (1, 4 * hidden)) * s).astype(jnp.float32),
        # decoder LSTM
        "dec_wih": (jax.random.normal(ks[5], (emb_dim, 4 * hidden)) * s).astype(bf),
        "dec_whh": (jax.random.normal(ks[6], (hidden, 4 * hidden)) * s).astype(bf),
        "dec_b": (jax.random.normal(ks[7], (1, 4 * hidden)) * s).astype(jnp.float32),
        # output linear
        "out_w": (jax.random.normal(ks[8], (hidden, output_vocab)) * s).astype(bf),
        "out_b": (jax.random.normal(ks[9], (1, output_vocab)) * s).astype(jnp.float32),
    }
    return p


@jax.jit
def seq2seq_forward(params, source, target):
    """source: (B, T_src) int32; target: (B, T_tgt) int32.
    Returns logits (B, T_tgt, output_vocab) float32 (matches PyTorch module)."""
    B, T_src = source.shape
    _, T_tgt = target.shape
    E = params["src_emb"].shape[1]
    H = params["enc_whh"].shape[0]
    V = params["out_w"].shape[1]

    # Embedding lookups directly in time-major layout (gather glue, plain JAX).
    emb_src = jnp.take(params["src_emb"], source.T, axis=0)   # (T_src, B, E) bf16
    emb_tgt = jnp.take(params["tgt_emb"], target.T, axis=0)   # (T_tgt, B, E) bf16

    # Hoisted input projections: one large MXU matmul each, bias folded in.
    gx_enc = matmul_bias(emb_src.reshape(T_src * B, E),
                         params["enc_wih"], params["enc_b"]).reshape(T_src, B, 4 * H)
    gx_dec = matmul_bias(emb_tgt.reshape(T_tgt * B, E),
                         params["dec_wih"], params["dec_b"]).reshape(T_tgt, B, 4 * H)

    h0 = jnp.zeros((B, H), jnp.float32)
    c0 = jnp.zeros((B, H), jnp.float32)

    # Encoder: per-step outputs are never consumed -> skip the (T,B,H) writeback.
    _, h_enc, c_enc = lstm_layer(gx_enc, params["enc_whh"], h0, c0,
                                 collect_outputs=False)

    # Decoder initialized with encoder final state.
    dec_out, _, _ = lstm_layer(gx_dec, params["dec_whh"], h_enc, c_enc,
                               collect_outputs=True)   # (T_tgt, B, H) bf16

    # Transpose the SMALL bf16 (T,B,H) tensor once, then project -> logits land
    # directly in batch-first layout (no f32 (T,B,V) transpose).
    dec_bt = dec_out.transpose(1, 0, 2).reshape(B * T_tgt, H)
    logits = matmul_bias(dec_bt, params["out_w"], params["out_b"])   # (B*T, V) f32
    return logits.reshape(B, T_tgt, V)


# ----------------------------------------------------------------------------
# Pure-JAX f32 reference for numerical validation.
# ----------------------------------------------------------------------------
def _ref_forward(params, source, target):
    B = source.shape[0]
    H = params["enc_whh"].shape[0]
    f32 = lambda a: a.astype(jnp.float32)

    def run(x, wih, whh, b, h0, c0):
        def step(carry, xt):
            h, c = carry
            g = xt @ f32(wih) + h @ f32(whh) + b[0]
            i = jax.nn.sigmoid(g[:, 0 * H:1 * H])
            f = jax.nn.sigmoid(g[:, 1 * H:2 * H])
            gg = jnp.tanh(g[:, 2 * H:3 * H])
            o = jax.nn.sigmoid(g[:, 3 * H:4 * H])
            c = f * c + i * gg
            h = o * jnp.tanh(c)
            return (h, c), h
        (hN, cN), outs = jax.lax.scan(step, (h0, c0), x)
        return outs, hN, cN

    emb_src = f32(jnp.take(params["src_emb"], source.T, axis=0))
    emb_tgt = f32(jnp.take(params["tgt_emb"], target.T, axis=0))
    h0 = jnp.zeros((B, H), jnp.float32)
    c0 = jnp.zeros((B, H), jnp.float32)
    _, he, ce = run(emb_src, params["enc_wih"], params["enc_whh"],
                    params["enc_b"], h0, c0)
    dec, _, _ = run(emb_tgt, params["dec_wih"], params["dec_whh"],
                    params["dec_b"], he, ce)
    logits = jnp.einsum("tbh,hv->tbv", dec, f32(params["out_w"])) + params["out_b"][0]
    return logits.transpose(1, 0, 2)


if __name__ == "__main__":
    # Small, hardware-aligned shapes: B multiple of 8; E, H, V multiples of 128.
    INPUT_VOCAB = 32
    OUTPUT_VOCAB = 128
    EMB_DIM = 128
    HIDDEN = 128
    B, T_SRC, T_TGT = 8, 8, 8

    key = jax.random.PRNGKey(0)
    kp, ks, kt = jax.random.split(key, 3)
    params = init_params(kp, INPUT_VOCAB, OUTPUT_VOCAB, EMB_DIM, HIDDEN)
    source = jax.random.randint(ks, (B, T_SRC), 0, INPUT_VOCAB, dtype=jnp.int32)
    target = jax.random.randint(kt, (B, T_TGT), 0, OUTPUT_VOCAB, dtype=jnp.int32)

    logits = seq2seq_forward(params, source, target)
    jax.block_until_ready(logits)

    ref = _ref_forward(params, source, target)
    assert logits.shape == (B, T_TGT, OUTPUT_VOCAB)
    err = float(jnp.max(jnp.abs(logits - ref)))
    assert jnp.allclose(logits, ref, atol=2e-2, rtol=2e-2), f"max abs err {err}"

    print("KERNEL_OK")
</pallas_src>

<mosaic_0001>
module attributes {stable_mosaic.version = 11 : i64} {
  func.func @_matmul_bias_kernel(%arg0: i32, %arg1: i32, %arg2: i32, %arg3: memref<64x128xbf16, #tpu.memory_space<vmem>>, %arg4: memref<128x512xbf16, #tpu.memory_space<vmem>>, %arg5: memref<1x512xf32, #tpu.memory_space<vmem>>, %arg6: memref<64x512xf32, #tpu.memory_space<vmem>>) attributes {dimension_semantics = [#tpu.dimension_semantics<parallel>, #tpu.dimension_semantics<parallel>, #tpu.dimension_semantics<arbitrary>], iteration_bounds = array<i64: 1, 1, 1>, scalar_prefetch = 0 : i64, scratch_operands = 0 : i64, tpu.core_type = #tpu.core_type<tc>, window_params = [{transform_indices = @transform_0, window_bounds = array<i64: 64, 128>}, {transform_indices = @transform_1, window_bounds = array<i64: 128, 512>}, {transform_indices = @transform_2, window_bounds = array<i64: 1, 512>}, {transform_indices = @transform_3, window_bounds = array<i64: 64, 512>}]} {
    %c0_i32 = arith.constant 0 : i32
    %0 = arith.cmpi eq, %arg2, %c0_i32 : i32
    %1 = arith.extui %0 : i1 to i32
    %c0_i32_0 = arith.constant 0 : i32
    %2 = arith.cmpi ne, %1, %c0_i32_0 : i32
    scf.if %2 {
      %c0_8 = arith.constant 0 : index
      %c0_9 = arith.constant 0 : index
      %9 = vector.load %arg5[%c0_8, %c0_9] : memref<1x512xf32, #tpu.memory_space<vmem>>, vector<1x512xf32>
      %10 = vector.shape_cast %9 : vector<1x512xf32> to vector<1x512xf32>
      %11 = vector.broadcast %10 : vector<1x512xf32> to vector<64x512xf32>
      %c0_10 = arith.constant 0 : index
      %c0_11 = arith.constant 0 : index
      %12 = vector.load %arg6[%c0_10, %c0_11] : memref<64x512xf32, #tpu.memory_space<vmem>>, vector<64x512xf32>
      tpu.vector_store %arg6[%c0_10, %c0_11], %11 {strides = array<i32>} : memref<64x512xf32, #tpu.memory_space<vmem>>, vector<64x512xf32>,
    } else {
    }
    %c0 = arith.constant 0 : index
    %c0_1 = arith.constant 0 : index
    %3 = vector.load %arg6[%c0, %c0_1] : memref<64x512xf32, #tpu.memory_space<vmem>>, vector<64x512xf32>
    %c0_2 = arith.constant 0 : index
    %c0_3 = arith.constant 0 : index
    %4 = vector.load %arg3[%c0_2, %c0_3] : memref<64x128xbf16, #tpu.memory_space<vmem>>, vector<64x128xbf16>
    %c0_4 = arith.constant 0 : index
    %c0_5 = arith.constant 0 : index
    %5 = vector.load %arg4[%c0_4, %c0_5] : memref<128x512xbf16, #tpu.memory_space<vmem>>, vector<128x512xbf16>
    %cst = arith.constant dense<0.000000e+00> : vector<64x512xf32>
    %6 = tpu.matmul %4, %5, %cst {dimension_numbers = #tpu.dot_dimension_numbers<[1], [0], [0], [1], [0, 0, 1, 1], [], []>} : vector<64x128xbf16>, vector<128x512xbf16>, vector<64x512xf32> -> vector<64x512xf32>
    %7 = arith.addf %3, %6 : vector<64x512xf32>
    %c0_6 = arith.constant 0 : index
    %c0_7 = arith.constant 0 : index
    %8 = vector.load %arg6[%c0_6, %c0_7] : memref<64x512xf32, #tpu.memory_space<vmem>>, vector<64x512xf32>
    tpu.vector_store %arg6[%c0_6, %c0_7], %7 {strides = array<i32>} : memref<64x512xf32, #tpu.memory_space<vmem>>, vector<64x512xf32>,
    return
  }
  func.func @transform_0(%arg0: i32, %arg1: i32, %arg2: i32) -> (i32, i32) {
    %c0_i32 = arith.constant 0 : i32
    return %arg0, %arg2 : i32, i32
  }
  func.func @transform_1(%arg0: i32, %arg1: i32, %arg2: i32) -> (i32, i32) {
    %c0_i32 = arith.constant 0 : i32
    return %arg2, %arg1 : i32, i32
  }
  func.func @transform_2(%arg0: i32, %arg1: i32, %arg2: i32) -> (i32, i32) {
    %c0_i32 = arith.constant 0 : i32
    %c0_i32_0 = arith.constant 0 : i32
    return %c0_i32, %arg1 : i32, i32
  }
  func.func @transform_3(%arg0: i32, %arg1: i32, %arg2: i32) -> (i32, i32) {
    %c0_i32 = arith.constant 0 : i32
    return %arg0, %arg1 : i32, i32
  }
}

module attributes {stable_mosaic.version = 11 : i64} {
  func.func @_lstm_kernel(%arg0: i32, %arg1: i32, %arg2: memref<8x8x512xf32, #tpu.memory_space<vmem>>, %arg3: memref<128x512xbf16, #tpu.memory_space<vmem>>, %arg4: memref<8x128xf32, #tpu.memory_space<vmem>>, %arg5: memref<8x128xf32, #tpu.memory_space<vmem>>, %arg6: memref<8x128xf32, #tpu.memory_space<vmem>>, %arg7: memref<8x128xf32, #tpu.memory_space<vmem>>, %arg8: memref<8x128xbf16, #tpu.memory_space<vmem>>, %arg9: memref<8x128xf32, #tpu.memory_space<vmem>>) attributes {dimension_semantics = [#tpu.dimension_semantics<parallel>, #tpu.dimension_semantics<arbitrary>], iteration_bounds = array<i64: 1, 1>, scalar_prefetch = 0 : i64, scratch_operands = 2 : i64, tpu.core_type = #tpu.core_type<tc>, window_params = [{transform_indices = @transform_0, window_bounds = array<i64: 8, 8, 512>}, {pipeline_mode = #tpu.pipeline_mode<synchronous>, transform_indices = @transform_1, window_bounds = array<i64: 128, 512>}, {transform_indices = @transform_2, window_bounds = array<i64: 8, 128>}, {transform_indices = @transform_3, window_bounds = array<i64: 8, 128>}, {transform_indices = @transform_4, window_bounds = array<i64: 8, 128>}, {transform_indices = @transform_5, window_bounds = array<i64: 8, 128>}]} {
    %c0_i32 = arith.constant 0 : i32
    %0 = arith.cmpi eq, %arg1, %c0_i32 : i32
    %1 = arith.extui %0 : i1 to i32
    %c0_i32_0 = arith.constant 0 : i32
    %2 = arith.cmpi ne, %1, %c0_i32_0 : i32
    scf.if %2 {
      %c0_108 = arith.constant 0 : index
      %c0_109 = arith.constant 0 : index
      %307 = vector.load %arg4[%c0_108, %c0_109] : memref<8x128xf32, #tpu.memory_space<vmem>>, vector<8x128xf32>
      %308 = arith.truncf %307 : vector<8x128xf32> to vector<8x128xbf16>
      %c0_110 = arith.constant 0 : index
      %c0_111 = arith.constant 0 : index
      %309 = vector.load %arg8[%c0_110, %c0_111] : memref<8x128xbf16, #tpu.memory_space<vmem>>, vector<8x128xbf16>
      tpu.vector_store %arg8[%c0_110, %c0_111], %308 {strides = array<i32>} : memref<8x128xbf16, #tpu.memory_space<vmem>>, vector<8x128xbf16>,
      %c0_112 = arith.constant 0 : index
      %c0_113 = arith.constant 0 : index
      %310 = vector.load %arg5[%c0_112, %c0_113] : memref<8x128xf32, #tpu.memory_space<vmem>>, vector<8x128xf32>
      %c0_114 = arith.constant 0 : index
      %c0_115 = arith.constant 0 : index
      %311 = vector.load %arg9[%c0_114, %c0_115] : memref<8x128xf32, #tpu.memory_space<vmem>>, vector<8x128xf32>
      tpu.vector_store %arg9[%c0_114, %c0_115], %310 {strides = array<i32>} : memref<8x128xf32, #tpu.memory_space<vmem>>, vector<8x128xf32>,
    } else {
    }
    %c0 = arith.constant 0 : index
    %c0_1 = arith.constant 0 : index
    %3 = vector.load %arg3[%c0, %c0_1] : memref<128x512xbf16, #tpu.memory_space<vmem>>, vector<128x512xbf16>
    %c0_2 = arith.constant 0 : index
    %c0_3 = arith.constant 0 : index
    %4 = vector.load %arg8[%c0_2, %c0_3] : memref<8x128xbf16, #tpu.memory_space<vmem>>, vector<8x128xbf16>
    %c0_4 = arith.constant 0 : index
    %c0_5 = arith.constant 0 : index
    %5 = vector.load %arg9[%c0_4, %c0_5] : memref<8x128xf32, #tpu.memory_space<vmem>>, vector<8x128xf32>
    %c0_i32_6 = arith.constant 0 : i32
    %6 = arith.index_cast %c0_i32_6 : i32 to index
    %c0_7 = arith.constant 0 : index
    %c0_8 = arith.constant 0 : index
    %7 = vector.load %arg2[%6, %c0_7, %c0_8] : memref<8x8x512xf32, #tpu.memory_space<vmem>>, vector<1x8x512xf32>
    %8 = vector.shape_cast %7 : vector<1x8x512xf32> to vector<8x512xf32>
    %cst = arith.constant dense<0.000000e+00> : vector<8x512xf32>
    %9 = tpu.matmul %4, %3, %cst {dimension_numbers = #tpu.dot_dimension_numbers<[1], [0], [0], [1], [0, 0, 1, 1], [], []>} : vector<8x128xbf16>, vector<128x512xbf16>, vector<8x512xf32> -> vector<8x512xf32>
    %10 = arith.addf %8, %9 : vector<8x512xf32>
    %11 = vector.extract_strided_slice %10 {offsets = [0, 0], sizes = [8, 128], strides = [1, 1]} : vector<8x512xf32> to vector<8x128xf32>
    %cst_9 = arith.constant 5.000000e-01 : f32
    %12 = vector.broadcast %cst_9 : f32 to vector<8x128xf32>
    %13 = arith.mulf %12, %11 : vector<8x128xf32>
    %14 = math.tanh %13 : vector<8x128xf32>
    %cst_10 = arith.constant 5.000000e-01 : f32
    %15 = vector.broadcast %cst_10 : f32 to vector<8x128xf32>
    %16 = arith.mulf %15, %14 : vector<8x128xf32>
    %cst_11 = arith.constant 5.000000e-01 : f32
    %17 = vector.broadcast %cst_11 : f32 to vector<8x128xf32>
    %18 = arith.addf %16, %17 : vector<8x128xf32>
    %19 = vector.extract_strided_slice %10 {offsets = [0, 128], sizes = [8, 128], strides = [1, 1]} : vector<8x512xf32> to vector<8x128xf32>
    %cst_12 = arith.constant 5.000000e-01 : f32
    %20 = vector.broadcast %cst_12 : f32 to vector<8x128xf32>
    %21 = arith.mulf %20, %19 : vector<8x128xf32>
    %22 = math.tanh %21 : vector<8x128xf32>
    %cst_13 = arith.constant 5.000000e-01 : f32
    %23 = vector.broadcast %cst_13 : f32 to vector<8x128xf32>
    %24 = arith.mulf %23, %22 : vector<8x128xf32>
    %cst_14 = arith.constant 5.000000e-01 : f32
    %25 = vector.broadcast %cst_14 : f32 to vector<8x128xf32>
    %26 = arith.addf %24, %25 : vector<8x128xf32>
    %27 = vector.extract_strided_slice %10 {offsets = [0, 256], sizes = [8, 128], strides = [1, 1]} : vector<8x512xf32> to vector<8x128xf32>
    %28 = math.tanh %27 : vector<8x128xf32>
    %29 = vector.extract_strided_slice %10 {offsets = [0, 384], sizes = [8, 128], strides = [1, 1]} : vector<8x512xf32> to vector<8x128xf32>
    %cst_15 = arith.constant 5.000000e-01 : f32
    %30 = vector.broadcast %cst_15 : f32 to vector<8x128xf32>
    %31 = arith.mulf %30, %29 : vector<8x128xf32>
    %32 = math.tanh %31 : vector<8x128xf32>
    %cst_16 = arith.constant 5.000000e-01 : f32
    %33 = vector.broadcast %cst_16 : f32 to vector<8x128xf32>
    %34 = arith.mulf %33, %32 : vector<8x128xf32>
    %cst_17 = arith.constant 5.000000e-01 : f32
    %35 = vector.broadcast %cst_17 : f32 to vector<8x128xf32>
    %36 = arith.addf %34, %35 : vector<8x128xf32>
    %37 = arith.mulf %26, %5 : vector<8x128xf32>
    %38 = arith.mulf %18, %28 : vector<8x128xf32>
    %39 = arith.addf %37, %38 : vector<8x128xf32>
    %40 = math.tanh %39 : vector<8x128xf32>
    %41 = arith.mulf %36, %40 : vector<8x128xf32>
    %42 = arith.truncf %41 : vector<8x128xf32> to vector<8x128xbf16>
    %c1_i32 = arith.constant 1 : i32
    %43 = arith.index_cast %c1_i32 : i32 to index
    %c0_18 = arith.constant 0 : index
    %c0_19 = arith.constant 0 : index
    %44 = vector.load %arg2[%43, %c0_18, %c0_19] : memref<8x8x512xf32, #tpu.memory_space<vmem>>, vector<1x8x512xf32>
    %45 = vector.shape_cast %44 : vector<1x8x512xf32> to vector<8x512xf32>
    %cst_20 = arith.constant dense<0.000000e+00> : vector<8x512xf32>
    %46 = tpu.matmul %42, %3, %cst_20 {dimension_numbers = #tpu.dot_dimension_numbers<[1], [0], [0], [1], [0, 0, 1, 1], [], []>} : vector<8x128xbf16>, vector<128x512xbf16>, vector<8x512xf32> -> vector<8x512xf32>
    %47 = arith.addf %45, %46 : vector<8x512xf32>
    %48 = vector.extract_strided_slice %47 {offsets = [0, 0], sizes = [8, 128], strides = [1, 1]} : vector<8x512xf32> to vector<8x128xf32>
    %cst_21 = arith.constant 5.000000e-01 : f32
    %49 = vector.broadcast %cst_21 : f32 to vector<8x128xf32>
    %50 = arith.mulf %49, %48 : vector<8x128xf32>
    %51 = math.tanh %50 : vector<8x128xf32>
    %cst_22 = arith.constant 5.000000e-01 : f32
    %52 = vector.broadcast %cst_22 : f32 to vector<8x128xf32>
    %53 = arith.mulf %52, %51 : vector<8x128xf32>
    %cst_23 = arith.constant 5.000000e-01 : f32
    %54 = vector.broadcast %cst_23 : f32 to vector<8x128xf32>
    %55 = arith.addf %53, %54 : vector<8x128xf32>
    %56 = vector.extract_strided_slice %47 {offsets = [0, 128], sizes = [8, 128], strides = [1, 1]} : vector<8x512xf32> to vector<8x128xf32>
    %cst_24 = arith.constant 5.000000e-01 : f32
    %57 = vector.broadcast %cst_24 : f32 to vector<8x128xf32>
    %58 = arith.mulf %57, %56 : vector<8x128xf32>
    %59 = math.tanh %58 : vector<8x128xf32>
    %cst_25 = arith.constant 5.000000e-01 : f32
    %60 = vector.broadcast %cst_25 : f32 to vector<8x128xf32>
    %61 = arith.mulf %60, %59 : vector<8x128xf32>
    %cst_26 = arith.constant 5.000000e-01 : f32
    %62 = vector.broadcast %cst_26 : f32 to vector<8x128xf32>
    %63 = arith.addf %61, %62 : vector<8x128xf32>
    %64 = vector.extract_strided_slice %47 {offsets = [0, 256], sizes = [8, 128], strides = [1, 1]} : vector<8x512xf32> to vector<8x128xf32>
    %65 = math.tanh %64 : vector<8x128xf32>
    %66 = vector.extract_strided_slice %47 {offsets = [0, 384], sizes = [8, 128], strides = [1, 1]} : vector<8x512xf32> to vector<8x128xf32>
    %cst_27 = arith.constant 5.000000e-01 : f32
    %67 = vector.broadcast %cst_27 : f32 to vector<8x128xf32>
    %68 = arith.mulf %67, %66 : vector<8x128xf32>
    %69 = math.tanh %68 : vector<8x128xf32>
    %cst_28 = arith.constant 5.000000e-01 : f32
    %70 = vector.broadcast %cst_28 : f32 to vector<8x128xf32>
    %71 = arith.mulf %70, %69 : vector<8x128xf32>
    %cst_29 = arith.constant 5.000000e-01 : f32
    %72 = vector.broadcast %cst_29 : f32 to vector<8x128xf32>
    %73 = arith.addf %71, %72 : vector<8x128xf32>
    %74 = arith.mulf %63, %39 : vector<8x128xf32>
    %75 = arith.mulf %55, %65 : vector<8x128xf32>
    %76 = arith.addf %74, %75 : vector<8x128xf32>
    %77 = math.tanh %76 : vector<8x128xf32>
    %78 = arith.mulf %73, %77 : vector<8x128xf32>
    %79 = arith.truncf %78 : vector<8x128xf32> to vector<8x128xbf16>
    %c2_i32 = arith.constant 2 : i32
    %80 = arith.index_cast %c2_i32 : i32 to index
    %c0_30 = arith.constant 0 : index
    %c0_31 = arith.constant 0 : index
    %81 = vector.load %arg2[%80, %c0_30, %c0_31] : memref<8x8x512xf32, #tpu.memory_space<vmem>>, vector<1x8x512xf32>
    %82 = vector.shape_cast %81 : vector<1x8x512xf32> to vector<8x512xf32>
    %cst_32 = arith.constant dense<0.000000e+00> : vector<8x512xf32>
    %83 = tpu.matmul %79, %3, %cst_32 {dimension_numbers = #tpu.dot_dimension_numbers<[1], [0], [0], [1], [0, 0, 1, 1], [], []>} : vector<8x128xbf16>, vector<128x512xbf16>, vector<8x512xf32> -> vector<8x512xf32>
    %84 = arith.addf %82, %83 : vector<8x512xf32>
    %85 = vector.extract_strided_slice %84 {offsets = [0, 0], sizes = [8, 128], strides = [1, 1]} : vector<8x512xf32> to vector<8x128xf32>
    %cst_33 = arith.constant 5.000000e-01 : f32
    %86 = vector.broadcast %cst_33 : f32 to vector<8x128xf32>
    %87 = arith.mulf %86, %85 : vector<8x128xf32>
    %88 = math.tanh %87 : vector<8x128xf32>
    %cst_34 = arith.constant 5.000000e-01 : f32
    %89 = vector.broadcast %cst_34 : f32 to vector<8x128xf32>
    %90 = arith.mulf %89, %88 : vector<8x128xf32>
    %cst_35 = arith.constant 5.000000e-01 : f32
    %91 = vector.broadcast %cst_35 : f32 to vector<8x128xf32>
    %92 = arith.addf %90, %91 : vector<8x128xf32>
    %93 = vector.extract_strided_slice %84 {offsets = [0, 128], sizes = [8, 128], strides = [1, 1]} : vector<8x512xf32> to vector<8x128xf32>
    %cst_36 = arith.constant 5.000000e-01 : f32
    %94 = vector.broadcast %cst_36 : f32 to vector<8x128xf32>
    %95 = arith.mulf %94, %93 : vector<8x128xf32>
    %96 = math.tanh %95 : vector<8x128xf32>
    %cst_37 = arith.constant 5.000000e-01 : f32
    %97 = vector.broadcast %cst_37 : f32 to vector<8x128xf32>
    %98 = arith.mulf %97, %96 : vector<8x128xf32>
    %cst_38 = arith.constant 5.000000e-01 : f32
    %99 = vector.broadcast %cst_38 : f32 to vector<8x128xf32>
    %100 = arith.addf %98, %99 : vector<8x128xf32>
    %101 = vector.extract_strided_slice %84 {offsets = [0, 256], sizes = [8, 128], strides = [1, 1]} : vector<8x512xf32> to vector<8x128xf32>
    %102 = math.tanh %101 : vector<8x128xf32>
    %103 = vector.extract_strided_slice %84 {offsets = [0, 384], sizes = [8, 128], strides = [1, 1]} : vector<8x512xf32> to vector<8x128xf32>
    %cst_39 = arith.constant 5.000000e-01 : f32
    %104 = vector.broadcast %cst_39 : f32 to vector<8x128xf32>
    %105 = arith.mulf %104, %103 : vector<8x128xf32>
    %106 = math.tanh %105 : vector<8x128xf32>
    %cst_40 = arith.constant 5.000000e-01 : f32
    %107 = vector.broadcast %cst_40 : f32 to vector<8x128xf32>
    %108 = arith.mulf %107, %106 : vector<8x128xf32>
    %cst_41 = arith.constant 5.000000e-01 : f32
    %109 = vector.broadcast %cst_41 : f32 to vector<8x128xf32>
    %110 = arith.addf %108, %109 : vector<8x128xf32>
    %111 = arith.mulf %100, %76 : vector<8x128xf32>
    %112 = arith.mulf %92, %102 : vector<8x128xf32>
    %113 = arith.addf %111, %112 : vector<8x128xf32>
    %114 = math.tanh %113 : vector<8x128xf32>
    %115 = arith.mulf %110, %114 : vector<8x128xf32>
    %116 = arith.truncf %115 : vector<8x128xf32> to vector<8x128xbf16>
    %c3_i32 = arith.constant 3 : i32
    %117 = arith.index_cast %c3_i32 : i32 to index
    %c0_42 = arith.constant 0 : index
    %c0_43 = arith.constant 0 : index
    %118 = vector.load %arg2[%117, %c0_42, %c0_43] : memref<8x8x512xf32, #tpu.memory_space<vmem>>, vector<1x8x512xf32>
    %119 = vector.shape_cast %118 : vector<1x8x512xf32> to vector<8x512xf32>
    %cst_44 = arith.constant dense<0.000000e+00> : vector<8x512xf32>
    %120 = tpu.matmul %116, %3, %cst_44 {dimension_numbers = #tpu.dot_dimension_numbers<[1], [0], [0], [1], [0, 0, 1, 1], [], []>} : vector<8x128xbf16>, vector<128x512xbf16>, vector<8x512xf32> -> vector<8x512xf32>
    %121 = arith.addf %119, %120 : vector<8x512xf32>
    %122 = vector.extract_strided_slice %121 {offsets = [0, 0], sizes = [8, 128], strides = [1, 1]} : vector<8x512xf32> to vector<8x128xf32>
    %cst_45 = arith.constant 5.000000e-01 : f32
    %123 = vector.broadcast %cst_45 : f32 to vector<8x128xf32>
    %124 = arith.mulf %123, %122 : vector<8x128xf32>
    %125 = math.tanh %124 : vector<8x128xf32>
    %cst_46 = arith.constant 5.000000e-01 : f32
    %126 = vector.broadcast %cst_46 : f32 to vector<8x128xf32>
    %127 = arith.mulf %126, %125 : vector<8x128xf32>
    %cst_47 = arith.constant 5.000000e-01 : f32
    %128 = vector.broadcast %cst_47 : f32 to vector<8x128xf32>
    %129 = arith.addf %127, %128 : vector<8x128xf32>
    %130 = vector.extract_strided_slice %121 {offsets = [0, 128], sizes = [8, 128], strides = [1, 1]} : vector<8x512xf32> to vector<8x128xf32>
    %cst_48 = arith.constant 5.000000e-01 : f32
    %131 = vector.broadcast %cst_48 : f32 to vector<8x128xf32>
    %132 = arith.mulf %131, %130 : vector<8x128xf32>
    %133 = math.tanh %132 : vector<8x128xf32>
    %cst_49 = arith.constant 5.000000e-01 : f32
    %134 = vector.broadcast %cst_49 : f32 to vector<8x128xf32>
    %135 = arith.mulf %134, %133 : vector<8x128xf32>
    %cst_50 = arith.constant 5.000000e-01 : f32
    %136 = vector.broadcast %cst_50 : f32 to vector<8x128xf32>
    %137 = arith.addf %135, %136 : vector<8x128xf32>
    %138 = vector.extract_strided_slice %121 {offsets = [0, 256], sizes = [8, 128], strides = [1, 1]} : vector<8x512xf32> to vector<8x128xf32>
    %139 = math.tanh %138 : vector<8x128xf32>
    %140 = vector.extract_strided_slice %121 {offsets = [0, 384], sizes = [8, 128], strides = [1, 1]} : vector<8x512xf32> to vector<8x128xf32>
    %cst_51 = arith.constant 5.000000e-01 : f32
    %141 = vector.broadcast %cst_51 : f32 to vector<8x128xf32>
    %142 = arith.mulf %141, %140 : vector<8x128xf32>
    %143 = math.tanh %142 : vector<8x128xf32>
    %cst_52 = arith.constant 5.000000e-01 : f32
    %144 = vector.broadcast %cst_52 : f32 to vector<8x128xf32>
    %145 = arith.mulf %144, %143 : vector<8x128xf32>
    %cst_53 = arith.constant 5.000000e-01 : f32
    %146 = vector.broadcast %cst_53 : f32 to vector<8x128xf32>
    %147 = arith.addf %145, %146 : vector<8x128xf32>
    %148 = arith.mulf %137, %113 : vector<8x128xf32>
    %149 = arith.mulf %129, %139 : vector<8x128xf32>
    %150 = arith.addf %148, %149 : vector<8x128xf32>
    %151 = math.tanh %150 : vector<8x128xf32>
    %152 = arith.mulf %147, %151 : vector<8x128xf32>
    %153 = arith.truncf %152 : vector<8x128xf32> to vector<8x128xbf16>
    %c4_i32 = arith.constant 4 : i32
    %154 = arith.index_cast %c4_i32 : i32 to index
    %c0_54 = arith.constant 0 : index
    %c0_55 = arith.constant 0 : index
    %155 = vector.load %arg2[%154, %c0_54, %c0_55] : memref<8x8x512xf32, #tpu.memory_space<vmem>>, vector<1x8x512xf32>
    %156 = vector.shape_cast %155 : vector<1x8x512xf32> to vector<8x512xf32>
    %cst_56 = arith.constant dense<0.000000e+00> : vector<8x512xf32>
    %157 = tpu.matmul %153, %3, %cst_56 {dimension_numbers = #tpu.dot_dimension_numbers<[1], [0], [0], [1], [0, 0, 1, 1], [], []>} : vector<8x128xbf16>, vector<128x512xbf16>, vector<8x512xf32> -> vector<8x512xf32>
    %158 = arith.addf %156, %157 : vector<8x512xf32>
    %159 = vector.extract_strided_slice %158 {offsets = [0, 0], sizes = [8, 128], strides = [1, 1]} : vector<8x512xf32> to vector<8x128xf32>
    %cst_57 = arith.constant 5.000000e-01 : f32
    %160 = vector.broadcast %cst_57 : f32 to vector<8x128xf32>
    %161 = arith.mulf %160, %159 : vector<8x128xf32>
    %162 = math.tanh %161 : vector<8x128xf32>
    %cst_58 = arith.constant 5.000000e-01 : f32
    %163 = vector.broadcast %cst_58 : f32 to vector<8x128xf32>
    %164 = arith.mulf %163, %162 : vector<8x128xf32>
    %cst_59 = arith.constant 5.000000e-01 : f32
    %165 = vector.broadcast %cst_59 : f32 to vector<8x128xf32>
    %166 = arith.addf %164, %165 : vector<8x128xf32>
    %167 = vector.extract_strided_slice %158 {offsets = [0, 128], sizes = [8, 128], strides = [1, 1]} : vector<8x512xf32> to vector<8x128xf32>
    %cst_60 = arith.constant 5.000000e-01 : f32
    %168 = vector.broadcast %cst_60 : f32 to vector<8x128xf32>
    %169 = arith.mulf %168, %167 : vector<8x128xf32>
    %170 = math.tanh %169 : vector<8x128xf32>
    %cst_61 = arith.constant 5.000000e-01 : f32
    %171 = vector.broadcast %cst_61 : f32 to vector<8x128xf32>
    %172 = arith.mulf %171, %170 : vector<8x128xf32>
    %cst_62 = arith.constant 5.000000e-01 : f32
    %173 = vector.broadcast %cst_62 : f32 to vector<8x128xf32>
    %174 = arith.addf %172, %173 : vector<8x128xf32>
    %175 = vector.extract_strided_slice %158 {offsets = [0, 256], sizes = [8, 128], strides = [1, 1]} : vector<8x512xf32> to vector<8x128xf32>
    %176 = math.tanh %175 : vector<8x128xf32>
    %177 = vector.extract_strided_slice %158 {offsets = [0, 384], sizes = [8, 128], strides = [1, 1]} : vector<8x512xf32> to vector<8x128xf32>
    %cst_63 = arith.constant 5.000000e-01 : f32
    %178 = vector.broadcast %cst_63 : f32 to vector<8x128xf32>
    %179 = arith.mulf %178, %177 : vector<8x128xf32>
    %180 = math.tanh %179 : vector<8x128xf32>
    %cst_64 = arith.constant 5.000000e-01 : f32
    %181 = vector.broadcast %cst_64 : f32 to vector<8x128xf32>
    %182 = arith.mulf %181, %180 : vector<8x128xf32>
    %cst_65 = arith.constant 5.000000e-01 : f32
    %183 = vector.broadcast %cst_65 : f32 to vector<8x128xf32>
    %184 = arith.addf %182, %183 : vector<8x128xf32>
    %185 = arith.mulf %174, %150 : vector<8x128xf32>
    %186 = arith.mulf %166, %176 : vector<8x128xf32>
    %187 = arith.addf %185, %186 : vector<8x128xf32>
    %188 = math.tanh %187 : vector<8x128xf32>
    %189 = arith.mulf %184, %188 : vector<8x128xf32>
    %190 = arith.truncf %189 : vector<8x128xf32> to vector<8x128xbf16>
    %c5_i32 = arith.constant 5 : i32
    %191 = arith.index_cast %c5_i32 : i32 to index
    %c0_66 = arith.constant 0 : index
    %c0_67 = arith.constant 0 : index
    %192 = vector.load %arg2[%191, %c0_66, %c0_67] : memref<8x8x512xf32, #tpu.memory_space<vmem>>, vector<1x8x512xf32>
    %193 = vector.shape_cast %192 : vector<1x8x512xf32> to vector<8x512xf32>
    %cst_68 = arith.constant dense<0.000000e+00> : vector<8x512xf32>
    %194 = tpu.matmul %190, %3, %cst_68 {dimension_numbers = #tpu.dot_dimension_numbers<[1], [0], [0], [1], [0, 0, 1, 1], [], []>} : vector<8x128xbf16>, vector<128x512xbf16>, vector<8x512xf32> -> vector<8x512xf32>
    %195 = arith.addf %193, %194 : vector<8x512xf32>
    %196 = vector.extract_strided_slice %195 {offsets = [0, 0], sizes = [8, 128], strides = [1, 1]} : vector<8x512xf32> to vector<8x128xf32>
    %cst_69 = arith.constant 5.000000e-01 : f32
    %197 = vector.broadcast %cst_69 : f32 to vector<8x128xf32>
    %198 = arith.mulf %197, %196 : vector<8x128xf32>
    %199 = math.tanh %198 : vector<8x128xf32>
    %cst_70 = arith.constant 5.000000e-01 : f32
    %200 = vector.broadcast %cst_70 : f32 to vector<8x128xf32>
    %201 = arith.mulf %200, %199 : vector<8x128xf32>
    %cst_71 = arith.constant 5.000000e-01 : f32
    %202 = vector.broadcast %cst_71 : f32 to vector<8x128xf32>
    %203 = arith.addf %201, %202 : vector<8x128xf32>
    %204 = vector.extract_strided_slice %195 {offsets = [0, 128], sizes = [8, 128], strides = [1, 1]} : vector<8x512xf32> to vector<8x128xf32>
    %cst_72 = arith.constant 5.000000e-01 : f32
    %205 = vector.broadcast %cst_72 : f32 to vector<8x128xf32>
    %206 = arith.mulf %205, %204 : vector<8x128xf32>
    %207 = math.tanh %206 : vector<8x128xf32>
    %cst_73 = arith.constant 5.000000e-01 : f32
    %208 = vector.broadcast %cst_73 : f32 to vector<8x128xf32>
    %209 = arith.mulf %208, %207 : vector<8x128xf32>
    %cst_74 = arith.constant 5.000000e-01 : f32
    %210 = vector.broadcast %cst_74 : f32 to vector<8x128xf32>
    %211 = arith.addf %209, %210 : vector<8x128xf32>
    %212 = vector.extract_strided_slice %195 {offsets = [0, 256], sizes = [8, 128], strides = [1, 1]} : vector<8x512xf32> to vector<8x128xf32>
    %213 = math.tanh %212 : vector<8x128xf32>
    %214 = vector.extract_strided_slice %195 {offsets = [0, 384], sizes = [8, 128], strides = [1, 1]} : vector<8x512xf32> to vector<8x128xf32>
    %cst_75 = arith.constant 5.000000e-01 : f32
    %215 = vector.broadcast %cst_75 : f32 to vector<8x128xf32>
    %216 = arith.mulf %215, %214 : vector<8x128xf32>
    %217 = math.tanh %216 : vector<8x128xf32>
    %cst_76 = arith.constant 5.000000e-01 : f32
    %218 = vector.broadcast %cst_76 : f32 to vector<8x128xf32>
    %219 = arith.mulf %218, %217 : vector<8x128xf32>
    %cst_77 = arith.constant 5.000000e-01 : f32
    %220 = vector.broadcast %cst_77 : f32 to vector<8x128xf32>
    %221 = arith.addf %219, %220 : vector<8x128xf32>
    %222 = arith.mulf %211, %187 : vector<8x128xf32>
    %223 = arith.mulf %203, %213 : vector<8x128xf32>
    %224 = arith.addf %222, %223 : vector<8x128xf32>
    %225 = math.tanh %224 : vector<8x128xf32>
    %226 = arith.mulf %221, %225 : vector<8x128xf32>
    %227 = arith.truncf %226 : vector<8x128xf32> to vector<8x128xbf16>
    %c6_i32 = arith.constant 6 : i32
    %228 = arith.index_cast %c6_i32 : i32 to index
    %c0_78 = arith.constant 0 : index
    %c0_79 = arith.constant 0 : index
    %229 = vector.load %arg2[%228, %c0_78, %c0_79] : memref<8x8x512xf32, #tpu.memory_space<vmem>>, vector<1x8x512xf32>
    %230 = vector.shape_cast %229 : vector<1x8x512xf32> to vector<8x512xf32>
    %cst_80 = arith.constant dense<0.000000e+00> : vector<8x512xf32>
    %231 = tpu.matmul %227, %3, %cst_80 {dimension_numbers = #tpu.dot_dimension_numbers<[1], [0], [0], [1], [0, 0, 1, 1], [], []>} : vector<8x128xbf16>, vector<128x512xbf16>, vector<8x512xf32> -> vector<8x512xf32>
    %232 = arith.addf %230, %231 : vector<8x512xf32>
    %233 = vector.extract_strided_slice %232 {offsets = [0, 0], sizes = [8, 128], strides = [1, 1]} : vector<8x512xf32> to vector<8x128xf32>
    %cst_81 = arith.constant 5.000000e-01 : f32
    %234 = vector.broadcast %cst_81 : f32 to vector<8x128xf32>
    %235 = arith.mulf %234, %233 : vector<8x128xf32>
    %236 = math.tanh %235 : vector<8x128xf32>
    %cst_82 = arith.constant 5.000000e-01 : f32
    %237 = vector.broadcast %cst_82 : f32 to vector<8x128xf32>
    %238 = arith.mulf %237, %236 : vector<8x128xf32>
    %cst_83 = arith.constant 5.000000e-01 : f32
    %239 = vector.broadcast %cst_83 : f32 to vector<8x128xf32>
    %240 = arith.addf %238, %239 : vector<8x128xf32>
    %241 = vector.extract_strided_slice %232 {offsets = [0, 128], sizes = [8, 128], strides = [1, 1]} : vector<8x512xf32> to vector<8x128xf32>
    %cst_84 = arith.constant 5.000000e-01 : f32
    %242 = vector.broadcast %cst_84 : f32 to vector<8x128xf32>
    %243 = arith.mulf %242, %241 : vector<8x128xf32>
    %244 = math.tanh %243 : vector<8x128xf32>
    %cst_85 = arith.constant 5.000000e-01 : f32
    %245 = vector.broadcast %cst_85 : f32 to vector<8x128xf32>
    %246 = arith.mulf %245, %244 : vector<8x128xf32>
    %cst_86 = arith.constant 5.000000e-01 : f32
    %247 = vector.broadcast %cst_86 : f32 to vector<8x128xf32>
    %248 = arith.addf %246, %247 : vector<8x128xf32>
    %249 = vector.extract_strided_slice %232 {offsets = [0, 256], sizes = [8, 128], strides = [1, 1]} : vector<8x512xf32> to vector<8x128xf32>
    %250 = math.tanh %249 : vector<8x128xf32>
    %251 = vector.extract_strided_slice %232 {offsets = [0, 384], sizes = [8, 128], strides = [1, 1]} : vector<8x512xf32> to vector<8x128xf32>
    %cst_87 = arith.constant 5.000000e-01 : f32
    %252 = vector.broadcast %cst_87 : f32 to vector<8x128xf32>
    %253 = arith.mulf %252, %251 : vector<8x128xf32>
    %254 = math.tanh %253 : vector<8x128xf32>
    %cst_88 = arith.constant 5.000000e-01 : f32
    %255 = vector.broadcast %cst_88 : f32 to vector<8x128xf32>
    %256 = arith.mulf %255, %254 : vector<8x128xf32>
    %cst_89 = arith.constant 5.000000e-01 : f32
    %257 = vector.broadcast %cst_89 : f32 to vector<8x128xf32>
    %258 = arith.addf %256, %257 : vector<8x128xf32>
    %259 = arith.mulf %248, %224 : vector<8x128xf32>
    %260 = arith.mulf %240, %250 : vector<8x128xf32>
    %261 = arith.addf %259, %260 : vector<8x128xf32>
    %262 = math.tanh %261 : vector<8x128xf32>
    %263 = arith.mulf %258, %262 : vector<8x128xf32>
    %264 = arith.truncf %263 : vector<8x128xf32> to vector<8x128xbf16>
    %c7_i32 = arith.constant 7 : i32
    %265 = arith.index_cast %c7_i32 : i32 to index
    %c0_90 = arith.constant 0 : index
    %c0_91 = arith.constant 0 : index
    %266 = vector.load %arg2[%265, %c0_90, %c0_91] : memref<8x8x512xf32, #tpu.memory_space<vmem>>, vector<1x8x512xf32>
    %267 = vector.shape_cast %266 : vector<1x8x512xf32> to vector<8x512xf32>
    %cst_92 = arith.constant dense<0.000000e+00> : vector<8x512xf32>
    %268 = tpu.matmul %264, %3, %cst_92 {dimension_numbers = #tpu.dot_dimension_numbers<[1], [0], [0], [1], [0, 0, 1, 1], [], []>} : vector<8x128xbf16>, vector<128x512xbf16>, vector<8x512xf32> -> vector<8x512xf32>
    %269 = arith.addf %267, %268 : vector<8x512xf32>
    %270 = vector.extract_strided_slice %269 {offsets = [0, 0], sizes = [8, 128], strides = [1, 1]} : vector<8x512xf32> to vector<8x128xf32>
    %cst_93 = arith.constant 5.000000e-01 : f32
    %271 = vector.broadcast %cst_93 : f32 to vector<8x128xf32>
    %272 = arith.mulf %271, %270 : vector<8x128xf32>
    %273 = math.tanh %272 : vector<8x128xf32>
    %cst_94 = arith.constant 5.000000e-01 : f32
    %274 = vector.broadcast %cst_94 : f32 to vector<8x128xf32>
    %275 = arith.mulf %274, %273 : vector<8x128xf32>
    %cst_95 = arith.constant 5.000000e-01 : f32
    %276 = vector.broadcast %cst_95 : f32 to vector<8x128xf32>
    %277 = arith.addf %275, %276 : vector<8x128xf32>
    %278 = vector.extract_strided_slice %269 {offsets = [0, 128], sizes = [8, 128], strides = [1, 1]} : vector<8x512xf32> to vector<8x128xf32>
    %cst_96 = arith.constant 5.000000e-01 : f32
    %279 = vector.broadcast %cst_96 : f32 to vector<8x128xf32>
    %280 = arith.mulf %279, %278 : vector<8x128xf32>
    %281 = math.tanh %280 : vector<8x128xf32>
    %cst_97 = arith.constant 5.000000e-01 : f32
    %282 = vector.broadcast %cst_97 : f32 to vector<8x128xf32>
    %283 = arith.mulf %282, %281 : vector<8x128xf32>
    %cst_98 = arith.constant 5.000000e-01 : f32
    %284 = vector.broadcast %cst_98 : f32 to vector<8x128xf32>
    %285 = arith.addf %283, %284 : vector<8x128xf32>
    %286 = vector.extract_strided_slice %269 {offsets = [0, 256], sizes = [8, 128], strides = [1, 1]} : vector<8x512xf32> to vector<8x128xf32>
    %287 = math.tanh %286 : vector<8x128xf32>
    %288 = vector.extract_strided_slice %269 {offsets = [0, 384], sizes = [8, 128], strides = [1, 1]} : vector<8x512xf32> to vector<8x128xf32>
    %cst_99 = arith.constant 5.000000e-01 : f32
    %289 = vector.broadcast %cst_99 : f32 to vector<8x128xf32>
    %290 = arith.mulf %289, %288 : vector<8x128xf32>
    %291 = math.tanh %290 : vector<8x128xf32>
    %cst_100 = arith.constant 5.000000e-01 : f32
    %292 = vector.broadcast %cst_100 : f32 to vector<8x128xf32>
    %293 = arith.mulf %292, %291 : vector<8x128xf32>
    %cst_101 = arith.constant 5.000000e-01 : f32
    %294 = vector.broadcast %cst_101 : f32 to vector<8x128xf32>
    %295 = arith.addf %293, %294 : vector<8x128xf32>
    %296 = arith.mulf %285, %261 : vector<8x128xf32>
    %297 = arith.mulf %277, %287 : vector<8x128xf32>
    %298 = arith.addf %296, %297 : vector<8x128xf32>
    %299 = math.tanh %298 : vector<8x128xf32>
    %300 = arith.mulf %295, %299 : vector<8x128xf32>
    %301 = arith.truncf %300 : vector<8x128xf32> to vector<8x128xbf16>
    %c8_i32 = arith.constant 8 : i32
    %c0_102 = arith.constant 0 : index
    %c0_103 = arith.constant 0 : index
    %302 = vector.load %arg8[%c0_102, %c0_103] : memref<8x128xbf16, #tpu.memory_space<vmem>>, vector<8x128xbf16>
    tpu.vector_store %arg8[%c0_102, %c0_103], %301 {strides = array<i32>} : memref<8x128xbf16, #tpu.memory_space<vmem>>, vector<8x128xbf16>,
    %c0_104 = arith.constant 0 : index
    %c0_105 = arith.constant 0 : index
    %303 = vector.load %arg9[%c0_104, %c0_105] : memref<8x128xf32, #tpu.memory_space<vmem>>, vector<8x128xf32>
    tpu.vector_store %arg9[%c0_104, %c0_105], %298 {strides = array<i32>} : memref<8x128xf32, #tpu.memory_space<vmem>>, vector<8x128xf32>,
    %c0_i32_106 = arith.constant 0 : i32
    %304 = arith.cmpi eq, %arg1, %c0_i32_106 : i32
    %305 = arith.extui %304 : i1 to i32
    %c0_i32_107 = arith.constant 0 : i32
    %306 = arith.cmpi ne, %305, %c0_i32_107 : i32
    scf.if %306 {
      %307 = arith.extf %301 : vector<8x128xbf16> to vector<8x128xf32>
      %c0_108 = arith.constant 0 : index
      %c0_109 = arith.constant 0 : index
      %308 = vector.load %arg6[%c0_108, %c0_109] : memref<8x128xf32, #tpu.memory_space<vmem>>, vector<8x128xf32>
      tpu.vector_store %arg6[%c0_108, %c0_109], %307 {strides = array<i32>} : memref<8x128xf32, #tpu.memory_space<vmem>>, vector<8x128xf32>,
      %c0_110 = arith.constant 0 : index
      %c0_111 = arith.constant 0 : index
      %309 = vector.load %arg7[%c0_110, %c0_111] : memref<8x128xf32, #tpu.memory_space<vmem>>, vector<8x128xf32>
      tpu.vector_store %arg7[%c0_110, %c0_111], %298 {strides = array<i32>} : memref<8x128xf32, #tpu.memory_space<vmem>>, vector<8x128xf32>,
    } else {
    }
    return
  }
  func.func @transform_0(%arg0: i32, %arg1: i32) -> (i32, i32, i32) {
    %c0_i32 = arith.constant 0 : i32
    %c0_i32_0 = arith.constant 0 : i32
    return %arg1, %arg0, %c0_i32 : i32, i32, i32
  }
  func.func @transform_1(%arg0: i32, %arg1: i32) -> (i32, i32) {
    %c0_i32 = arith.constant 0 : i32
    %c0_i32_0 = arith.constant 0 : i32
    %c0_i32_1 = arith.constant 0 : i32
    return %c0_i32, %c0_i32_0 : i32, i32
  }
  func.func @transform_2(%arg0: i32, %arg1: i32) -> (i32, i32) {
    %c0_i32 = arith.constant 0 : i32
    %c0_i32_0 = arith.constant 0 : i32
    return %arg0, %c0_i32 : i32, i32
  }
  func.func @transform_3(%arg0: i32, %arg1: i32) -> (i32, i32) {
    %c0_i32 = arith.constant 0 : i32
    %c0_i32_0 = arith.constant 0 : i32
    return %arg0, %c0_i32 : i32, i32
  }
  func.func @transform_4(%arg0: i32, %arg1: i32) -> (i32, i32) {
    %c0_i32 = arith.constant 0 : i32
    %c0_i32_0 = arith.constant 0 : i32
    return %arg0, %c0_i32 : i32, i32
  }
  func.func @transform_5(%arg0: i32, %arg1: i32) -> (i32, i32) {
    %c0_i32 = arith.constant 0 : i32
    %c0_i32_0 = arith.constant 0 : i32
    return %arg0, %c0_i32 : i32, i32
  }
}

module attributes {stable_mosaic.version = 11 : i64} {
  func.func @_lstm_kernel(%arg0: i32, %arg1: i32, %arg2: memref<8x8x512xf32, #tpu.memory_space<vmem>>, %arg3: memref<128x512xbf16, #tpu.memory_space<vmem>>, %arg4: memref<8x128xf32, #tpu.memory_space<vmem>>, %arg5: memref<8x128xf32, #tpu.memory_space<vmem>>, %arg6: memref<8x8x128xbf16, #tpu.memory_space<vmem>>, %arg7: memref<8x128xf32, #tpu.memory_space<vmem>>, %arg8: memref<8x128xf32, #tpu.memory_space<vmem>>, %arg9: memref<8x128xbf16, #tpu.memory_space<vmem>>, %arg10: memref<8x128xf32, #tpu.memory_space<vmem>>) attributes {dimension_semantics = [#tpu.dimension_semantics<parallel>, #tpu.dimension_semantics<arbitrary>], iteration_bounds = array<i64: 1, 1>, scalar_prefetch = 0 : i64, scratch_operands = 2 : i64, tpu.core_type = #tpu.core_type<tc>, window_params = [{transform_indices = @transform_0, window_bounds = array<i64: 8, 8, 512>}, {pipeline_mode = #tpu.pipeline_mode<synchronous>, transform_indices = @transform_1, window_bounds = array<i64: 128, 512>}, {transform_indices = @transform_2, window_bounds = array<i64: 8, 128>}, {transform_indices = @transform_3, window_bounds = array<i64: 8, 128>}, {transform_indices = @transform_4, window_bounds = array<i64: 8, 8, 128>}, {transform_indices = @transform_5, window_bounds = array<i64: 8, 128>}, {transform_indices = @transform_6, window_bounds = array<i64: 8, 128>}]} {
    %c0_i32 = arith.constant 0 : i32
    %0 = arith.cmpi eq, %arg1, %c0_i32 : i32
    %1 = arith.extui %0 : i1 to i32
    %c0_i32_0 = arith.constant 0 : i32
    %2 = arith.cmpi ne, %1, %c0_i32_0 : i32
    scf.if %2 {
      %c0_124 = arith.constant 0 : index
      %c0_125 = arith.constant 0 : index
      %339 = vector.load %arg4[%c0_124, %c0_125] : memref<8x128xf32, #tpu.memory_space<vmem>>, vector<8x128xf32>
      %340 = arith.truncf %339 : vector<8x128xf32> to vector<8x128xbf16>
      %c0_126 = arith.constant 0 : index
      %c0_127 = arith.constant 0 : index
      %341 = vector.load %arg9[%c0_126, %c0_127] : memref<8x128xbf16, #tpu.memory_space<vmem>>, vector<8x128xbf16>
      tpu.vector_store %arg9[%c0_126, %c0_127], %340 {strides = array<i32>} : memref<8x128xbf16, #tpu.memory_space<vmem>>, vector<8x128xbf16>,
      %c0_128 = arith.constant 0 : index
      %c0_129 = arith.constant 0 : index
      %342 = vector.load %arg5[%c0_128, %c0_129] : memref<8x128xf32, #tpu.memory_space<vmem>>, vector<8x128xf32>
      %c0_130 = arith.constant 0 : index
      %c0_131 = arith.constant 0 : index
      %343 = vector.load %arg10[%c0_130, %c0_131] : memref<8x128xf32, #tpu.memory_space<vmem>>, vector<8x128xf32>
      tpu.vector_store %arg10[%c0_130, %c0_131], %342 {strides = array<i32>} : memref<8x128xf32, #tpu.memory_space<vmem>>, vector<8x128xf32>,
    } else {
    }
    %c0 = arith.constant 0 : index
    %c0_1 = arith.constant 0 : index
    %3 = vector.load %arg3[%c0, %c0_1] : memref<128x512xbf16, #tpu.memory_space<vmem>>, vector<128x512xbf16>
    %c0_2 = arith.constant 0 : index
    %c0_3 = arith.constant 0 : index
    %4 = vector.load %arg9[%c0_2, %c0_3] : memref<8x128xbf16, #tpu.memory_space<vmem>>, vector<8x128xbf16>
    %c0_4 = arith.constant 0 : index
    %c0_5 = arith.constant 0 : index
    %5 = vector.load %arg10[%c0_4, %c0_5] : memref<8x128xf32, #tpu.memory_space<vmem>>, vector<8x128xf32>
    %c0_i32_6 = arith.constant 0 : i32
    %6 = arith.index_cast %c0_i32_6 : i32 to index
    %c0_7 = arith.constant 0 : index
    %c0_8 = arith.constant 0 : index
    %7 = vector.load %arg2[%6, %c0_7, %c0_8] : memref<8x8x512xf32, #tpu.memory_space<vmem>>, vector<1x8x512xf32>
    %8 = vector.shape_cast %7 : vector<1x8x512xf32> to vector<8x512xf32>
    %cst = arith.constant dense<0.000000e+00> : vector<8x512xf32>
    %9 = tpu.matmul %4, %3, %cst {dimension_numbers = #tpu.dot_dimension_numbers<[1], [0], [0], [1], [0, 0, 1, 1], [], []>} : vector<8x128xbf16>, vector<128x512xbf16>, vector<8x512xf32> -> vector<8x512xf32>
    %10 = arith.addf %8, %9 : vector<8x512xf32>
    %11 = vector.extract_strided_slice %10 {offsets = [0, 0], sizes = [8, 128], strides = [1, 1]} : vector<8x512xf32> to vector<8x128xf32>
    %cst_9 = arith.constant 5.000000e-01 : f32
    %12 = vector.broadcast %cst_9 : f32 to vector<8x128xf32>
    %13 = arith.mulf %12, %11 : vector<8x128xf32>
    %14 = math.tanh %13 : vector<8x128xf32>
    %cst_10 = arith.constant 5.000000e-01 : f32
    %15 = vector.broadcast %cst_10 : f32 to vector<8x128xf32>
    %16 = arith.mulf %15, %14 : vector<8x128xf32>
    %cst_11 = arith.constant 5.000000e-01 : f32
    %17 = vector.broadcast %cst_11 : f32 to vector<8x128xf32>
    %18 = arith.addf %16, %17 : vector<8x128xf32>
    %19 = vector.extract_strided_slice %10 {offsets = [0, 128], sizes = [8, 128], strides = [1, 1]} : vector<8x512xf32> to vector<8x128xf32>
    %cst_12 = arith.constant 5.000000e-01 : f32
    %20 = vector.broadcast %cst_12 : f32 to vector<8x128xf32>
    %21 = arith.mulf %20, %19 : vector<8x128xf32>
    %22 = math.tanh %21 : vector<8x128xf32>
    %cst_13 = arith.constant 5.000000e-01 : f32
    %23 = vector.broadcast %cst_13 : f32 to vector<8x128xf32>
    %24 = arith.mulf %23, %22 : vector<8x128xf32>
    %cst_14 = arith.constant 5.000000e-01 : f32
    %25 = vector.broadcast %cst_14 : f32 to vector<8x128xf32>
    %26 = arith.addf %24, %25 : vector<8x128xf32>
    %27 = vector.extract_strided_slice %10 {offsets = [0, 256], sizes = [8, 128], strides = [1, 1]} : vector<8x512xf32> to vector<8x128xf32>
    %28 = math.tanh %27 : vector<8x128xf32>
    %29 = vector.extract_strided_slice %10 {offsets = [0, 384], sizes = [8, 128], strides = [1, 1]} : vector<8x512xf32> to vector<8x128xf32>
    %cst_15 = arith.constant 5.000000e-01 : f32
    %30 = vector.broadcast %cst_15 : f32 to vector<8x128xf32>
    %31 = arith.mulf %30, %29 : vector<8x128xf32>
    %32 = math.tanh %31 : vector<8x128xf32>
    %cst_16 = arith.constant 5.000000e-01 : f32
    %33 = vector.broadcast %cst_16 : f32 to vector<8x128xf32>
    %34 = arith.mulf %33, %32 : vector<8x128xf32>
    %cst_17 = arith.constant 5.000000e-01 : f32
    %35 = vector.broadcast %cst_17 : f32 to vector<8x128xf32>
    %36 = arith.addf %34, %35 : vector<8x128xf32>
    %37 = arith.mulf %26, %5 : vector<8x128xf32>
    %38 = arith.mulf %18, %28 : vector<8x128xf32>
    %39 = arith.addf %37, %38 : vector<8x128xf32>
    %40 = math.tanh %39 : vector<8x128xf32>
    %41 = arith.mulf %36, %40 : vector<8x128xf32>
    %42 = arith.truncf %41 : vector<8x128xf32> to vector<8x128xbf16>
    %43 = arith.index_cast %c0_i32_6 : i32 to index
    %c0_18 = arith.constant 0 : index
    %c0_19 = arith.constant 0 : index
    %44 = vector.load %arg6[%43, %c0_18, %c0_19] : memref<8x8x128xbf16, #tpu.memory_space<vmem>>, vector<1x8x128xbf16>
    %45 = vector.shape_cast %44 : vector<1x8x128xbf16> to vector<8x128xbf16>
    %46 = vector.shape_cast %42 : vector<8x128xbf16> to vector<1x8x128xbf16>
    tpu.vector_store %arg6[%43, %c0_18, %c0_19], %46 {strides = array<i32>} : memref<8x8x128xbf16, #tpu.memory_space<vmem>>, vector<1x8x128xbf16>,
    %c1_i32 = arith.constant 1 : i32
    %47 = arith.index_cast %c1_i32 : i32 to index
    %c0_20 = arith.constant 0 : index
    %c0_21 = arith.constant 0 : index
    %48 = vector.load %arg2[%47, %c0_20, %c0_21] : memref<8x8x512xf32, #tpu.memory_space<vmem>>, vector<1x8x512xf32>
    %49 = vector.shape_cast %48 : vector<1x8x512xf32> to vector<8x512xf32>
    %cst_22 = arith.constant dense<0.000000e+00> : vector<8x512xf32>
    %50 = tpu.matmul %42, %3, %cst_22 {dimension_numbers = #tpu.dot_dimension_numbers<[1], [0], [0], [1], [0, 0, 1, 1], [], []>} : vector<8x128xbf16>, vector<128x512xbf16>, vector<8x512xf32> -> vector<8x512xf32>
    %51 = arith.addf %49, %50 : vector<8x512xf32>
    %52 = vector.extract_strided_slice %51 {offsets = [0, 0], sizes = [8, 128], strides = [1, 1]} : vector<8x512xf32> to vector<8x128xf32>
    %cst_23 = arith.constant 5.000000e-01 : f32
    %53 = vector.broadcast %cst_23 : f32 to vector<8x128xf32>
    %54 = arith.mulf %53, %52 : vector<8x128xf32>
    %55 = math.tanh %54 : vector<8x128xf32>
    %cst_24 = arith.constant 5.000000e-01 : f32
    %56 = vector.broadcast %cst_24 : f32 to vector<8x128xf32>
    %57 = arith.mulf %56, %55 : vector<8x128xf32>
    %cst_25 = arith.constant 5.000000e-01 : f32
    %58 = vector.broadcast %cst_25 : f32 to vector<8x128xf32>
    %59 = arith.addf %57, %58 : vector<8x128xf32>
    %60 = vector.extract_strided_slice %51 {offsets = [0, 128], sizes = [8, 128], strides = [1, 1]} : vector<8x512xf32> to vector<8x128xf32>
    %cst_26 = arith.constant 5.000000e-01 : f32
    %61 = vector.broadcast %cst_26 : f32 to vector<8x128xf32>
    %62 = arith.mulf %61, %60 : vector<8x128xf32>
    %63 = math.tanh %62 : vector<8x128xf32>
    %cst_27 = arith.constant 5.000000e-01 : f32
    %64 = vector.broadcast %cst_27 : f32 to vector<8x128xf32>
    %65 = arith.mulf %64, %63 : vector<8x128xf32>
    %cst_28 = arith.constant 5.000000e-01 : f32
    %66 = vector.broadcast %cst_28 : f32 to vector<8x128xf32>
    %67 = arith.addf %65, %66 : vector<8x128xf32>
    %68 = vector.extract_strided_slice %51 {offsets = [0, 256], sizes = [8, 128], strides = [1, 1]} : vector<8x512xf32> to vector<8x128xf32>
    %69 = math.tanh %68 : vector<8x128xf32>
    %70 = vector.extract_strided_slice %51 {offsets = [0, 384], sizes = [8, 128], strides = [1, 1]} : vector<8x512xf32> to vector<8x128xf32>
    %cst_29 = arith.constant 5.000000e-01 : f32
    %71 = vector.broadcast %cst_29 : f32 to vector<8x128xf32>
    %72 = arith.mulf %71, %70 : vector<8x128xf32>
    %73 = math.tanh %72 : vector<8x128xf32>
    %cst_30 = arith.constant 5.000000e-01 : f32
    %74 = vector.broadcast %cst_30 : f32 to vector<8x128xf32>
    %75 = arith.mulf %74, %73 : vector<8x128xf32>
    %cst_31 = arith.constant 5.000000e-01 : f32
    %76 = vector.broadcast %cst_31 : f32 to vector<8x128xf32>
    %77 = arith.addf %75, %76 : vector<8x128xf32>
    %78 = arith.mulf %67, %39 : vector<8x128xf32>
    %79 = arith.mulf %59, %69 : vector<8x128xf32>
    %80 = arith.addf %78, %79 : vector<8x128xf32>
    %81 = math.tanh %80 : vector<8x128xf32>
    %82 = arith.mulf %77, %81 : vector<8x128xf32>
    %83 = arith.truncf %82 : vector<8x128xf32> to vector<8x128xbf16>
    %84 = arith.index_cast %c1_i32 : i32 to index
    %c0_32 = arith.constant 0 : index
    %c0_33 = arith.constant 0 : index
    %85 = vector.load %arg6[%84, %c0_32, %c0_33] : memref<8x8x128xbf16, #tpu.memory_space<vmem>>, vector<1x8x128xbf16>
    %86 = vector.shape_cast %85 : vector<1x8x128xbf16> to vector<8x128xbf16>
    %87 = vector.shape_cast %83 : vector<8x128xbf16> to vector<1x8x128xbf16>
    tpu.vector_store %arg6[%84, %c0_32, %c0_33], %87 {strides = array<i32>} : memref<8x8x128xbf16, #tpu.memory_space<vmem>>, vector<1x8x128xbf16>,
    %c2_i32 = arith.constant 2 : i32
    %88 = arith.index_cast %c2_i32 : i32 to index
    %c0_34 = arith.constant 0 : index
    %c0_35 = arith.constant 0 : index
    %89 = vector.load %arg2[%88, %c0_34, %c0_35] : memref<8x8x512xf32, #tpu.memory_space<vmem>>, vector<1x8x512xf32>
    %90 = vector.shape_cast %89 : vector<1x8x512xf32> to vector<8x512xf32>
    %cst_36 = arith.constant dense<0.000000e+00> : vector<8x512xf32>
    %91 = tpu.matmul %83, %3, %cst_36 {dimension_numbers = #tpu.dot_dimension_numbers<[1], [0], [0], [1], [0, 0, 1, 1], [], []>} : vector<8x128xbf16>, vector<128x512xbf16>, vector<8x512xf32> -> vector<8x512xf32>
    %92 = arith.addf %90, %91 : vector<8x512xf32>
    %93 = vector.extract_strided_slice %92 {offsets = [0, 0], sizes = [8, 128], strides = [1, 1]} : vector<8x512xf32> to vector<8x128xf32>
    %cst_37 = arith.constant 5.000000e-01 : f32
    %94 = vector.broadcast %cst_37 : f32 to vector<8x128xf32>
    %95 = arith.mulf %94, %93 : vector<8x128xf32>
    %96 = math.tanh %95 : vector<8x128xf32>
    %cst_38 = arith.constant 5.000000e-01 : f32
    %97 = vector.broadcast %cst_38 : f32 to vector<8x128xf32>
    %98 = arith.mulf %97, %96 : vector<8x128xf32>
    %cst_39 = arith.constant 5.000000e-01 : f32
    %99 = vector.broadcast %cst_39 : f32 to vector<8x128xf32>
    %100 = arith.addf %98, %99 : vector<8x128xf32>
    %101 = vector.extract_strided_slice %92 {offsets = [0, 128], sizes = [8, 128], strides = [1, 1]} : vector<8x512xf32> to vector<8x128xf32>
    %cst_40 = arith.constant 5.000000e-01 : f32
    %102 = vector.broadcast %cst_40 : f32 to vector<8x128xf32>
    %103 = arith.mulf %102, %101 : vector<8x128xf32>
    %104 = math.tanh %103 : vector<8x128xf32>
    %cst_41 = arith.constant 5.000000e-01 : f32
    %105 = vector.broadcast %cst_41 : f32 to vector<8x128xf32>
    %106 = arith.mulf %105, %104 : vector<8x128xf32>
    %cst_42 = arith.constant 5.000000e-01 : f32
    %107 = vector.broadcast %cst_42 : f32 to vector<8x128xf32>
    %108 = arith.addf %106, %107 : vector<8x128xf32>
    %109 = vector.extract_strided_slice %92 {offsets = [0, 256], sizes = [8, 128], strides = [1, 1]} : vector<8x512xf32> to vector<8x128xf32>
    %110 = math.tanh %109 : vector<8x128xf32>
    %111 = vector.extract_strided_slice %92 {offsets = [0, 384], sizes = [8, 128], strides = [1, 1]} : vector<8x512xf32> to vector<8x128xf32>
    %cst_43 = arith.constant 5.000000e-01 : f32
    %112 = vector.broadcast %cst_43 : f32 to vector<8x128xf32>
    %113 = arith.mulf %112, %111 : vector<8x128xf32>
    %114 = math.tanh %113 : vector<8x128xf32>
    %cst_44 = arith.constant 5.000000e-01 : f32
    %115 = vector.broadcast %cst_44 : f32 to vector<8x128xf32>
    %116 = arith.mulf %115, %114 : vector<8x128xf32>
    %cst_45 = arith.constant 5.000000e-01 : f32
    %117 = vector.broadcast %cst_45 : f32 to vector<8x128xf32>
    %118 = arith.addf %116, %117 : vector<8x128xf32>
    %119 = arith.mulf %108, %80 : vector<8x128xf32>
    %120 = arith.mulf %100, %110 : vector<8x128xf32>
    %121 = arith.addf %119, %120 : vector<8x128xf32>
    %122 = math.tanh %121 : vector<8x128xf32>
    %123 = arith.mulf %118, %122 : vector<8x128xf32>
    %124 = arith.truncf %123 : vector<8x128xf32> to vector<8x128xbf16>
    %125 = arith.index_cast %c2_i32 : i32 to index
    %c0_46 = arith.constant 0 : index
    %c0_47 = arith.constant 0 : index
    %126 = vector.load %arg6[%125, %c0_46, %c0_47] : memref<8x8x128xbf16, #tpu.memory_space<vmem>>, vector<1x8x128xbf16>
    %127 = vector.shape_cast %126 : vector<1x8x128xbf16> to vector<8x128xbf16>
    %128 = vector.shape_cast %124 : vector<8x128xbf16> to vector<1x8x128xbf16>
    tpu.vector_store %arg6[%125, %c0_46, %c0_47], %128 {strides = array<i32>} : memref<8x8x128xbf16, #tpu.memory_space<vmem>>, vector<1x8x128xbf16>,
    %c3_i32 = arith.constant 3 : i32
    %129 = arith.index_cast %c3_i32 : i32 to index
    %c0_48 = arith.constant 0 : index
    %c0_49 = arith.constant 0 : index
    %130 = vector.load %arg2[%129, %c0_48, %c0_49] : memref<8x8x512xf32, #tpu.memory_space<vmem>>, vector<1x8x512xf32>
    %131 = vector.shape_cast %130 : vector<1x8x512xf32> to vector<8x512xf32>
    %cst_50 = arith.constant dense<0.000000e+00> : vector<8x512xf32>
    %132 = tpu.matmul %124, %3, %cst_50 {dimension_numbers = #tpu.dot_dimension_numbers<[1], [0], [0], [1], [0, 0, 1, 1], [], []>} : vector<8x128xbf16>, vector<128x512xbf16>, vector<8x512xf32> -> vector<8x512xf32>
    %133 = arith.addf %131, %132 : vector<8x512xf32>
    %134 = vector.extract_strided_slice %133 {offsets = [0, 0], sizes = [8, 128], strides = [1, 1]} : vector<8x512xf32> to vector<8x128xf32>
    %cst_51 = arith.constant 5.000000e-01 : f32
    %135 = vector.broadcast %cst_51 : f32 to vector<8x128xf32>
    %136 = arith.mulf %135, %134 : vector<8x128xf32>
    %137 = math.tanh %136 : vector<8x128xf32>
    %cst_52 = arith.constant 5.000000e-01 : f32
    %138 = vector.broadcast %cst_52 : f32 to vector<8x128xf32>
    %139 = arith.mulf %138, %137 : vector<8x128xf32>
    %cst_53 = arith.constant 5.000000e-01 : f32
    %140 = vector.broadcast %cst_53 : f32 to vector<8x128xf32>
    %141 = arith.addf %139, %140 : vector<8x128xf32>
    %142 = vector.extract_strided_slice %133 {offsets = [0, 128], sizes = [8, 128], strides = [1, 1]} : vector<8x512xf32> to vector<8x128xf32>
    %cst_54 = arith.constant 5.000000e-01 : f32
    %143 = vector.broadcast %cst_54 : f32 to vector<8x128xf32>
    %144 = arith.mulf %143, %142 : vector<8x128xf32>
    %145 = math.tanh %144 : vector<8x128xf32>
    %cst_55 = arith.constant 5.000000e-01 : f32
    %146 = vector.broadcast %cst_55 : f32 to vector<8x128xf32>
    %147 = arith.mulf %146, %145 : vector<8x128xf32>
    %cst_56 = arith.constant 5.000000e-01 : f32
    %148 = vector.broadcast %cst_56 : f32 to vector<8x128xf32>
    %149 = arith.addf %147, %148 : vector<8x128xf32>
    %150 = vector.extract_strided_slice %133 {offsets = [0, 256], sizes = [8, 128], strides = [1, 1]} : vector<8x512xf32> to vector<8x128xf32>
    %151 = math.tanh %150 : vector<8x128xf32>
    %152 = vector.extract_strided_slice %133 {offsets = [0, 384], sizes = [8, 128], strides = [1, 1]} : vector<8x512xf32> to vector<8x128xf32>
    %cst_57 = arith.constant 5.000000e-01 : f32
    %153 = vector.broadcast %cst_57 : f32 to vector<8x128xf32>
    %154 = arith.mulf %153, %152 : vector<8x128xf32>
    %155 = math.tanh %154 : vector<8x128xf32>
    %cst_58 = arith.constant 5.000000e-01 : f32
    %156 = vector.broadcast %cst_58 : f32 to vector<8x128xf32>
    %157 = arith.mulf %156, %155 : vector<8x128xf32>
    %cst_59 = arith.constant 5.000000e-01 : f32
    %158 = vector.broadcast %cst_59 : f32 to vector<8x128xf32>
    %159 = arith.addf %157, %158 : vector<8x128xf32>
    %160 = arith.mulf %149, %121 : vector<8x128xf32>
    %161 = arith.mulf %141, %151 : vector<8x128xf32>
    %162 = arith.addf %160, %161 : vector<8x128xf32>
    %163 = math.tanh %162 : vector<8x128xf32>
    %164 = arith.mulf %159, %163 : vector<8x128xf32>
    %165 = arith.truncf %164 : vector<8x128xf32> to vector<8x128xbf16>
    %166 = arith.index_cast %c3_i32 : i32 to index
    %c0_60 = arith.constant 0 : index
    %c0_61 = arith.constant 0 : index
    %167 = vector.load %arg6[%166, %c0_60, %c0_61] : memref<8x8x128xbf16, #tpu.memory_space<vmem>>, vector<1x8x128xbf16>
    %168 = vector.shape_cast %167 : vector<1x8x128xbf16> to vector<8x128xbf16>
    %169 = vector.shape_cast %165 : vector<8x128xbf16> to vector<1x8x128xbf16>
    tpu.vector_store %arg6[%166, %c0_60, %c0_61], %169 {strides = array<i32>} : memref<8x8x128xbf16, #tpu.memory_space<vmem>>, vector<1x8x128xbf16>,
    %c4_i32 = arith.constant 4 : i32
    %170 = arith.index_cast %c4_i32 : i32 to index
    %c0_62 = arith.constant 0 : index
    %c0_63 = arith.constant 0 : index
    %171 = vector.load %arg2[%170, %c0_62, %c0_63] : memref<8x8x512xf32, #tpu.memory_space<vmem>>, vector<1x8x512xf32>
    %172 = vector.shape_cast %171 : vector<1x8x512xf32> to vector<8x512xf32>
    %cst_64 = arith.constant dense<0.000000e+00> : vector<8x512xf32>
    %173 = tpu.matmul %165, %3, %cst_64 {dimension_numbers = #tpu.dot_dimension_numbers<[1], [0], [0], [1], [0, 0, 1, 1], [], []>} : vector<8x128xbf16>, vector<128x512xbf16>, vector<8x512xf32> -> vector<8x512xf32>
    %174 = arith.addf %172, %173 : vector<8x512xf32>
    %175 = vector.extract_strided_slice %174 {offsets = [0, 0], sizes = [8, 128], strides = [1, 1]} : vector<8x512xf32> to vector<8x128xf32>
    %cst_65 = arith.constant 5.000000e-01 : f32
    %176 = vector.broadcast %cst_65 : f32 to vector<8x128xf32>
    %177 = arith.mulf %176, %175 : vector<8x128xf32>
    %178 = math.tanh %177 : vector<8x128xf32>
    %cst_66 = arith.constant 5.000000e-01 : f32
    %179 = vector.broadcast %cst_66 : f32 to vector<8x128xf32>
    %180 = arith.mulf %179, %178 : vector<8x128xf32>
    %cst_67 = arith.constant 5.000000e-01 : f32
    %181 = vector.broadcast %cst_67 : f32 to vector<8x128xf32>
    %182 = arith.addf %180, %181 : vector<8x128xf32>
    %183 = vector.extract_strided_slice %174 {offsets = [0, 128], sizes = [8, 128], strides = [1, 1]} : vector<8x512xf32> to vector<8x128xf32>
    %cst_68 = arith.constant 5.000000e-01 : f32
    %184 = vector.broadcast %cst_68 : f32 to vector<8x128xf32>
    %185 = arith.mulf %184, %183 : vector<8x128xf32>
    %186 = math.tanh %185 : vector<8x128xf32>
    %cst_69 = arith.constant 5.000000e-01 : f32
    %187 = vector.broadcast %cst_69 : f32 to vector<8x128xf32>
    %188 = arith.mulf %187, %186 : vector<8x128xf32>
    %cst_70 = arith.constant 5.000000e-01 : f32
    %189 = vector.broadcast %cst_70 : f32 to vector<8x128xf32>
    %190 = arith.addf %188, %189 : vector<8x128xf32>
    %191 = vector.extract_strided_slice %174 {offsets = [0, 256], sizes = [8, 128], strides = [1, 1]} : vector<8x512xf32> to vector<8x128xf32>
    %192 = math.tanh %191 : vector<8x128xf32>
    %193 = vector.extract_strided_slice %174 {offsets = [0, 384], sizes = [8, 128], strides = [1, 1]} : vector<8x512xf32> to vector<8x128xf32>
    %cst_71 = arith.constant 5.000000e-01 : f32
    %194 = vector.broadcast %cst_71 : f32 to vector<8x128xf32>
    %195 = arith.mulf %194, %193 : vector<8x128xf32>
    %196 = math.tanh %195 : vector<8x128xf32>
    %cst_72 = arith.constant 5.000000e-01 : f32
    %197 = vector.broadcast %cst_72 : f32 to vector<8x128xf32>
    %198 = arith.mulf %197, %196 : vector<8x128xf32>
    %cst_73 = arith.constant 5.000000e-01 : f32
    %199 = vector.broadcast %cst_73 : f32 to vector<8x128xf32>
    %200 = arith.addf %198, %199 : vector<8x128xf32>
    %201 = arith.mulf %190, %162 : vector<8x128xf32>
    %202 = arith.mulf %182, %192 : vector<8x128xf32>
    %203 = arith.addf %201, %202 : vector<8x128xf32>
    %204 = math.tanh %203 : vector<8x128xf32>
    %205 = arith.mulf %200, %204 : vector<8x128xf32>
    %206 = arith.truncf %205 : vector<8x128xf32> to vector<8x128xbf16>
    %207 = arith.index_cast %c4_i32 : i32 to index
    %c0_74 = arith.constant 0 : index
    %c0_75 = arith.constant 0 : index
    %208 = vector.load %arg6[%207, %c0_74, %c0_75] : memref<8x8x128xbf16, #tpu.memory_space<vmem>>, vector<1x8x128xbf16>
    %209 = vector.shape_cast %208 : vector<1x8x128xbf16> to vector<8x128xbf16>
    %210 = vector.shape_cast %206 : vector<8x128xbf16> to vector<1x8x128xbf16>
    tpu.vector_store %arg6[%207, %c0_74, %c0_75], %210 {strides = array<i32>} : memref<8x8x128xbf16, #tpu.memory_space<vmem>>, vector<1x8x128xbf16>,
    %c5_i32 = arith.constant 5 : i32
    %211 = arith.index_cast %c5_i32 : i32 to index
    %c0_76 = arith.constant 0 : index
    %c0_77 = arith.constant 0 : index
    %212 = vector.load %arg2[%211, %c0_76, %c0_77] : memref<8x8x512xf32, #tpu.memory_space<vmem>>, vector<1x8x512xf32>
    %213 = vector.shape_cast %212 : vector<1x8x512xf32> to vector<8x512xf32>
    %cst_78 = arith.constant dense<0.000000e+00> : vector<8x512xf32>
    %214 = tpu.matmul %206, %3, %cst_78 {dimension_numbers = #tpu.dot_dimension_numbers<[1], [0], [0], [1], [0, 0, 1, 1], [], []>} : vector<8x128xbf16>, vector<128x512xbf16>, vector<8x512xf32> -> vector<8x512xf32>
    %215 = arith.addf %213, %214 : vector<8x512xf32>
    %216 = vector.extract_strided_slice %215 {offsets = [0, 0], sizes = [8, 128], strides = [1, 1]} : vector<8x512xf32> to vector<8x128xf32>
    %cst_79 = arith.constant 5.000000e-01 : f32
    %217 = vector.broadcast %cst_79 : f32 to vector<8x128xf32>
    %218 = arith.mulf %217, %216 : vector<8x128xf32>
    %219 = math.tanh %218 : vector<8x128xf32>
    %cst_80 = arith.constant 5.000000e-01 : f32
    %220 = vector.broadcast %cst_80 : f32 to vector<8x128xf32>
    %221 = arith.mulf %220, %219 : vector<8x128xf32>
    %cst_81 = arith.constant 5.000000e-01 : f32
    %222 = vector.broadcast %cst_81 : f32 to vector<8x128xf32>
    %223 = arith.addf %221, %222 : vector<8x128xf32>
    %224 = vector.extract_strided_slice %215 {offsets = [0, 128], sizes = [8, 128], strides = [1, 1]} : vector<8x512xf32> to vector<8x128xf32>
    %cst_82 = arith.constant 5.000000e-01 : f32
    %225 = vector.broadcast %cst_82 : f32 to vector<8x128xf32>
    %226 = arith.mulf %225, %224 : vector<8x128xf32>
    %227 = math.tanh %226 : vector<8x128xf32>
    %cst_83 = arith.constant 5.000000e-01 : f32
    %228 = vector.broadcast %cst_83 : f32 to vector<8x128xf32>
    %229 = arith.mulf %228, %227 : vector<8x128xf32>
    %cst_84 = arith.constant 5.000000e-01 : f32
    %230 = vector.broadcast %cst_84 : f32 to vector<8x128xf32>
    %231 = arith.addf %229, %230 : vector<8x128xf32>
    %232 = vector.extract_strided_slice %215 {offsets = [0, 256], sizes = [8, 128], strides = [1, 1]} : vector<8x512xf32> to vector<8x128xf32>
    %233 = math.tanh %232 : vector<8x128xf32>
    %234 = vector.extract_strided_slice %215 {offsets = [0, 384], sizes = [8, 128], strides = [1, 1]} : vector<8x512xf32> to vector<8x128xf32>
    %cst_85 = arith.constant 5.000000e-01 : f32
    %235 = vector.broadcast %cst_85 : f32 to vector<8x128xf32>
    %236 = arith.mulf %235, %234 : vector<8x128xf32>
    %237 = math.tanh %236 : vector<8x128xf32>
    %cst_86 = arith.constant 5.000000e-01 : f32
    %238 = vector.broadcast %cst_86 : f32 to vector<8x128xf32>
    %239 = arith.mulf %238, %237 : vector<8x128xf32>
    %cst_87 = arith.constant 5.000000e-01 : f32
    %240 = vector.broadcast %cst_87 : f32 to vector<8x128xf32>
    %241 = arith.addf %239, %240 : vector<8x128xf32>
    %242 = arith.mulf %231, %203 : vector<8x128xf32>
    %243 = arith.mulf %223, %233 : vector<8x128xf32>
    %244 = arith.addf %242, %243 : vector<8x128xf32>
    %245 = math.tanh %244 : vector<8x128xf32>
    %246 = arith.mulf %241, %245 : vector<8x128xf32>
    %247 = arith.truncf %246 : vector<8x128xf32> to vector<8x128xbf16>
    %248 = arith.index_cast %c5_i32 : i32 to index
    %c0_88 = arith.constant 0 : index
    %c0_89 = arith.constant 0 : index
    %249 = vector.load %arg6[%248, %c0_88, %c0_89] : memref<8x8x128xbf16, #tpu.memory_space<vmem>>, vector<1x8x128xbf16>
    %250 = vector.shape_cast %249 : vector<1x8x128xbf16> to vector<8x128xbf16>
    %251 = vector.shape_cast %247 : vector<8x128xbf16> to vector<1x8x128xbf16>
    tpu.vector_store %arg6[%248, %c0_88, %c0_89], %251 {strides = array<i32>} : memref<8x8x128xbf16, #tpu.memory_space<vmem>>, vector<1x8x128xbf16>,
    %c6_i32 = arith.constant 6 : i32
    %252 = arith.index_cast %c6_i32 : i32 to index
    %c0_90 = arith.constant 0 : index
    %c0_91 = arith.constant 0 : index
    %253 = vector.load %arg2[%252, %c0_90, %c0_91] : memref<8x8x512xf32, #tpu.memory_space<vmem>>, vector<1x8x512xf32>
    %254 = vector.shape_cast %253 : vector<1x8x512xf32> to vector<8x512xf32>
    %cst_92 = arith.constant dense<0.000000e+00> : vector<8x512xf32>
    %255 = tpu.matmul %247, %3, %cst_92 {dimension_numbers = #tpu.dot_dimension_numbers<[1], [0], [0], [1], [0, 0, 1, 1], [], []>} : vector<8x128xbf16>, vector<128x512xbf16>, vector<8x512xf32> -> vector<8x512xf32>
    %256 = arith.addf %254, %255 : vector<8x512xf32>
    %257 = vector.extract_strided_slice %256 {offsets = [0, 0], sizes = [8, 128], strides = [1, 1]} : vector<8x512xf32> to vector<8x128xf32>
    %cst_93 = arith.constant 5.000000e-01 : f32
    %258 = vector.broadcast %cst_93 : f32 to vector<8x128xf32>
    %259 = arith.mulf %258, %257 : vector<8x128xf32>
    %260 = math.tanh %259 : vector<8x128xf32>
    %cst_94 = arith.constant 5.000000e-01 : f32
    %261 = vector.broadcast %cst_94 : f32 to vector<8x128xf32>
    %262 = arith.mulf %261, %260 : vector<8x128xf32>
    %cst_95 = arith.constant 5.000000e-01 : f32
    %263 = vector.broadcast %cst_95 : f32 to vector<8x128xf32>
    %264 = arith.addf %262, %263 : vector<8x128xf32>
    %265 = vector.extract_strided_slice %256 {offsets = [0, 128], sizes = [8, 128], strides = [1, 1]} : vector<8x512xf32> to vector<8x128xf32>
    %cst_96 = arith.constant 5.000000e-01 : f32
    %266 = vector.broadcast %cst_96 : f32 to vector<8x128xf32>
    %267 = arith.mulf %266, %265 : vector<8x128xf32>
    %268 = math.tanh %267 : vector<8x128xf32>
    %cst_97 = arith.constant 5.000000e-01 : f32
    %269 = vector.broadcast %cst_97 : f32 to vector<8x128xf32>
    %270 = arith.mulf %269, %268 : vector<8x128xf32>
    %cst_98 = arith.constant 5.000000e-01 : f32
    %271 = vector.broadcast %cst_98 : f32 to vector<8x128xf32>
    %272 = arith.addf %270, %271 : vector<8x128xf32>
    %273 = vector.extract_strided_slice %256 {offsets = [0, 256], sizes = [8, 128], strides = [1, 1]} : vector<8x512xf32> to vector<8x128xf32>
    %274 = math.tanh %273 : vector<8x128xf32>
    %275 = vector.extract_strided_slice %256 {offsets = [0, 384], sizes = [8, 128], strides = [1, 1]} : vector<8x512xf32> to vector<8x128xf32>
    %cst_99 = arith.constant 5.000000e-01 : f32
    %276 = vector.broadcast %cst_99 : f32 to vector<8x128xf32>
    %277 = arith.mulf %276, %275 : vector<8x128xf32>
    %278 = math.tanh %277 : vector<8x128xf32>
    %cst_100 = arith.constant 5.000000e-01 : f32
    %279 = vector.broadcast %cst_100 : f32 to vector<8x128xf32>
    %280 = arith.mulf %279, %278 : vector<8x128xf32>
    %cst_101 = arith.constant 5.000000e-01 : f32
    %281 = vector.broadcast %cst_101 : f32 to vector<8x128xf32>
    %282 = arith.addf %280, %281 : vector<8x128xf32>
    %283 = arith.mulf %272, %244 : vector<8x128xf32>
    %284 = arith.mulf %264, %274 : vector<8x128xf32>
    %285 = arith.addf %283, %284 : vector<8x128xf32>
    %286 = math.tanh %285 : vector<8x128xf32>
    %287 = arith.mulf %282, %286 : vector<8x128xf32>
    %288 = arith.truncf %287 : vector<8x128xf32> to vector<8x128xbf16>
    %289 = arith.index_cast %c6_i32 : i32 to index
    %c0_102 = arith.constant 0 : index
    %c0_103 = arith.constant 0 : index
    %290 = vector.load %arg6[%289, %c0_102, %c0_103] : memref<8x8x128xbf16, #tpu.memory_space<vmem>>, vector<1x8x128xbf16>
    %291 = vector.shape_cast %290 : vector<1x8x128xbf16> to vector<8x128xbf16>
    %292 = vector.shape_cast %288 : vector<8x128xbf16> to vector<1x8x128xbf16>
    tpu.vector_store %arg6[%289, %c0_102, %c0_103], %292 {strides = array<i32>} : memref<8x8x128xbf16, #tpu.memory_space<vmem>>, vector<1x8x128xbf16>,
    %c7_i32 = arith.constant 7 : i32
    %293 = arith.index_cast %c7_i32 : i32 to index
    %c0_104 = arith.constant 0 : index
    %c0_105 = arith.constant 0 : index
    %294 = vector.load %arg2[%293, %c0_104, %c0_105] : memref<8x8x512xf32, #tpu.memory_space<vmem>>, vector<1x8x512xf32>
    %295 = vector.shape_cast %294 : vector<1x8x512xf32> to vector<8x512xf32>
    %cst_106 = arith.constant dense<0.000000e+00> : vector<8x512xf32>
    %296 = tpu.matmul %288, %3, %cst_106 {dimension_numbers = #tpu.dot_dimension_numbers<[1], [0], [0], [1], [0, 0, 1, 1], [], []>} : vector<8x128xbf16>, vector<128x512xbf16>, vector<8x512xf32> -> vector<8x512xf32>
    %297 = arith.addf %295, %296 : vector<8x512xf32>
    %298 = vector.extract_strided_slice %297 {offsets = [0, 0], sizes = [8, 128], strides = [1, 1]} : vector<8x512xf32> to vector<8x128xf32>
    %cst_107 = arith.constant 5.000000e-01 : f32
    %299 = vector.broadcast %cst_107 : f32 to vector<8x128xf32>
    %300 = arith.mulf %299, %298 : vector<8x128xf32>
    %301 = math.tanh %300 : vector<8x128xf32>
    %cst_108 = arith.constant 5.000000e-01 : f32
    %302 = vector.broadcast %cst_108 : f32 to vector<8x128xf32>
    %303 = arith.mulf %302, %301 : vector<8x128xf32>
    %cst_109 = arith.constant 5.000000e-01 : f32
    %304 = vector.broadcast %cst_109 : f32 to vector<8x128xf32>
    %305 = arith.addf %303, %304 : vector<8x128xf32>
    %306 = vector.extract_strided_slice %297 {offsets = [0, 128], sizes = [8, 128], strides = [1, 1]} : vector<8x512xf32> to vector<8x128xf32>
    %cst_110 = arith.constant 5.000000e-01 : f32
    %307 = vector.broadcast %cst_110 : f32 to vector<8x128xf32>
    %308 = arith.mulf %307, %306 : vector<8x128xf32>
    %309 = math.tanh %308 : vector<8x128xf32>
    %cst_111 = arith.constant 5.000000e-01 : f32
    %310 = vector.broadcast %cst_111 : f32 to vector<8x128xf32>
    %311 = arith.mulf %310, %309 : vector<8x128xf32>
    %cst_112 = arith.constant 5.000000e-01 : f32
    %312 = vector.broadcast %cst_112 : f32 to vector<8x128xf32>
    %313 = arith.addf %311, %312 : vector<8x128xf32>
    %314 = vector.extract_strided_slice %297 {offsets = [0, 256], sizes = [8, 128], strides = [1, 1]} : vector<8x512xf32> to vector<8x128xf32>
    %315 = math.tanh %314 : vector<8x128xf32>
    %316 = vector.extract_strided_slice %297 {offsets = [0, 384], sizes = [8, 128], strides = [1, 1]} : vector<8x512xf32> to vector<8x128xf32>
    %cst_113 = arith.constant 5.000000e-01 : f32
    %317 = vector.broadcast %cst_113 : f32 to vector<8x128xf32>
    %318 = arith.mulf %317, %316 : vector<8x128xf32>
    %319 = math.tanh %318 : vector<8x128xf32>
    %cst_114 = arith.constant 5.000000e-01 : f32
    %320 = vector.broadcast %cst_114 : f32 to vector<8x128xf32>
    %321 = arith.mulf %320, %319 : vector<8x128xf32>
    %cst_115 = arith.constant 5.000000e-01 : f32
    %322 = vector.broadcast %cst_115 : f32 to vector<8x128xf32>
    %323 = arith.addf %321, %322 : vector<8x128xf32>
    %324 = arith.mulf %313, %285 : vector<8x128xf32>
    %325 = arith.mulf %305, %315 : vector<8x128xf32>
    %326 = arith.addf %324, %325 : vector<8x128xf32>
    %327 = math.tanh %326 : vector<8x128xf32>
    %328 = arith.mulf %323, %327 : vector<8x128xf32>
    %329 = arith.truncf %328 : vector<8x128xf32> to vector<8x128xbf16>
    %330 = arith.index_cast %c7_i32 : i32 to index
    %c0_116 = arith.constant 0 : index
    %c0_117 = arith.constant 0 : index
    %331 = vector.load %arg6[%330, %c0_116, %c0_117] : memref<8x8x128xbf16, #tpu.memory_space<vmem>>, vector<1x8x128xbf16>
    %332 = vector.shape_cast %331 : vector<1x8x128xbf16> to vector<8x128xbf16>
    %333 = vector.shape_cast %329 : vector<8x128xbf16> to vector<1x8x128xbf16>
    tpu.vector_store %arg6[%330, %c0_116, %c0_117], %333 {strides = array<i32>} : memref<8x8x128xbf16, #tpu.memory_space<vmem>>, vector<1x8x128xbf16>,
    %c8_i32 = arith.constant 8 : i32
    %c0_118 = arith.constant 0 : index
    %c0_119 = arith.constant 0 : index
    %334 = vector.load %arg9[%c0_118, %c0_119] : memref<8x128xbf16, #tpu.memory_space<vmem>>, vector<8x128xbf16>
    tpu.vector_store %arg9[%c0_118, %c0_119], %329 {strides = array<i32>} : memref<8x128xbf16, #tpu.memory_space<vmem>>, vector<8x128xbf16>,
    %c0_120 = arith.constant 0 : index
    %c0_121 = arith.constant 0 : index
    %335 = vector.load %arg10[%c0_120, %c0_121] : memref<8x128xf32, #tpu.memory_space<vmem>>, vector<8x128xf32>
    tpu.vector_store %arg10[%c0_120, %c0_121], %326 {strides = array<i32>} : memref<8x128xf32, #tpu.memory_space<vmem>>, vector<8x128xf32>,
    %c0_i32_122 = arith.constant 0 : i32
    %336 = arith.cmpi eq, %arg1, %c0_i32_122 : i32
    %337 = arith.extui %336 : i1 to i32
    %c0_i32_123 = arith.constant 0 : i32
    %338 = arith.cmpi ne, %337, %c0_i32_123 : i32
    scf.if %338 {
      %339 = arith.extf %329 : vector<8x128xbf16> to vector<8x128xf32>
      %c0_124 = arith.constant 0 : index
      %c0_125 = arith.constant 0 : index
      %340 = vector.load %arg7[%c0_124, %c0_125] : memref<8x128xf32, #tpu.memory_space<vmem>>, vector<8x128xf32>
      tpu.vector_store %arg7[%c0_124, %c0_125], %339 {strides = array<i32>} : memref<8x128xf32, #tpu.memory_space<vmem>>, vector<8x128xf32>,
      %c0_126 = arith.constant 0 : index
      %c0_127 = arith.constant 0 : index
      %341 = vector.load %arg8[%c0_126, %c0_127] : memref<8x128xf32, #tpu.memory_space<vmem>>, vector<8x128xf32>
      tpu.vector_store %arg8[%c0_126, %c0_127], %326 {strides = array<i32>} : memref<8x128xf32, #tpu.memory_space<vmem>>, vector<8x128xf32>,
    } else {
    }
    return
  }
  func.func @transform_0(%arg0: i32, %arg1: i32) -> (i32, i32, i32) {
    %c0_i32 = arith.constant 0 : i32
    %c0_i32_0 = arith.constant 0 : i32
    return %arg1, %arg0, %c0_i32 : i32, i32, i32
  }
  func.func @transform_1(%arg0: i32, %arg1: i32) -> (i32, i32) {
    %c0_i32 = arith.constant 0 : i32
    %c0_i32_0 = arith.constant 0 : i32
    %c0_i32_1 = arith.constant 0 : i32
    return %c0_i32, %c0_i32_0 : i32, i32
  }
  func.func @transform_2(%arg0: i32, %arg1: i32) -> (i32, i32) {
    %c0_i32 = arith.constant 0 : i32
    %c0_i32_0 = arith.constant 0 : i32
    return %arg0, %c0_i32 : i32, i32
  }
  func.func @transform_3(%arg0: i32, %arg1: i32) -> (i32, i32) {
    %c0_i32 = arith.constant 0 : i32
    %c0_i32_0 = arith.constant 0 : i32
    return %arg0, %c0_i32 : i32, i32
  }
  func.func @transform_4(%arg0: i32, %arg1: i32) -> (i32, i32, i32) {
    %c0_i32 = arith.constant 0 : i32
    %c0_i32_0 = arith.constant 0 : i32
    return %arg1, %arg0, %c0_i32 : i32, i32, i32
  }
  func.func @transform_5(%arg0: i32, %arg1: i32) -> (i32, i32) {
    %c0_i32 = arith.constant 0 : i32
    %c0_i32_0 = arith.constant 0 : i32
    return %arg0, %c0_i32 : i32, i32
  }
  func.func @transform_6(%arg0: i32, %arg1: i32) -> (i32, i32) {
    %c0_i32 = arith.constant 0 : i32
    %c0_i32_0 = arith.constant 0 : i32
    return %arg0, %c0_i32 : i32, i32
  }
}

module attributes {stable_mosaic.version = 11 : i64} {
  func.func @_matmul_bias_kernel(%arg0: i32, %arg1: i32, %arg2: i32, %arg3: memref<64x128xbf16, #tpu.memory_space<vmem>>, %arg4: memref<128x128xbf16, #tpu.memory_space<vmem>>, %arg5: memref<1x128xf32, #tpu.memory_space<vmem>>, %arg6: memref<64x128xf32, #tpu.memory_space<vmem>>) attributes {dimension_semantics = [#tpu.dimension_semantics<parallel>, #tpu.dimension_semantics<parallel>, #tpu.dimension_semantics<arbitrary>], iteration_bounds = array<i64: 1, 1, 1>, scalar_prefetch = 0 : i64, scratch_operands = 0 : i64, tpu.core_type = #tpu.core_type<tc>, window_params = [{transform_indices = @transform_0, window_bounds = array<i64: 64, 128>}, {transform_indices = @transform_1, window_bounds = array<i64: 128, 128>}, {transform_indices = @transform_2, window_bounds = array<i64: 1, 128>}, {transform_indices = @transform_3, window_bounds = array<i64: 64, 128>}]} {
    %c0_i32 = arith.constant 0 : i32
    %0 = arith.cmpi eq, %arg2, %c0_i32 : i32
    %1 = arith.extui %0 : i1 to i32
    %c0_i32_0 = arith.constant 0 : i32
    %2 = arith.cmpi ne, %1, %c0_i32_0 : i32
    scf.if %2 {
      %c0_8 = arith.constant 0 : index
      %c0_9 = arith.constant 0 : index
      %9 = vector.load %arg5[%c0_8, %c0_9] : memref<1x128xf32, #tpu.memory_space<vmem>>, vector<1x128xf32>
      %10 = vector.shape_cast %9 : vector<1x128xf32> to vector<1x128xf32>
      %11 = vector.broadcast %10 : vector<1x128xf32> to vector<64x128xf32>
      %c0_10 = arith.constant 0 : index
      %c0_11 = arith.constant 0 : index
      %12 = vector.load %arg6[%c0_10, %c0_11] : memref<64x128xf32, #tpu.memory_space<vmem>>, vector<64x128xf32>
      tpu.vector_store %arg6[%c0_10, %c0_11], %11 {strides = array<i32>} : memref<64x128xf32, #tpu.memory_space<vmem>>, vector<64x128xf32>,
    } else {
    }
    %c0 = arith.constant 0 : index
    %c0_1 = arith.constant 0 : index
    %3 = vector.load %arg6[%c0, %c0_1] : memref<64x128xf32, #tpu.memory_space<vmem>>, vector<64x128xf32>
    %c0_2 = arith.constant 0 : index
    %c0_3 = arith.constant 0 : index
    %4 = vector.load %arg3[%c0_2, %c0_3] : memref<64x128xbf16, #tpu.memory_space<vmem>>, vector<64x128xbf16>
    %c0_4 = arith.constant 0 : index
    %c0_5 = arith.constant 0 : index
    %5 = vector.load %arg4[%c0_4, %c0_5] : memref<128x128xbf16, #tpu.memory_space<vmem>>, vector<128x128xbf16>
    %cst = arith.constant dense<0.000000e+00> : vector<64x128xf32>
    %6 = tpu.matmul %4, %5, %cst {dimension_numbers = #tpu.dot_dimension_numbers<[1], [0], [0], [1], [0, 0, 1, 1], [], []>} : vector<64x128xbf16>, vector<128x128xbf16>, vector<64x128xf32> -> vector<64x128xf32>
    %7 = arith.addf %3, %6 : vector<64x128xf32>
    %c0_6 = arith.constant 0 : index
    %c0_7 = arith.constant 0 : index
    %8 = vector.load %arg6[%c0_6, %c0_7] : memref<64x128xf32, #tpu.memory_space<vmem>>, vector<64x128xf32>
    tpu.vector_store %arg6[%c0_6, %c0_7], %7 {strides = array<i32>} : memref<64x128xf32, #tpu.memory_space<vmem>>, vector<64x128xf32>,
    return
  }
  func.func @transform_0(%arg0: i32, %arg1: i32, %arg2: i32) -> (i32, i32) {
    %c0_i32 = arith.constant 0 : i32
    return %arg0, %arg2 : i32, i32
  }
  func.func @transform_1(%arg0: i32, %arg1: i32, %arg2: i32) -> (i32, i32) {
    %c0_i32 = arith.constant 0 : i32
    return %arg2, %arg1 : i32, i32
  }
  func.func @transform_2(%arg0: i32, %arg1: i32, %arg2: i32) -> (i32, i32) {
    %c0_i32 = arith.constant 0 : i32
    %c0_i32_0 = arith.constant 0 : i32
    return %c0_i32, %arg1 : i32, i32
  }
  func.func @transform_3(%arg0: i32, %arg1: i32, %arg2: i32) -> (i32, i32) {
    %c0_i32 = arith.constant 0 : i32
    return %arg0, %arg1 : i32, i32
  }
}

</mosaic_0001>

<llo_original>
// kernel: seq2seq_forward.5
$region0: #{seq2seq_forward.5}
  #allocation0 [shape = 'u32[]', space=smem, size = 0x4, offset = 0x4, fixed_abs, tag = 'smem constant byte address 0x4 - core index']
  #allocation1 [shape = 'u32[72,128]{1,0:T(1,128)}', space=vmem, size = 0x9000, scoped, tag = 'internal scratch']
  %s0 = inlined_call_operand.vmem [shape: bf16[64,128], index: 0, kind: input, shape index: {}]
  %s1 = inlined_call_operand.vmem [shape: bf16[128,512], index: 1, kind: input, shape index: {}]
  %s2 = inlined_call_operand.vmem [shape: f32[1,512], index: 2, kind: input, shape index: {}]
  %s3 = inlined_call_operand.vmem [shape: f32[64,512], index: 3, kind: output, shape index: {}]
  %s4 = sld [smem:[#allocation0]]
  $region26: #{seq2seq_forward.5} parent=0
    _
  %s6 = ssub.s32 1, %s4
  %s7 = scalar_select 0, %s6, %s4
  // Predicated region
  $region2: #{seq2seq_forward.5} parent=0 // pred_check
    _
  $region3: #{seq2seq_forward.5} parent=0 // pred_check_branch
    %9 = sbr.rel (0) target = $region5
  $region4: #{seq2seq_forward.5} parent=0 // pred_region
    _
  $region5: #{seq2seq_forward.5} parent=0 // pred_fallthru
    _
  // Predicated region
  $region6: #{seq2seq_forward.5} parent=0 // pred_check
    _
  $region7: #{seq2seq_forward.5} parent=0 // pred_check_branch
    %11 = sbr.rel (0) target = $region9
  $region8: #{seq2seq_forward.5} parent=0 // pred_region
    _
  $region9: #{seq2seq_forward.5} parent=0 // pred_fallthru
    _
  // Predicated region
  $region10: #{seq2seq_forward.5} parent=0 // pred_check
    _
  $region11: #{seq2seq_forward.5} parent=0 // pred_check_branch
    %13 = sbr.rel (0) target = $region13
  $region12: #{seq2seq_forward.5} parent=0 // pred_region
    _
  $region13: #{seq2seq_forward.5} parent=0 // pred_fallthru
    _
  %p14 = scmp.eq.s32.totalorder 0, 0
  // Predicated region
  $region14: #{seq2seq_forward.5} parent=0 // pred_check
    %p15 = pneg %p14
  $region15: #{seq2seq_forward.5} parent=0 // pred_check_branch
    %17 = sbr.rel (%p15) target = $region17
  $region16: #{seq2seq_forward.5} parent=0 // pred_region
    %v18 = vld [vmem:[%s2] sm:$0xf]
    %v20 = vperm.slane %v18, 0
    %v21 = vperm.slane %v18, 1
    %v22 = vperm.slane %v18, 2
    %v23 = vperm.slane %v18, 3
    %28 = vst [vmem:[%s3] sm:$0xff] %v20
    %29 = vst [vmem:[%s3 + $0x8] sm:$0xff] %v21
    %30 = vst [vmem:[%s3 + $0x10] sm:$0xff] %v22
    %31 = vst [vmem:[%s3 + $0x18] sm:$0xff] %v23
    %32 = vst [vmem:[%s3 + $0x20] sm:$0xff] %v20
    %33 = vst [vmem:[%s3 + $0x28] sm:$0xff] %v21
    %34 = vst [vmem:[%s3 + $0x30] sm:$0xff] %v22
    %35 = vst [vmem:[%s3 + $0x38] sm:$0xff] %v23
    %36 = vst [vmem:[%s3 + $0x40] sm:$0xff] %v20
    %37 = vst [vmem:[%s3 + $0x48] sm:$0xff] %v21
    %38 = vst [vmem:[%s3 + $0x50] sm:$0xff] %v22
    %39 = vst [vmem:[%s3 + $0x58] sm:$0xff] %v23
    %40 = vst [vmem:[%s3 + $0x60] sm:$0xff] %v20
    %41 = vst [vmem:[%s3 + $0x68] sm:$0xff] %v21
    %42 = vst [vmem:[%s3 + $0x70] sm:$0xff] %v22
    %43 = vst [vmem:[%s3 + $0x78] sm:$0xff] %v23
    %44 = vst [vmem:[%s3 + $0x80] sm:$0xff] %v20
    %45 = vst [vmem:[%s3 + $0x88] sm:$0xff] %v21
    %46 = vst [vmem:[%s3 + $0x90] sm:$0xff] %v22
    %47 = vst [vmem:[%s3 + $0x98] sm:$0xff] %v23
    %48 = vst [vmem:[%s3 + $0xa0] sm:$0xff] %v20
    %49 = vst [vmem:[%s3 + $0xa8] sm:$0xff] %v21
    %50 = vst [vmem:[%s3 + $0xb0] sm:$0xff] %v22
    %51 = vst [vmem:[%s3 + $0xb8] sm:$0xff] %v23
    %52 = vst [vmem:[%s3 + $0xc0] sm:$0xff] %v20
    %53 = vst [vmem:[%s3 + $0xc8] sm:$0xff] %v21
    %54 = vst [vmem:[%s3 + $0xd0] sm:$0xff] %v22
    %55 = vst [vmem:[%s3 + $0xd8] sm:$0xff] %v23
    %56 = vst [vmem:[%s3 + $0xe0] sm:$0xff] %v20
    %57 = vst [vmem:[%s3 + $0xe8] sm:$0xff] %v21
    %58 = vst [vmem:[%s3 + $0xf0] sm:$0xff] %v22
    %59 = vst [vmem:[%s3 + $0xf8] sm:$0xff] %v23
  $region17: #{seq2seq_forward.5} parent=0 // pred_fallthru
    _
  %v60 = vld [vmem:[%s3] sm:$0xff]
  %v61 = vld [vmem:[%s3 + $0x8] sm:$0xff]
  %v62 = vld [vmem:[%s3 + $0x10] sm:$0xff]
  %v63 = vld [vmem:[%s3 + $0x18] sm:$0xff]
  %v64 = vld [vmem:[%s3 + $0x20] sm:$0xff]
  %v65 = vld [vmem:[%s3 + $0x28] sm:$0xff]
  %v66 = vld [vmem:[%s3 + $0x30] sm:$0xff]
  %v67 = vld [vmem:[%s3 + $0x38] sm:$0xff]
  %v68 = vld [vmem:[%s3 + $0x40] sm:$0xff]
  %v69 = vld [vmem:[%s3 + $0x48] sm:$0xff]
  %v70 = vld [vmem:[%s3 + $0x50] sm:$0xff]
  %v71 = vld [vmem:[%s3 + $0x58] sm:$0xff]
  %v72 = vld [vmem:[%s3 + $0x60] sm:$0xff]
  %v73 = vld [vmem:[%s3 + $0x68] sm:$0xff]
  %v74 = vld [vmem:[%s3 + $0x70] sm:$0xff]
  %v75 = vld [vmem:[%s3 + $0x78] sm:$0xff]
  %v76 = vld [vmem:[%s3 + $0x80] sm:$0xff]
  %v77 = vld [vmem:[%s3 + $0x88] sm:$0xff]
  %v78 = vld [vmem:[%s3 + $0x90] sm:$0xff]
  %v79 = vld [vmem:[%s3 + $0x98] sm:$0xff]
  %v80 = vld [vmem:[%s3 + $0xa0] sm:$0xff]
  %v81 = vld [vmem:[%s3 + $0xa8] sm:$0xff]
  %v82 = vld [vmem:[%s3 + $0xb0] sm:$0xff]
  %v83 = vld [vmem:[%s3 + $0xb8] sm:$0xff]
  %v84 = vld [vmem:[%s3 + $0xc0] sm:$0xff]
  %v85 = vld [vmem:[%s3 + $0xc8] sm:$0xff]
  %v86 = vld [vmem:[%s3 + $0xd0] sm:$0xff]
  %v87 = vld [vmem:[%s3 + $0xd8] sm:$0xff]
  %v88 = vld [vmem:[%s3 + $0xe0] sm:$0xff]
  %v89 = vld [vmem:[%s3 + $0xe8] sm:$0xff]
  %v90 = vld [vmem:[%s3 + $0xf0] sm:$0xff]
  %v91 = vld [vmem:[%s3 + $0xf8] sm:$0xff]
  %v92 = vld [vmem:[%s0] sm:$0xf]
  %v93 = vld [vmem:[%s0 + $0x4] sm:$0xf]
  %v94 = vld [vmem:[%s0 + $0x8] sm:$0xf]
  %v95 = vld [vmem:[%s0 + $0xc] sm:$0xf]
  %v96 = vld [vmem:[%s0 + $0x10] sm:$0xf]
  %v97 = vld [vmem:[%s0 + $0x14] sm:$0xf]
  %v98 = vld [vmem:[%s0 + $0x18] sm:$0xf]
  %v99 = vld [vmem:[%s0 + $0x1c] sm:$0xf]
  %v100 = vld [vmem:[%s1] sm:$0xff]
  %v101 = vld [vmem:[%s1 + $0x8] sm:$0xff]
  %v102 = vld [vmem:[%s1 + $0x10] sm:$0xff]
  %v103 = vld [vmem:[%s1 + $0x18] sm:$0xff]
  %v104 = vld [vmem:[%s1 + $0x20] sm:$0xff]
  %v105 = vld [vmem:[%s1 + $0x28] sm:$0xff]
  %v106 = vld [vmem:[%s1 + $0x30] sm:$0xff]
  %v107 = vld [vmem:[%s1 + $0x38] sm:$0xff]
  %v108 = vld [vmem:[%s1 + $0x40] sm:$0xff]
  %v109 = vld [vmem:[%s1 + $0x48] sm:$0xff]
  %v110 = vld [vmem:[%s1 + $0x50] sm:$0xff]
  %v111 = vld [vmem:[%s1 + $0x58] sm:$0xff]
  %v112 = vld [vmem:[%s1 + $0x60] sm:$0xff]
  %v113 = vld [vmem:[%s1 + $0x68] sm:$0xff]
  %v114 = vld [vmem:[%s1 + $0x70] sm:$0xff]
  %v115 = vld [vmem:[%s1 + $0x78] sm:$0xff]
  %v116 = vld [vmem:[%s1 + $0x80] sm:$0xff]
  %v117 = vld [vmem:[%s1 + $0x88] sm:$0xff]
  %v118 = vld [vmem:[%s1 + $0x90] sm:$0xff]
  %v119 = vld [vmem:[%s1 + $0x98] sm:$0xff]
  %v120 = vld [vmem:[%s1 + $0xa0] sm:$0xff]
  %v121 = vld [vmem:[%s1 + $0xa8] sm:$0xff]
  %v122 = vld [vmem:[%s1 + $0xb0] sm:$0xff]
  %v123 = vld [vmem:[%s1 + $0xb8] sm:$0xff]
  %v124 = vld [vmem:[%s1 + $0xc0] sm:$0xff]
  %v125 = vld [vmem:[%s1 + $0xc8] sm:$0xff]
  %v126 = vld [vmem:[%s1 + $0xd0] sm:$0xff]
  %v127 = vld [vmem:[%s1 + $0xd8] sm:$0xff]
  %v128 = vld [vmem:[%s1 + $0xe0] sm:$0xff]
  %v129 = vld [vmem:[%s1 + $0xe8] sm:$0xff]
  %v130 = vld [vmem:[%s1 + $0xf0] sm:$0xff]
  %v131 = vld [vmem:[%s1 + $0xf8] sm:$0xff]
  %v140 = vunpack.c.l.b16 %v92
  %v141 = vunpack.c.l.b16 %v93
  %v142 = vunpack.c.l.b16 %v94
  %v143 = vunpack.c.l.b16 %v95
  %v144 = vunpack.c.l.b16 %v96
  %v145 = vunpack.c.l.b16 %v97
  %v146 = vunpack.c.l.b16 %v98
  %v147 = vunpack.c.l.b16 %v99
  %v148 = vpack.c.b16 %v141, %v140
  %v149 = vpack.c.b16 %v143, %v142
  %v150 = vpack.c.b16 %v145, %v144
  %v151 = vpack.c.b16 %v147, %v146
  %v188 = vunpack.c.l.b16 %v100
  %v189 = vunpack.c.h.b16 %v100
  %v190 = vunpack.c.l.b16 %v101
  %v191 = vunpack.c.h.b16 %v101
  %v192 = vunpack.c.l.b16 %v102
  %v193 = vunpack.c.h.b16 %v102
  %v194 = vunpack.c.l.b16 %v103
  %v195 = vunpack.c.h.b16 %v103
  %v196 = vunpack.c.l.b16 %v104
  %v197 = vunpack.c.h.b16 %v104
  %v198 = vunpack.c.l.b16 %v105
  %v199 = vunpack.c.h.b16 %v105
  %v200 = vunpack.c.l.b16 %v106
  %v201 = vunpack.c.h.b16 %v106
  %v202 = vunpack.c.l.b16 %v107
  %v203 = vunpack.c.h.b16 %v107
  %v204 = vunpack.c.l.b16 %v108
  %v205 = vunpack.c.h.b16 %v108
  %v206 = vunpack.c.l.b16 %v109
  %v207 = vunpack.c.h.b16 %v109
  %v208 = vunpack.c.l.b16 %v110
  %v209 = vunpack.c.h.b16 %v110
  %v210 = vunpack.c.l.b16 %v111
  %v211 = vunpack.c.h.b16 %v111
  %v212 = vunpack.c.l.b16 %v112
  %v213 = vunpack.c.h.b16 %v112
  %v214 = vunpack.c.l.b16 %v113
  %v215 = vunpack.c.h.b16 %v113
  %v216 = vunpack.c.l.b16 %v114
  %v217 = vunpack.c.h.b16 %v114
  %v218 = vunpack.c.l.b16 %v115
  %v219 = vunpack.c.h.b16 %v115
  %v220 = vunpack.c.l.b16 %v116
  %v221 = vunpack.c.h.b16 %v116
  %v222 = vunpack.c.l.b16 %v117
  %v223 = vunpack.c.h.b16 %v117
  %v224 = vunpack.c.l.b16 %v118
  %v225 = vunpack.c.h.b16 %v118
  %v226 = vunpack.c.l.b16 %v119
  %v227 = vunpack.c.h.b16 %v119
  %v228 = vunpack.c.l.b16 %v120
  %v229 = vunpack.c.h.b16 %v120
  %v230 = vunpack.c.l.b16 %v121
  %v231 = vunpack.c.h.b16 %v121
  %v232 = vunpack.c.l.b16 %v122
  %v233 = vunpack.c.h.b16 %v122
  %v234 = vunpack.c.l.b16 %v123
  %v235 = vunpack.c.h.b16 %v123
  %v236 = vunpack.c.l.b16 %v124
  %v237 = vunpack.c.h.b16 %v124
  %v238 = vunpack.c.l.b16 %v125
  %v239 = vunpack.c.h.b16 %v125
  %v240 = vunpack.c.l.b16 %v126
  %v241 = vunpack.c.h.b16 %v126
  %v242 = vunpack.c.l.b16 %v127
  %v243 = vunpack.c.h.b16 %v127
  %v244 = vunpack.c.l.b16 %v128
  %v245 = vunpack.c.h.b16 %v128
  %v246 = vunpack.c.l.b16 %v129
  %v247 = vunpack.c.h.b16 %v129
  %v248 = vunpack.c.l.b16 %v130
  %v249 = vunpack.c.h.b16 %v130
  %v250 = vunpack.c.l.b16 %v131
  %v251 = vunpack.c.h.b16 %v131
  %v252 = vpack.c.b16 %v192, %v188
  %v253 = vpack.c.b16 %v193, %v189
  %v254 = vpack.c.b16 %v194, %v190
  %v255 = vpack.c.b16 %v195, %v191
  %v256 = vpack.c.b16 %v200, %v196
  %v257 = vpack.c.b16 %v201, %v197
  %v258 = vpack.c.b16 %v202, %v198
  %v259 = vpack.c.b16 %v203, %v199
  %v260 = vpack.c.b16 %v208, %v204
  %v261 = vpack.c.b16 %v209, %v205
  %v262 = vpack.c.b16 %v210, %v206
  %v263 = vpack.c.b16 %v211, %v207
  %v264 = vpack.c.b16 %v216, %v212
  %v265 = vpack.c.b16 %v217, %v213
  %v266 = vpack.c.b16 %v218, %v214
  %v267 = vpack.c.b16 %v219, %v215
  %v268 = vpack.c.b16 %v224, %v220
  %v269 = vpack.c.b16 %v225, %v221
  %v270 = vpack.c.b16 %v226, %v222
  %v271 = vpack.c.b16 %v227, %v223
  %v272 = vpack.c.b16 %v232, %v228
  %v273 = vpack.c.b16 %v233, %v229
  %v274 = vpack.c.b16 %v234, %v230
  %v275 = vpack.c.b16 %v235, %v231
  %v276 = vpack.c.b16 %v240, %v236
  %v277 = vpack.c.b16 %v241, %v237
  %v278 = vpack.c.b16 %v242, %v238
  %v279 = vpack.c.b16 %v243, %v239
  %v280 = vpack.c.b16 %v248, %v244
  %v281 = vpack.c.b16 %v249, %v245
  %v282 = vpack.c.b16 %v250, %v246
  %v283 = vpack.c.b16 %v251, %v247
  %316 = vmatpush.bf16.msra.mxu0 %v280
  %317 = vmatpush.bf16.msra.mxu0 %v276
  %318 = vmatpush.bf16.msra.mxu0 %v272
  %319 = vmatpush.bf16.msra.mxu0 %v268
  %320 = vmatpush.bf16.msra.mxu0 %v264
  %321 = vmatpush.bf16.msra.mxu0 %v260
  %322 = vmatpush.bf16.msra.mxu0 %v256
  %323 = vmatpush.bf16.msra.mxu0 %v252
  %324 = vmatmul.bf16.gmra.mxu0 %v148
  %v325 = vpop.f32.mrf.mxu0
  %v326 = vadd.f32 0.0, %v325
  %v327 = vpop.f32.mrf.mxu0
  %v328 = vadd.f32 0.0, %v327
  %329 = vmatmul.bf16.gmra.mxu0 %v149
  %v330 = vpop.f32.mrf.mxu0
  %v331 = vadd.f32 0.0, %v330
  %v332 = vpop.f32.mrf.mxu0
  %v333 = vadd.f32 0.0, %v332
  %334 = vmatmul.bf16.gmra.mxu0 %v150
  %v335 = vpop.f32.mrf.mxu0
  %v336 = vadd.f32 0.0, %v335
  %v337 = vpop.f32.mrf.mxu0
  %v338 = vadd.f32 0.0, %v337
  %339 = vmatmul.bf16.gmra.mxu0 %v151
  %v340 = vpop.f32.mrf.mxu0
  %v341 = vadd.f32 0.0, %v340
  %v342 = vpop.f32.mrf.mxu0
  %v343 = vadd.f32 0.0, %v342
  %344 = vdwg.mxu0
  %345 = vmatpush.bf16.msra.mxu0 %v281
  %346 = vmatpush.bf16.msra.mxu0 %v277
  %347 = vmatpush.bf16.msra.mxu0 %v273
  %348 = vmatpush.bf16.msra.mxu0 %v269
  %349 = vmatpush.bf16.msra.mxu0 %v265
  %350 = vmatpush.bf16.msra.mxu0 %v261
  %351 = vmatpush.bf16.msra.mxu0 %v257
  %352 = vmatpush.bf16.msra.mxu0 %v253
  %353 = vmatmul.bf16.gmra.mxu0 %v148
  %v354 = vpop.f32.mrf.mxu0
  %v355 = vadd.f32 0.0, %v354
  %v356 = vpop.f32.mrf.mxu0
  %v357 = vadd.f32 0.0, %v356
  %358 = vmatmul.bf16.gmra.mxu0 %v149
  %v359 = vpop.f32.mrf.mxu0
  %v360 = vadd.f32 0.0, %v359
  %v361 = vpop.f32.mrf.mxu0
  %v362 = vadd.f32 0.0, %v361
  %363 = vmatmul.bf16.gmra.mxu0 %v150
  %v364 = vpop.f32.mrf.mxu0
  %v365 = vadd.f32 0.0, %v364
  %v366 = vpop.f32.mrf.mxu0
  %v367 = vadd.f32 0.0, %v366
  %368 = vmatmul.bf16.gmra.mxu0 %v151
  %v369 = vpop.f32.mrf.mxu0
  %v370 = vadd.f32 0.0, %v369
  %v371 = vpop.f32.mrf.mxu0
  %v372 = vadd.f32 0.0, %v371
  %373 = vdwg.mxu0
  %374 = vmatpush.bf16.msra.mxu0 %v282
  %375 = vmatpush.bf16.msra.mxu0 %v278
  %376 = vmatpush.bf16.msra.mxu0 %v274
  %377 = vmatpush.bf16.msra.mxu0 %v270
  %378 = vmatpush.bf16.msra.mxu0 %v266
  %379 = vmatpush.bf16.msra.mxu0 %v262
  %380 = vmatpush.bf16.msra.mxu0 %v258
  %381 = vmatpush.bf16.msra.mxu0 %v254
  %382 = vmatmul.bf16.gmra.mxu0 %v148
  %v383 = vpop.f32.mrf.mxu0
  %v384 = vadd.f32 0.0, %v383
  %v385 = vpop.f32.mrf.mxu0
  %v386 = vadd.f32 0.0, %v385
  %387 = vmatmul.bf16.gmra.mxu0 %v149
  %v388 = vpop.f32.mrf.mxu0
  %v389 = vadd.f32 0.0, %v388
  %v390 = vpop.f32.mrf.mxu0
  %v391 = vadd.f32 0.0, %v390
  %392 = vmatmul.bf16.gmra.mxu0 %v150
  %v393 = vpop.f32.mrf.mxu0
  %v394 = vadd.f32 0.0, %v393
  %v395 = vpop.f32.mrf.mxu0
  %v396 = vadd.f32 0.0, %v395
  %397 = vmatmul.bf16.gmra.mxu0 %v151
  %v398 = vpop.f32.mrf.mxu0
  %v399 = vadd.f32 0.0, %v398
  %v400 = vpop.f32.mrf.mxu0
  %v401 = vadd.f32 0.0, %v400
  %402 = vdwg.mxu0
  %403 = vmatpush.bf16.msra.mxu0 %v283
  %404 = vmatpush.bf16.msra.mxu0 %v279
  %405 = vmatpush.bf16.msra.mxu0 %v275
  %406 = vmatpush.bf16.msra.mxu0 %v271
  %407 = vmatpush.bf16.msra.mxu0 %v267
  %408 = vmatpush.bf16.msra.mxu0 %v263
  %409 = vmatpush.bf16.msra.mxu0 %v259
  %410 = vmatpush.bf16.msra.mxu0 %v255
  %411 = vmatmul.bf16.gmra.mxu0 %v148
  %v412 = vpop.f32.mrf.mxu0
  %v413 = vadd.f32 0.0, %v412
  %v414 = vpop.f32.mrf.mxu0
  %v415 = vadd.f32 0.0, %v414
  %416 = vmatmul.bf16.gmra.mxu0 %v149
  %v417 = vpop.f32.mrf.mxu0
  %v418 = vadd.f32 0.0, %v417
  %v419 = vpop.f32.mrf.mxu0
  %v420 = vadd.f32 0.0, %v419
  %421 = vmatmul.bf16.gmra.mxu0 %v150
  %v422 = vpop.f32.mrf.mxu0
  %v423 = vadd.f32 0.0, %v422
  %v424 = vpop.f32.mrf.mxu0
  %v425 = vadd.f32 0.0, %v424
  %426 = vmatmul.bf16.gmra.mxu0 %v151
  %v427 = vpop.f32.mrf.mxu0
  %v428 = vadd.f32 0.0, %v427
  %v429 = vpop.f32.mrf.mxu0
  %v430 = vadd.f32 0.0, %v429
  %431 = vdwg.mxu0
  %v432 = vadd.f32 %v60, %v326
  %v433 = vadd.f32 %v61, %v355
  %v434 = vadd.f32 %v62, %v384
  %v435 = vadd.f32 %v63, %v413
  %v436 = vadd.f32 %v64, %v328
  %v437 = vadd.f32 %v65, %v357
  %v438 = vadd.f32 %v66, %v386
  %v439 = vadd.f32 %v67, %v415
  %v440 = vadd.f32 %v68, %v331
  %v441 = vadd.f32 %v69, %v360
  %v442 = vadd.f32 %v70, %v389
  %v443 = vadd.f32 %v71, %v418
  %v444 = vadd.f32 %v72, %v333
  %v445 = vadd.f32 %v73, %v362
  %v446 = vadd.f32 %v74, %v391
  %v447 = vadd.f32 %v75, %v420
  %v448 = vadd.f32 %v76, %v336
  %v449 = vadd.f32 %v77, %v365
  %v450 = vadd.f32 %v78, %v394
  %v451 = vadd.f32 %v79, %v423
  %v452 = vadd.f32 %v80, %v338
  %v453 = vadd.f32 %v81, %v367
  %v454 = vadd.f32 %v82, %v396
  %v455 = vadd.f32 %v83, %v425
  %v456 = vadd.f32 %v84, %v341
  %v457 = vadd.f32 %v85, %v370
  %v458 = vadd.f32 %v86, %v399
  %v459 = vadd.f32 %v87, %v428
  %v460 = vadd.f32 %v88, %v343
  %v461 = vadd.f32 %v89, %v372
  %v462 = vadd.f32 %v90, %v401
  %v463 = vadd.f32 %v91, %v430
  %464 = vst [vmem:[%s3] sm:$0xff] %v432
  %465 = vst [vmem:[%s3 + $0x8] sm:$0xff] %v433
  %466 = vst [vmem:[%s3 + $0x10] sm:$0xff] %v434
  %467 = vst [vmem:[%s3 + $0x18] sm:$0xff] %v435
  %468 = vst [vmem:[%s3 + $0x20] sm:$0xff] %v436
  %469 = vst [vmem:[%s3 + $0x28] sm:$0xff] %v437
  %470 = vst [vmem:[%s3 + $0x30] sm:$0xff] %v438
  %471 = vst [vmem:[%s3 + $0x38] sm:$0xff] %v439
  %472 = vst [vmem:[%s3 + $0x40] sm:$0xff] %v440
  %473 = vst [vmem:[%s3 + $0x48] sm:$0xff] %v441
  %474 = vst [vmem:[%s3 + $0x50] sm:$0xff] %v442
  %475 = vst [vmem:[%s3 + $0x58] sm:$0xff] %v443
  %476 = vst [vmem:[%s3 + $0x60] sm:$0xff] %v444
  %477 = vst [vmem:[%s3 + $0x68] sm:$0xff] %v445
  %478 = vst [vmem:[%s3 + $0x70] sm:$0xff] %v446
  %479 = vst [vmem:[%s3 + $0x78] sm:$0xff] %v447
  %480 = vst [vmem:[%s3 + $0x80] sm:$0xff] %v448
  %481 = vst [vmem:[%s3 + $0x88] sm:$0xff] %v449
  %482 = vst [vmem:[%s3 + $0x90] sm:$0xff] %v450
  %483 = vst [vmem:[%s3 + $0x98] sm:$0xff] %v451
  %484 = vst [vmem:[%s3 + $0xa0] sm:$0xff] %v452
  %485 = vst [vmem:[%s3 + $0xa8] sm:$0xff] %v453
  %486 = vst [vmem:[%s3 + $0xb0] sm:$0xff] %v454
  %487 = vst [vmem:[%s3 + $0xb8] sm:$0xff] %v455
  %488 = vst [vmem:[%s3 + $0xc0] sm:$0xff] %v456
  %489 = vst [vmem:[%s3 + $0xc8] sm:$0xff] %v457
  %490 = vst [vmem:[%s3 + $0xd0] sm:$0xff] %v458
  %491 = vst [vmem:[%s3 + $0xd8] sm:$0xff] %v459
  %492 = vst [vmem:[%s3 + $0xe0] sm:$0xff] %v460
  %493 = vst [vmem:[%s3 + $0xe8] sm:$0xff] %v461
  %494 = vst [vmem:[%s3 + $0xf0] sm:$0xff] %v462
  %495 = vst [vmem:[%s3 + $0xf8] sm:$0xff] %v463
  // Predicated region
  $region18: #{seq2seq_forward.5} parent=0 // pred_check
    _
  $region19: #{seq2seq_forward.5} parent=0 // pred_check_branch
    %497 = sbr.rel (0) target = $region21
  $region20: #{seq2seq_forward.5} parent=0 // pred_region
    _
  $region21: #{seq2seq_forward.5} parent=0 // pred_fallthru
    _
  // Predicated region
  $region22: #{seq2seq_forward.5} parent=0 // pred_check
    _
  $region23: #{seq2seq_forward.5} parent=0 // pred_check_branch
    %499 = sbr.rel (0) target = $region25
  $region24: #{seq2seq_forward.5} parent=0 // pred_region
    _
  $region25: #{seq2seq_forward.5} parent=0 // pred_fallthru
    _

// kernel: seq2seq_forward.9
$region0: #{seq2seq_forward.9}
  #allocation0 [shape = 'u32[]', space=smem, size = 0x4, offset = 0x4, fixed_abs, tag = 'smem constant byte address 0x4 - core index']
  #allocation1 [shape = 'u32[72,128]{1,0:T(1,128)}', space=vmem, size = 0x9000, scoped, tag = 'internal scratch']
  %s0 = inlined_call_operand.vmem [shape: bf16[64,128], index: 0, kind: input, shape index: {}]
  %s1 = inlined_call_operand.vmem [shape: bf16[128,128], index: 1, kind: input, shape index: {}]
  %s2 = inlined_call_operand.vmem [shape: f32[1,128], index: 2, kind: input, shape index: {}]
  %s3 = inlined_call_operand.hbm [shape: f32[64,128], index: 3, kind: output, shape index: {}]
  %s4 = sld [smem:[#allocation0]]
  $region26: #{seq2seq_forward.9} parent=0
    _
  %s6 = ssub.s32 1, %s4
  %s7 = scalar_select 0, %s6, %s4
  $region1: #{seq2seq_forward.9} parent=0
    #allocation2 [shape = 'u8[32768]{0}', space=vmem, size = 0x8000, scoped, tag = 'output window, operand 0, single buffered']
    #allocation3 [shape = 's32[1]{0}', space=sflag, size = 0x4, scoped, tag = 'scoped memory for seq2seq_forward.9']
    %8 = vsyncpa [#allocation3], 0
    // Predicated region
    $region2: #{seq2seq_forward.9} parent=1 // pred_check
      _
    $region3: #{seq2seq_forward.9} parent=1 // pred_check_branch
      %10 = sbr.rel (0) target = $region5
    $region4: #{seq2seq_forward.9} parent=1 // pred_region
      _
    $region5: #{seq2seq_forward.9} parent=1 // pred_fallthru
      _
    // Predicated region
    $region6: #{seq2seq_forward.9} parent=1 // pred_check
      _
    $region7: #{seq2seq_forward.9} parent=1 // pred_check_branch
      %12 = sbr.rel (0) target = $region9
    $region8: #{seq2seq_forward.9} parent=1 // pred_region
      _
    $region9: #{seq2seq_forward.9} parent=1 // pred_fallthru
      _
    // Predicated region
    $region10: #{seq2seq_forward.9} parent=1 // pred_check
      _
    $region11: #{seq2seq_forward.9} parent=1 // pred_check_branch
      %14 = sbr.rel (0) target = $region13
    $region12: #{seq2seq_forward.9} parent=1 // pred_region
      _
    $region13: #{seq2seq_forward.9} parent=1 // pred_fallthru
      _
    %p15 = scmp.eq.s32.totalorder 0, 0
    // Predicated region
    $region14: #{seq2seq_forward.9} parent=1 // pred_check
      %p16 = pneg %p15
    $region15: #{seq2seq_forward.9} parent=1 // pred_check_branch
      %18 = sbr.rel (%p16) target = $region17
    $region16: #{seq2seq_forward.9} parent=1 // pred_region
      %v19 = vld [vmem:[%s2] sm:$0x1]
      %v21 = vperm.slane %v19, 0
      %23 = vst [vmem:[#allocation2] sm:$0xff] %v21
      %24 = vst [vmem:[#allocation2 + $0x8] sm:$0xff] %v21
      %25 = vst [vmem:[#allocation2 + $0x10] sm:$0xff] %v21
      %26 = vst [vmem:[#allocation2 + $0x18] sm:$0xff] %v21
      %27 = vst [vmem:[#allocation2 + $0x20] sm:$0xff] %v21
      %28 = vst [vmem:[#allocation2 + $0x28] sm:$0xff] %v21
      %29 = vst [vmem:[#allocation2 + $0x30] sm:$0xff] %v21
      %30 = vst [vmem:[#allocation2 + $0x38] sm:$0xff] %v21
    $region17: #{seq2seq_forward.9} parent=1 // pred_fallthru
      _
    %v31 = vld [vmem:[#allocation2] sm:$0xff]
    %v32 = vld [vmem:[#allocation2 + $0x8] sm:$0xff]
    %v33 = vld [vmem:[#allocation2 + $0x10] sm:$0xff]
    %v34 = vld [vmem:[#allocation2 + $0x18] sm:$0xff]
    %v35 = vld [vmem:[#allocation2 + $0x20] sm:$0xff]
    %v36 = vld [vmem:[#allocation2 + $0x28] sm:$0xff]
    %v37 = vld [vmem:[#allocation2 + $0x30] sm:$0xff]
    %v38 = vld [vmem:[#allocation2 + $0x38] sm:$0xff]
    %v39 = vld [vmem:[%s0] sm:$0xf]
    %v40 = vld [vmem:[%s0 + $0x4] sm:$0xf]
    %v41 = vld [vmem:[%s0 + $0x8] sm:$0xf]
    %v42 = vld [vmem:[%s0 + $0xc] sm:$0xf]
    %v43 = vld [vmem:[%s0 + $0x10] sm:$0xf]
    %v44 = vld [vmem:[%s0 + $0x14] sm:$0xf]
    %v45 = vld [vmem:[%s0 + $0x18] sm:$0xf]
    %v46 = vld [vmem:[%s0 + $0x1c] sm:$0xf]
    %v47 = vld [vmem:[%s1] sm:$0xf]
    %v48 = vld [vmem:[%s1 + $0x4] sm:$0xf]
    %v49 = vld [vmem:[%s1 + $0x8] sm:$0xf]
    %v50 = vld [vmem:[%s1 + $0xc] sm:$0xf]
    %v51 = vld [vmem:[%s1 + $0x10] sm:$0xf]
    %v52 = vld [vmem:[%s1 + $0x14] sm:$0xf]
    %v53 = vld [vmem:[%s1 + $0x18] sm:$0xf]
    %v54 = vld [vmem:[%s1 + $0x1c] sm:$0xf]
    %v55 = vld [vmem:[%s1 + $0x20] sm:$0xf]
    %v56 = vld [vmem:[%s1 + $0x24] sm:$0xf]
    %v57 = vld [vmem:[%s1 + $0x28] sm:$0xf]
    %v58 = vld [vmem:[%s1 + $0x2c] sm:$0xf]
    %v59 = vld [vmem:[%s1 + $0x30] sm:$0xf]
    %v60 = vld [vmem:[%s1 + $0x34] sm:$0xf]
    %v61 = vld [vmem:[%s1 + $0x38] sm:$0xf]
    %v62 = vld [vmem:[%s1 + $0x3c] sm:$0xf]
    %v71 = vunpack.c.l.b16 %v39
    %v72 = vunpack.c.l.b16 %v40
    %v73 = vunpack.c.l.b16 %v41
    %v74 = vunpack.c.l.b16 %v42
    %v75 = vunpack.c.l.b16 %v43
    %v76 = vunpack.c.l.b16 %v44
    %v77 = vunpack.c.l.b16 %v45
    %v78 = vunpack.c.l.b16 %v46
    %v79 = vpack.c.b16 %v72, %v71
    %v80 = vpack.c.b16 %v74, %v73
    %v81 = vpack.c.b16 %v76, %v75
    %v82 = vpack.c.b16 %v78, %v77
    %v103 = vunpack.c.l.b16 %v47
    %v104 = vunpack.c.l.b16 %v48
    %v105 = vunpack.c.l.b16 %v49
    %v106 = vunpack.c.l.b16 %v50
    %v107 = vunpack.c.l.b16 %v51
    %v108 = vunpack.c.l.b16 %v52
    %v109 = vunpack.c.l.b16 %v53
    %v110 = vunpack.c.l.b16 %v54
    %v111 = vunpack.c.l.b16 %v55
    %v112 = vunpack.c.l.b16 %v56
    %v113 = vunpack.c.l.b16 %v57
    %v114 = vunpack.c.l.b16 %v58
    %v115 = vunpack.c.l.b16 %v59
    %v116 = vunpack.c.l.b16 %v60
    %v117 = vunpack.c.l.b16 %v61
    %v118 = vunpack.c.l.b16 %v62
    %v119 = vpack.c.b16 %v104, %v103
    %v120 = vpack.c.b16 %v106, %v105
    %v121 = vpack.c.b16 %v108, %v107
    %v122 = vpack.c.b16 %v110, %v109
    %v123 = vpack.c.b16 %v112, %v111
    %v124 = vpack.c.b16 %v114, %v113
    %v125 = vpack.c.b16 %v116, %v115
    %v126 = vpack.c.b16 %v118, %v117
    %135 = vmatpush.bf16.msra.mxu0 %v126
    %136 = vmatpush.bf16.msra.mxu0 %v125
    %137 = vmatpush.bf16.msra.mxu0 %v124
    %138 = vmatpush.bf16.msra.mxu0 %v123
    %139 = vmatpush.bf16.msra.mxu0 %v122
    %140 = vmatpush.bf16.msra.mxu0 %v121
    %141 = vmatpush.bf16.msra.mxu0 %v120
    %142 = vmatpush.bf16.msra.mxu0 %v119
    %143 = vmatmul.bf16.gmra.mxu0 %v79
    %v144 = vpop.f32.mrf.mxu0
    %v145 = vadd.f32 0.0, %v144
    %v146 = vpop.f32.mrf.mxu0
    %v147 = vadd.f32 0.0, %v146
    %148 = vmatmul.bf16.gmra.mxu0 %v80
    %v149 = vpop.f32.mrf.mxu0
    %v150 = vadd.f32 0.0, %v149
    %v151 = vpop.f32.mrf.mxu0
    %v152 = vadd.f32 0.0, %v151
    %153 = vmatmul.bf16.gmra.mxu0 %v81
    %v154 = vpop.f32.mrf.mxu0
    %v155 = vadd.f32 0.0, %v154
    %v156 = vpop.f32.mrf.mxu0
    %v157 = vadd.f32 0.0, %v156
    %158 = vmatmul.bf16.gmra.mxu0 %v82
    %v159 = vpop.f32.mrf.mxu0
    %v160 = vadd.f32 0.0, %v159
    %v161 = vpop.f32.mrf.mxu0
    %v162 = vadd.f32 0.0, %v161
    %163 = vdwg.mxu0
    %v164 = vadd.f32 %v31, %v145
    %v165 = vadd.f32 %v32, %v147
    %v166 = vadd.f32 %v33, %v150
    %v167 = vadd.f32 %v34, %v152
    %v168 = vadd.f32 %v35, %v155
    %v169 = vadd.f32 %v36, %v157
    %v170 = vadd.f32 %v37, %v160
    %v171 = vadd.f32 %v38, %v162
    %172 = vst [vmem:[#allocation2] sm:$0xff] %v164
    %173 = vst [vmem:[#allocation2 + $0x8] sm:$0xff] %v165
    %174 = vst [vmem:[#allocation2 + $0x10] sm:$0xff] %v166
    %175 = vst [vmem:[#allocation2 + $0x18] sm:$0xff] %v167
    %176 = vst [vmem:[#allocation2 + $0x20] sm:$0xff] %v168
    %177 = vst [vmem:[#allocation2 + $0x28] sm:$0xff] %v169
    %178 = vst [vmem:[#allocation2 + $0x30] sm:$0xff] %v170
    %179 = vst [vmem:[#allocation2 + $0x38] sm:$0xff] %v171
    // Predicated region
    $region18: #{seq2seq_forward.9} parent=1 // pred_check
      _
    $region19: #{seq2seq_forward.9} parent=1 // pred_check_branch
      %181 = sbr.rel (0) target = $region21
    $region20: #{seq2seq_forward.9} parent=1 // pred_region
      %183 = vsyncadd [#allocation3], 0
      %s184 = sshll.u32 [#allocation2], 4
      %s185 = int_to_ptr.vmem [resolvable:$true] %s184
      %s186 = sshll.u32 %s3, 4
      %s187 = int_to_ptr.hbm [resolvable:$true] %s186
      %192 = dma.vmem_to_hbm [thread:$0]  %s185, 1024, %s187, [#allocation3], 128, 128, 8
    $region21: #{seq2seq_forward.9} parent=1 // pred_fallthru
      _
    // Predicated region
    $region22: #{seq2seq_forward.9} parent=1 // pred_check
      _
    $region23: #{seq2seq_forward.9} parent=1 // pred_check_branch
      %194 = sbr.rel (0) target = $region25
    $region24: #{seq2seq_forward.9} parent=1 // pred_region
      %196 = dma.done [#allocation3], 1024
    $region25: #{seq2seq_forward.9} parent=1 // pred_fallthru
      _
    %197 = vsyncpa [#allocation3], 1

// kernel: seq2seq_forward.7
$region0: #{seq2seq_forward.7}
  #allocation0 [shape = 'u32[]', space=smem, size = 0x4, offset = 0x4, fixed_abs, tag = 'smem constant byte address 0x4 - core index']
  #allocation1 [shape = 'u32[72,128]{1,0:T(1,128)}', space=vmem, size = 0x9000, scoped, tag = 'internal scratch']
  #allocation2 [shape = 'bf16[8,128]{1,0:T(8,128)(2,1)}', space=vmem, size = 0x800, scoped, tag = 'scratch operand']
  #allocation3 [shape = 'f32[8,128]{1,0:T(8,128)}', space=vmem, size = 0x1000, scoped, tag = 'scratch operand']
  %s0 = inlined_call_operand.vmem [shape: f32[8,8,512], index: 0, kind: input, shape index: {}]
  %s1 = inlined_call_operand.hbm [shape: bf16[128,512], index: 1, kind: input, shape index: {}]
  %s2 = inlined_call_operand.vmem [shape: f32[8,128], index: 2, kind: input, shape index: {}, may-alias: {2,3}]
  %s3 = inlined_call_operand.vmem [shape: f32[8,128], index: 3, kind: input, shape index: {}, may-alias: {2,3}]
  %s4 = inlined_call_operand.vmem [shape: f32[8,128], index: 4, kind: output, shape index: {0}]
  %s5 = inlined_call_operand.vmem [shape: f32[8,128], index: 5, kind: output, shape index: {1}]
  %6 = xla_tuple %s4, %s5
  %s7 = sld [smem:[#allocation0]]
  $region46: #{seq2seq_forward.7} parent=0
    _
  %s9 = ssub.s32 1, %s7
  %s10 = scalar_select 0, %s9, %s7
  $region1: #{seq2seq_forward.7} parent=0
    #allocation4 [shape = 'u8[131072]{0}', space=vmem, size = 0x20000, scoped, tag = 'input window, operand 1, single buffered']
    #allocation5 [shape = 's32[1]{0}', space=sflag, size = 0x4, scoped, tag = 'scoped memory for seq2seq_forward.7']
    %11 = vsyncpa [#allocation5], 0
    // Predicated region
    $region2: #{seq2seq_forward.7} parent=1 // pred_check
      _
    $region3: #{seq2seq_forward.7} parent=1 // pred_check_branch
      %13 = sbr.rel (0) target = $region5
    $region4: #{seq2seq_forward.7} parent=1 // pred_region
      _
    $region5: #{seq2seq_forward.7} parent=1 // pred_fallthru
      _
    // Predicated region
    $region6: #{seq2seq_forward.7} parent=1 // pred_check
      _
    $region7: #{seq2seq_forward.7} parent=1 // pred_check_branch
      %15 = sbr.rel (0) target = $region9
    $region8: #{seq2seq_forward.7} parent=1 // pred_region
      %17 = vsyncadd [#allocation5], 0
      %s18 = sshll.u32 %s1, 4
      %s19 = int_to_ptr.hbm [resolvable:$true] %s18
      %s20 = sshll.u32 [#allocation4], 4
      %s21 = int_to_ptr.vmem [resolvable:$true] %s20
      %26 = dma.hbm_to_vmem [thread:$0]  %s19, 4096, %s21, [#allocation5], 256, 256, 16
    $region9: #{seq2seq_forward.7} parent=1 // pred_fallthru
      _
    // Predicated region
    $region10: #{seq2seq_forward.7} parent=1 // pred_check
      _
    $region11: #{seq2seq_forward.7} parent=1 // pred_check_branch
      %28 = sbr.rel (0) target = $region13
    $region12: #{seq2seq_forward.7} parent=1 // pred_region
      _
    $region13: #{seq2seq_forward.7} parent=1 // pred_fallthru
      _
    // Predicated region
    $region14: #{seq2seq_forward.7} parent=1 // pred_check
      _
    $region15: #{seq2seq_forward.7} parent=1 // pred_check_branch
      %30 = sbr.rel (0) target = $region17
    $region16: #{seq2seq_forward.7} parent=1 // pred_region
      _
    $region17: #{seq2seq_forward.7} parent=1 // pred_fallthru
      _
    // Predicated region
    $region18: #{seq2seq_forward.7} parent=1 // pred_check
      _
    $region19: #{seq2seq_forward.7} parent=1 // pred_check_branch
      %32 = sbr.rel (0) target = $region21
    $region20: #{seq2seq_forward.7} parent=1 // pred_region
      %34 = dma.done [#allocation5], 4096
    $region21: #{seq2seq_forward.7} parent=1 // pred_fallthru
      _
    %p35 = scmp.eq.s32.totalorder 0, 0
    // Predicated region
    $region22: #{seq2seq_forward.7} parent=1 // pred_check
      %p36 = pneg %p35
    $region23: #{seq2seq_forward.7} parent=1 // pred_check_branch
      %38 = sbr.rel (%p36) target = $region25
    $region24: #{seq2seq_forward.7} parent=1 // pred_region
      %v39 = vld [vmem:[%s2] sm:$0xff]
      %v40 = vpack.c.bf16 %v39, %v39
      %41 = vst [vmem:[#allocation2] sm:$0xf] %v40
      %v42 = vld [vmem:[%s3] sm:$0xff]
      %43 = vst [vmem:[#allocation3] sm:$0xff] %v42
    $region25: #{seq2seq_forward.7} parent=1 // pred_fallthru
      _
    %v44 = vld [vmem:[#allocation4] sm:$0xff]
    %v45 = vld [vmem:[#allocation4 + $0x8] sm:$0xff]
    %v46 = vld [vmem:[#allocation4 + $0x10] sm:$0xff]
    %v47 = vld [vmem:[#allocation4 + $0x18] sm:$0xff]
    %v48 = vld [vmem:[#allocation4 + $0x20] sm:$0xff]
    %v49 = vld [vmem:[#allocation4 + $0x28] sm:$0xff]
    %v50 = vld [vmem:[#allocation4 + $0x30] sm:$0xff]
    %v51 = vld [vmem:[#allocation4 + $0x38] sm:$0xff]
    %v52 = vld [vmem:[#allocation4 + $0x40] sm:$0xff]
    %v53 = vld [vmem:[#allocation4 + $0x48] sm:$0xff]
    %v54 = vld [vmem:[#allocation4 + $0x50] sm:$0xff]
    %v55 = vld [vmem:[#allocation4 + $0x58] sm:$0xff]
    %v56 = vld [vmem:[#allocation4 + $0x60] sm:$0xff]
    %v57 = vld [vmem:[#allocation4 + $0x68] sm:$0xff]
    %v58 = vld [vmem:[#allocation4 + $0x70] sm:$0xff]
    %v59 = vld [vmem:[#allocation4 + $0x78] sm:$0xff]
    %v60 = vld [vmem:[#allocation4 + $0x80] sm:$0xff]
    %v61 = vld [vmem:[#allocation4 + $0x88] sm:$0xff]
    %v62 = vld [vmem:[#allocation4 + $0x90] sm:$0xff]
    %v63 = vld [vmem:[#allocation4 + $0x98] sm:$0xff]
    %v64 = vld [vmem:[#allocation4 + $0xa0] sm:$0xff]
    %v65 = vld [vmem:[#allocation4 + $0xa8] sm:$0xff]
    %v66 = vld [vmem:[#allocation4 + $0xb0] sm:$0xff]
    %v67 = vld [vmem:[#allocation4 + $0xb8] sm:$0xff]
    %v68 = vld [vmem:[#allocation4 + $0xc0] sm:$0xff]
    %v69 = vld [vmem:[#allocation4 + $0xc8] sm:$0xff]
    %v70 = vld [vmem:[#allocation4 + $0xd0] sm:$0xff]
    %v71 = vld [vmem:[#allocation4 + $0xd8] sm:$0xff]
    %v72 = vld [vmem:[#allocation4 + $0xe0] sm:$0xff]
    %v73 = vld [vmem:[#allocation4 + $0xe8] sm:$0xff]
    %v74 = vld [vmem:[#allocation4 + $0xf0] sm:$0xff]
    %v75 = vld [vmem:[#allocation4 + $0xf8] sm:$0xff]
    %v76 = vld [vmem:[#allocation2] sm:$0xf]
    %v77 = vld [vmem:[#allocation3] sm:$0xff]
    %v78 = vld [vmem:[%s0] sm:$0xff]
    %v79 = vld [vmem:[%s0 + $0x8] sm:$0xff]
    %v80 = vld [vmem:[%s0 + $0x10] sm:$0xff]
    %v81 = vld [vmem:[%s0 + $0x18] sm:$0xff]
    %v114 = vunpack.c.l.b16 %v44
    %v115 = vunpack.c.h.b16 %v44
    %v116 = vunpack.c.l.b16 %v45
    %v117 = vunpack.c.h.b16 %v45
    %v118 = vunpack.c.l.b16 %v46
    %v119 = vunpack.c.h.b16 %v46
    %v120 = vunpack.c.l.b16 %v47
    %v121 = vunpack.c.h.b16 %v47
    %v122 = vunpack.c.l.b16 %v48
    %v123 = vunpack.c.h.b16 %v48
    %v124 = vunpack.c.l.b16 %v49
    %v125 = vunpack.c.h.b16 %v49
    %v126 = vunpack.c.l.b16 %v50
    %v127 = vunpack.c.h.b16 %v50
    %v128 = vunpack.c.l.b16 %v51
    %v129 = vunpack.c.h.b16 %v51
    %v130 = vunpack.c.l.b16 %v52
    %v131 = vunpack.c.h.b16 %v52
    %v132 = vunpack.c.l.b16 %v53
    %v133 = vunpack.c.h.b16 %v53
    %v134 = vunpack.c.l.b16 %v54
    %v135 = vunpack.c.h.b16 %v54
    %v136 = vunpack.c.l.b16 %v55
    %v137 = vunpack.c.h.b16 %v55
    %v138 = vunpack.c.l.b16 %v56
    %v139 = vunpack.c.h.b16 %v56
    %v140 = vunpack.c.l.b16 %v57
    %v141 = vunpack.c.h.b16 %v57
    %v142 = vunpack.c.l.b16 %v58
    %v143 = vunpack.c.h.b16 %v58
    %v144 = vunpack.c.l.b16 %v59
    %v145 = vunpack.c.h.b16 %v59
    %v146 = vunpack.c.l.b16 %v60
    %v147 = vunpack.c.h.b16 %v60
    %v148 = vunpack.c.l.b16 %v61
    %v149 = vunpack.c.h.b16 %v61
    %v150 = vunpack.c.l.b16 %v62
    %v151 = vunpack.c.h.b16 %v62
    %v152 = vunpack.c.l.b16 %v63
    %v153 = vunpack.c.h.b16 %v63
    %v154 = vunpack.c.l.b16 %v64
    %v155 = vunpack.c.h.b16 %v64
    %v156 = vunpack.c.l.b16 %v65
    %v157 = vunpack.c.h.b16 %v65
    %v158 = vunpack.c.l.b16 %v66
    %v159 = vunpack.c.h.b16 %v66
    %v160 = vunpack.c.l.b16 %v67
    %v161 = vunpack.c.h.b16 %v67
    %v162 = vunpack.c.l.b16 %v68
    %v163 = vunpack.c.h.b16 %v68
    %v164 = vunpack.c.l.b16 %v69
    %v165 = vunpack.c.h.b16 %v69
    %v166 = vunpack.c.l.b16 %v70
    %v167 = vunpack.c.h.b16 %v70
    %v168 = vunpack.c.l.b16 %v71
    %v169 = vunpack.c.h.b16 %v71
    %v170 = vunpack.c.l.b16 %v72
    %v171 = vunpack.c.h.b16 %v72
    %v172 = vunpack.c.l.b16 %v73
    %v173 = vunpack.c.h.b16 %v73
    %v174 = vunpack.c.l.b16 %v74
    %v175 = vunpack.c.h.b16 %v74
    %v176 = vunpack.c.l.b16 %v75
    %v177 = vunpack.c.h.b16 %v75
    %v178 = vpack.c.b16 %v118, %v114
    %v179 = vpack.c.b16 %v119, %v115
    %v180 = vpack.c.b16 %v120, %v116
    %v181 = vpack.c.b16 %v121, %v117
    %v182 = vpack.c.b16 %v126, %v122
    %v183 = vpack.c.b16 %v127, %v123
    %v184 = vpack.c.b16 %v128, %v124
    %v185 = vpack.c.b16 %v129, %v125
    %v186 = vpack.c.b16 %v134, %v130
    %v187 = vpack.c.b16 %v135, %v131
    %v188 = vpack.c.b16 %v136, %v132
    %v189 = vpack.c.b16 %v137, %v133
    %v190 = vpack.c.b16 %v142, %v138
    %v191 = vpack.c.b16 %v143, %v139
    %v192 = vpack.c.b16 %v144, %v140
    %v193 = vpack.c.b16 %v145, %v141
    %v194 = vpack.c.b16 %v150, %v146
    %v195 = vpack.c.b16 %v151, %v147
    %v196 = vpack.c.b16 %v152, %v148
    %v197 = vpack.c.b16 %v153, %v149
    %v198 = vpack.c.b16 %v158, %v154
    %v199 = vpack.c.b16 %v159, %v155
    %v200 = vpack.c.b16 %v160, %v156
    %v201 = vpack.c.b16 %v161, %v157
    %v202 = vpack.c.b16 %v166, %v162
    %v203 = vpack.c.b16 %v167, %v163
    %v204 = vpack.c.b16 %v168, %v164
    %v205 = vpack.c.b16 %v169, %v165
    %v206 = vpack.c.b16 %v174, %v170
    %v207 = vpack.c.b16 %v175, %v171
    %v208 = vpack.c.b16 %v176, %v172
    %v209 = vpack.c.b16 %v177, %v173
    %242 = vmatpush.bf16.msra.mxu0 %v206
    %243 = vmatpush.bf16.msra.mxu0 %v202
    %244 = vmatpush.bf16.msra.mxu0 %v198
    %245 = vmatpush.bf16.msra.mxu0 %v194
    %246 = vmatpush.bf16.msra.mxu0 %v190
    %247 = vmatpush.bf16.msra.mxu0 %v186
    %248 = vmatpush.bf16.msra.mxu0 %v182
    %249 = vmatpush.bf16.msra.mxu0 %v178
    %250 = vmatmul.bf16.gmra.mxu0 %v76
    %v251 = vpop.f32.mrf.mxu0
    %v252 = vadd.f32 0.0, %v251
    %v253 = vpop.f32.mrf.mxu0
    %254 = vdwg.mxu0
    %255 = vmatpush.bf16.msra.mxu0 %v207
    %256 = vmatpush.bf16.msra.mxu0 %v203
    %257 = vmatpush.bf16.msra.mxu0 %v199
    %258 = vmatpush.bf16.msra.mxu0 %v195
    %259 = vmatpush.bf16.msra.mxu0 %v191
    %260 = vmatpush.bf16.msra.mxu0 %v187
    %261 = vmatpush.bf16.msra.mxu0 %v183
    %262 = vmatpush.bf16.msra.mxu0 %v179
    %263 = vmatmul.bf16.gmra.mxu0 %v76
    %v264 = vpop.f32.mrf.mxu0
    %v265 = vadd.f32 0.0, %v264
    %v266 = vpop.f32.mrf.mxu0
    %267 = vdwg.mxu0
    %268 = vmatpush.bf16.msra.mxu0 %v208
    %269 = vmatpush.bf16.msra.mxu0 %v204
    %270 = vmatpush.bf16.msra.mxu0 %v200
    %271 = vmatpush.bf16.msra.mxu0 %v196
    %272 = vmatpush.bf16.msra.mxu0 %v192
    %273 = vmatpush.bf16.msra.mxu0 %v188
    %274 = vmatpush.bf16.msra.mxu0 %v184
    %275 = vmatpush.bf16.msra.mxu0 %v180
    %276 = vmatmul.bf16.gmra.mxu0 %v76
    %v277 = vpop.f32.mrf.mxu0
    %v278 = vadd.f32 0.0, %v277
    %v279 = vpop.f32.mrf.mxu0
    %280 = vdwg.mxu0
    %281 = vmatpush.bf16.msra.mxu0 %v209
    %282 = vmatpush.bf16.msra.mxu0 %v205
    %283 = vmatpush.bf16.msra.mxu0 %v201
    %284 = vmatpush.bf16.msra.mxu0 %v197
    %285 = vmatpush.bf16.msra.mxu0 %v193
    %286 = vmatpush.bf16.msra.mxu0 %v189
    %287 = vmatpush.bf16.msra.mxu0 %v185
    %288 = vmatpush.bf16.msra.mxu0 %v181
    %289 = vmatmul.bf16.gmra.mxu0 %v76
    %v290 = vpop.f32.mrf.mxu0
    %v291 = vadd.f32 0.0, %v290
    %v292 = vpop.f32.mrf.mxu0
    %293 = vdwg.mxu0
    %v294 = vadd.f32 %v78, %v252
    %v295 = vadd.f32 %v79, %v265
    %v296 = vadd.f32 %v80, %v278
    %v297 = vadd.f32 %v81, %v291
    %v298 = vmul.f32 %v294, 0.5
    %v299 = vtanh.pop %v298
    %v300 = vmul.f32 %v299, 0.5
    %v301 = vadd.f32 %v300, 0.5
    %v302 = vmul.f32 %v295, 0.5
    %v303 = vtanh.pop %v302
    %v304 = vmul.f32 %v303, 0.5
    %v305 = vadd.f32 %v304, 0.5
    %v306 = vtanh.pop %v296
    %v307 = vmul.f32 %v297, 0.5
    %v308 = vtanh.pop %v307
    %v309 = vmul.f32 %v308, 0.5
    %v310 = vadd.f32 %v309, 0.5
    %v311 = vmul.f32 %v305, %v77
    %v312 = vmul.f32 %v301, %v306
    %v313 = vadd.f32 %v311, %v312
    %v314 = vtanh.pop %v313
    %v315 = vmul.f32 %v310, %v314
    %v316 = vpack.c.bf16 %v315, %v315
    %s317 = scalar_lea.vmem %s0, 32
    %v318 = vld [vmem:[%s317] sm:$0xff]
    %v319 = vld [vmem:[%s317 + $0x8] sm:$0xff]
    %v320 = vld [vmem:[%s317 + $0x10] sm:$0xff]
    %v321 = vld [vmem:[%s317 + $0x18] sm:$0xff]
    %322 = vmatpush.bf16.msra.mxu0 %v206
    %323 = vmatpush.bf16.msra.mxu0 %v202
    %324 = vmatpush.bf16.msra.mxu0 %v198
    %325 = vmatpush.bf16.msra.mxu0 %v194
    %326 = vmatpush.bf16.msra.mxu0 %v190
    %327 = vmatpush.bf16.msra.mxu0 %v186
    %328 = vmatpush.bf16.msra.mxu0 %v182
    %329 = vmatpush.bf16.msra.mxu0 %v178
    %330 = vmatmul.bf16.gmra.mxu0 %v316
    %v331 = vpop.f32.mrf.mxu0
    %v332 = vadd.f32 0.0, %v331
    %v333 = vpop.f32.mrf.mxu0
    %334 = vdwg.mxu0
    %335 = vmatpush.bf16.msra.mxu0 %v207
    %336 = vmatpush.bf16.msra.mxu0 %v203
    %337 = vmatpush.bf16.msra.mxu0 %v199
    %338 = vmatpush.bf16.msra.mxu0 %v195
    %339 = vmatpush.bf16.msra.mxu0 %v191
    %340 = vmatpush.bf16.msra.mxu0 %v187
    %341 = vmatpush.bf16.msra.mxu0 %v183
    %342 = vmatpush.bf16.msra.mxu0 %v179
    %343 = vmatmul.bf16.gmra.mxu0 %v316
    %v344 = vpop.f32.mrf.mxu0
    %v345 = vadd.f32 0.0, %v344
    %v346 = vpop.f32.mrf.mxu0
    %347 = vdwg.mxu0
    %348 = vmatpush.bf16.msra.mxu0 %v208
    %349 = vmatpush.bf16.msra.mxu0 %v204
    %350 = vmatpush.bf16.msra.mxu0 %v200
    %351 = vmatpush.bf16.msra.mxu0 %v196
    %352 = vmatpush.bf16.msra.mxu0 %v192
    %353 = vmatpush.bf16.msra.mxu0 %v188
    %354 = vmatpush.bf16.msra.mxu0 %v184
    %355 = vmatpush.bf16.msra.mxu0 %v180
    %356 = vmatmul.bf16.gmra.mxu0 %v316
    %v357 = vpop.f32.mrf.mxu0
    %v358 = vadd.f32 0.0, %v357
    %v359 = vpop.f32.mrf.mxu0
    %360 = vdwg.mxu0
    %361 = vmatpush.bf16.msra.mxu0 %v209
    %362 = vmatpush.bf16.msra.mxu0 %v205
    %363 = vmatpush.bf16.msra.mxu0 %v201
    %364 = vmatpush.bf16.msra.mxu0 %v197
    %365 = vmatpush.bf16.msra.mxu0 %v193
    %366 = vmatpush.bf16.msra.mxu0 %v189
    %367 = vmatpush.bf16.msra.mxu0 %v185
    %368 = vmatpush.bf16.msra.mxu0 %v181
    %369 = vmatmul.bf16.gmra.mxu0 %v316
    %v370 = vpop.f32.mrf.mxu0
    %v371 = vadd.f32 0.0, %v370
    %v372 = vpop.f32.mrf.mxu0
    %373 = vdwg.mxu0
    %v374 = vadd.f32 %v318, %v332
    %v375 = vadd.f32 %v319, %v345
    %v376 = vadd.f32 %v320, %v358
    %v377 = vadd.f32 %v321, %v371
    %v378 = vmul.f32 %v374, 0.5
    %v379 = vtanh.pop %v378
    %v380 = vmul.f32 %v379, 0.5
    %v381 = vadd.f32 %v380, 0.5
    %v382 = vmul.f32 %v375, 0.5
    %v383 = vtanh.pop %v382
    %v384 = vmul.f32 %v383, 0.5
    %v385 = vadd.f32 %v384, 0.5
    %v386 = vtanh.pop %v376
    %v387 = vmul.f32 %v377, 0.5
    %v388 = vtanh.pop %v387
    %v389 = vmul.f32 %v388, 0.5
    %v390 = vadd.f32 %v389, 0.5
    %v391 = vmul.f32 %v385, %v313
    %v392 = vmul.f32 %v381, %v386
    %v393 = vadd.f32 %v391, %v392
    %v394 = vtanh.pop %v393
    %v395 = vmul.f32 %v390, %v394
    %v396 = vpack.c.bf16 %v395, %v395
    %s397 = scalar_lea.vmem %s0, 64
    %v398 = vld [vmem:[%s397] sm:$0xff]
    %v399 = vld [vmem:[%s397 + $0x8] sm:$0xff]
    %v400 = vld [vmem:[%s397 + $0x10] sm:$0xff]
    %v401 = vld [vmem:[%s397 + $0x18] sm:$0xff]
    %402 = vmatpush.bf16.msra.mxu0 %v206
    %403 = vmatpush.bf16.msra.mxu0 %v202
    %404 = vmatpush.bf16.msra.mxu0 %v198
    %405 = vmatpush.bf16.msra.mxu0 %v194
    %406 = vmatpush.bf16.msra.mxu0 %v190
    %407 = vmatpush.bf16.msra.mxu0 %v186
    %408 = vmatpush.bf16.msra.mxu0 %v182
    %409 = vmatpush.bf16.msra.mxu0 %v178
    %410 = vmatmul.bf16.gmra.mxu0 %v396
    %v411 = vpop.f32.mrf.mxu0
    %v412 = vadd.f32 0.0, %v411
    %v413 = vpop.f32.mrf.mxu0
    %414 = vdwg.mxu0
    %415 = vmatpush.bf16.msra.mxu0 %v207
    %416 = vmatpush.bf16.msra.mxu0 %v203
    %417 = vmatpush.bf16.msra.mxu0 %v199
    %418 = vmatpush.bf16.msra.mxu0 %v195
    %419 = vmatpush.bf16.msra.mxu0 %v191
    %420 = vmatpush.bf16.msra.mxu0 %v187
    %421 = vmatpush.bf16.msra.mxu0 %v183
    %422 = vmatpush.bf16.msra.mxu0 %v179
    %423 = vmatmul.bf16.gmra.mxu0 %v396
    %v424 = vpop.f32.mrf.mxu0
    %v425 = vadd.f32 0.0, %v424
    %v426 = vpop.f32.mrf.mxu0
    %427 = vdwg.mxu0
    %428 = vmatpush.bf16.msra.mxu0 %v208
    %429 = vmatpush.bf16.msra.mxu0 %v204
    %430 = vmatpush.bf16.msra.mxu0 %v200
    %431 = vmatpush.bf16.msra.mxu0 %v196
    %432 = vmatpush.bf16.msra.mxu0 %v192
    %433 = vmatpush.bf16.msra.mxu0 %v188
    %434 = vmatpush.bf16.msra.mxu0 %v184
    %435 = vmatpush.bf16.msra.mxu0 %v180
    %436 = vmatmul.bf16.gmra.mxu0 %v396
    %v437 = vpop.f32.mrf.mxu0
    %v438 = vadd.f32 0.0, %v437
    %v439 = vpop.f32.mrf.mxu0
    %440 = vdwg.mxu0
    %441 = vmatpush.bf16.msra.mxu0 %v209
    %442 = vmatpush.bf16.msra.mxu0 %v205
    %443 = vmatpush.bf16.msra.mxu0 %v201
    %444 = vmatpush.bf16.msra.mxu0 %v197
    %445 = vmatpush.bf16.msra.mxu0 %v193
    %446 = vmatpush.bf16.msra.mxu0 %v189
    %447 = vmatpush.bf16.msra.mxu0 %v185
    %448 = vmatpush.bf16.msra.mxu0 %v181
    %449 = vmatmul.bf16.gmra.mxu0 %v396
    %v450 = vpop.f32.mrf.mxu0
    %v451 = vadd.f32 0.0, %v450
    %v452 = vpop.f32.mrf.mxu0
    %453 = vdwg.mxu0
    %v454 = vadd.f32 %v398, %v412
    %v455 = vadd.f32 %v399, %v425
    %v456 = vadd.f32 %v400, %v438
    %v457 = vadd.f32 %v401, %v451
    %v458 = vmul.f32 %v454, 0.5
    %v459 = vtanh.pop %v458
    %v460 = vmul.f32 %v459, 0.5
    %v461 = vadd.f32 %v460, 0.5
    %v462 = vmul.f32 %v455, 0.5
    %v463 = vtanh.pop %v462
    %v464 = vmul.f32 %v463, 0.5
    %v465 = vadd.f32 %v464, 0.5
    %v466 = vtanh.pop %v456
    %v467 = vmul.f32 %v457, 0.5
    %v468 = vtanh.pop %v467
    %v469 = vmul.f32 %v468, 0.5
    %v470 = vadd.f32 %v469, 0.5
    %v471 = vmul.f32 %v465, %v393
    %v472 = vmul.f32 %v461, %v466
    %v473 = vadd.f32 %v471, %v472
    %v474 = vtanh.pop %v473
    %v475 = vmul.f32 %v470, %v474
    %v476 = vpack.c.bf16 %v475, %v475
    %s477 = scalar_lea.vmem %s0, 96
    %v478 = vld [vmem:[%s477] sm:$0xff]
    %v479 = vld [vmem:[%s477 + $0x8] sm:$0xff]
    %v480 = vld [vmem:[%s477 + $0x10] sm:$0xff]
    %v481 = vld [vmem:[%s477 + $0x18] sm:$0xff]
    %482 = vmatpush.bf16.msra.mxu0 %v206
    %483 = vmatpush.bf16.msra.mxu0 %v202
    %484 = vmatpush.bf16.msra.mxu0 %v198
    %485 = vmatpush.bf16.msra.mxu0 %v194
    %486 = vmatpush.bf16.msra.mxu0 %v190
    %487 = vmatpush.bf16.msra.mxu0 %v186
    %488 = vmatpush.bf16.msra.mxu0 %v182
    %489 = vmatpush.bf16.msra.mxu0 %v178
    %490 = vmatmul.bf16.gmra.mxu0 %v476
    %v491 = vpop.f32.mrf.mxu0
    %v492 = vadd.f32 0.0, %v491
    %v493 = vpop.f32.mrf.mxu0
    %494 = vdwg.mxu0
    %495 = vmatpush.bf16.msra.mxu0 %v207
    %496 = vmatpush.bf16.msra.mxu0 %v203
    %497 = vmatpush.bf16.msra.mxu0 %v199
    %498 = vmatpush.bf16.msra.mxu0 %v195
    %499 = vmatpush.bf16.msra.mxu0 %v191
    %500 = vmatpush.bf16.msra.mxu0 %v187
    %501 = vmatpush.bf16.msra.mxu0 %v183
    %502 = vmatpush.bf16.msra.mxu0 %v179
    %503 = vmatmul.bf16.gmra.mxu0 %v476
    %v504 = vpop.f32.mrf.mxu0
    %v505 = vadd.f32 0.0, %v504
    %v506 = vpop.f32.mrf.mxu0
    %507 = vdwg.mxu0
    %508 = vmatpush.bf16.msra.mxu0 %v208
    %509 = vmatpush.bf16.msra.mxu0 %v204
    %510 = vmatpush.bf16.msra.mxu0 %v200
    %511 = vmatpush.bf16.msra.mxu0 %v196
    %512 = vmatpush.bf16.msra.mxu0 %v192
    %513 = vmatpush.bf16.msra.mxu0 %v188
    %514 = vmatpush.bf16.msra.mxu0 %v184
    %515 = vmatpush.bf16.msra.mxu0 %v180
    %516 = vmatmul.bf16.gmra.mxu0 %v476
    %v517 = vpop.f32.mrf.mxu0
    %v518 = vadd.f32 0.0, %v517
    %v519 = vpop.f32.mrf.mxu0
    %520 = vdwg.mxu0
    %521 = vmatpush.bf16.msra.mxu0 %v209
    %522 = vmatpush.bf16.msra.mxu0 %v205
    %523 = vmatpush.bf16.msra.mxu0 %v201
    %524 = vmatpush.bf16.msra.mxu0 %v197
    %525 = vmatpush.bf16.msra.mxu0 %v193
    %526 = vmatpush.bf16.msra.mxu0 %v189
    %527 = vmatpush.bf16.msra.mxu0 %v185
    %528 = vmatpush.bf16.msra.mxu0 %v181
    %529 = vmatmul.bf16.gmra.mxu0 %v476
    %v530 = vpop.f32.mrf.mxu0
    %v531 = vadd.f32 0.0, %v530
    %v532 = vpop.f32.mrf.mxu0
    %533 = vdwg.mxu0
    %v534 = vadd.f32 %v478, %v492
    %v535 = vadd.f32 %v479, %v505
    %v536 = vadd.f32 %v480, %v518
    %v537 = vadd.f32 %v481, %v531
    %v538 = vmul.f32 %v534, 0.5
    %v539 = vtanh.pop %v538
    %v540 = vmul.f32 %v539, 0.5
    %v541 = vadd.f32 %v540, 0.5
    %v542 = vmul.f32 %v535, 0.5
    %v543 = vtanh.pop %v542
    %v544 = vmul.f32 %v543, 0.5
    %v545 = vadd.f32 %v544, 0.5
    %v546 = vtanh.pop %v536
    %v547 = vmul.f32 %v537, 0.5
    %v548 = vtanh.pop %v547
    %v549 = vmul.f32 %v548, 0.5
    %v550 = vadd.f32 %v549, 0.5
    %v551 = vmul.f32 %v545, %v473
    %v552 = vmul.f32 %v541, %v546
    %v553 = vadd.f32 %v551, %v552
    %v554 = vtanh.pop %v553
    %v555 = vmul.f32 %v550, %v554
    %v556 = vpack.c.bf16 %v555, %v555
    %s557 = scalar_lea.vmem %s0, 128
    %v558 = vld [vmem:[%s557] sm:$0xff]
    %v559 = vld [vmem:[%s557 + $0x8] sm:$0xff]
    %v560 = vld [vmem:[%s557 + $0x10] sm:$0xff]
    %v561 = vld [vmem:[%s557 + $0x18] sm:$0xff]
    %562 = vmatpush.bf16.msra.mxu0 %v206
    %563 = vmatpush.bf16.msra.mxu0 %v202
    %564 = vmatpush.bf16.msra.mxu0 %v198
    %565 = vmatpush.bf16.msra.mxu0 %v194
    %566 = vmatpush.bf16.msra.mxu0 %v190
    %567 = vmatpush.bf16.msra.mxu0 %v186
    %568 = vmatpush.bf16.msra.mxu0 %v182
    %569 = vmatpush.bf16.msra.mxu0 %v178
    %570 = vmatmul.bf16.gmra.mxu0 %v556
    %v571 = vpop.f32.mrf.mxu0
    %v572 = vadd.f32 0.0, %v571
    %v573 = vpop.f32.mrf.mxu0
    %574 = vdwg.mxu0
    %575 = vmatpush.bf16.msra.mxu0 %v207
    %576 = vmatpush.bf16.msra.mxu0 %v203
    %577 = vmatpush.bf16.msra.mxu0 %v199
    %578 = vmatpush.bf16.msra.mxu0 %v195
    %579 = vmatpush.bf16.msra.mxu0 %v191
    %580 = vmatpush.bf16.msra.mxu0 %v187
    %581 = vmatpush.bf16.msra.mxu0 %v183
    %582 = vmatpush.bf16.msra.mxu0 %v179
    %583 = vmatmul.bf16.gmra.mxu0 %v556
    %v584 = vpop.f32.mrf.mxu0
    %v585 = vadd.f32 0.0, %v584
    %v586 = vpop.f32.mrf.mxu0
    %587 = vdwg.mxu0
    %588 = vmatpush.bf16.msra.mxu0 %v208
    %589 = vmatpush.bf16.msra.mxu0 %v204
    %590 = vmatpush.bf16.msra.mxu0 %v200
    %591 = vmatpush.bf16.msra.mxu0 %v196
    %592 = vmatpush.bf16.msra.mxu0 %v192
    %593 = vmatpush.bf16.msra.mxu0 %v188
    %594 = vmatpush.bf16.msra.mxu0 %v184
    %595 = vmatpush.bf16.msra.mxu0 %v180
    %596 = vmatmul.bf16.gmra.mxu0 %v556
    %v597 = vpop.f32.mrf.mxu0
    %v598 = vadd.f32 0.0, %v597
    %v599 = vpop.f32.mrf.mxu0
    %600 = vdwg.mxu0
    %601 = vmatpush.bf16.msra.mxu0 %v209
    %602 = vmatpush.bf16.msra.mxu0 %v205
    %603 = vmatpush.bf16.msra.mxu0 %v201
    %604 = vmatpush.bf16.msra.mxu0 %v197
    %605 = vmatpush.bf16.msra.mxu0 %v193
    %606 = vmatpush.bf16.msra.mxu0 %v189
    %607 = vmatpush.bf16.msra.mxu0 %v185
    %608 = vmatpush.bf16.msra.mxu0 %v181
    %609 = vmatmul.bf16.gmra.mxu0 %v556
    %v610 = vpop.f32.mrf.mxu0
    %v611 = vadd.f32 0.0, %v610
    %v612 = vpop.f32.mrf.mxu0
    %613 = vdwg.mxu0
    %v614 = vadd.f32 %v558, %v572
    %v615 = vadd.f32 %v559, %v585
    %v616 = vadd.f32 %v560, %v598
    %v617 = vadd.f32 %v561, %v611
    %v618 = vmul.f32 %v614, 0.5
    %v619 = vtanh.pop %v618
    %v620 = vmul.f32 %v619, 0.5
    %v621 = vadd.f32 %v620, 0.5
    %v622 = vmul.f32 %v615, 0.5
    %v623 = vtanh.pop %v622
    %v624 = vmul.f32 %v623, 0.5
    %v625 = vadd.f32 %v624, 0.5
    %v626 = vtanh.pop %v616
    %v627 = vmul.f32 %v617, 0.5
    %v628 = vtanh.pop %v627
    %v629 = vmul.f32 %v628, 0.5
    %v630 = vadd.f32 %v629, 0.5
    %v631 = vmul.f32 %v625, %v553
    %v632 = vmul.f32 %v621, %v626
    %v633 = vadd.f32 %v631, %v632
    %v634 = vtanh.pop %v633
    %v635 = vmul.f32 %v630, %v634
    %v636 = vpack.c.bf16 %v635, %v635
    %s637 = scalar_lea.vmem %s0, 160
    %v638 = vld [vmem:[%s637] sm:$0xff]
    %v639 = vld [vmem:[%s637 + $0x8] sm:$0xff]
    %v640 = vld [vmem:[%s637 + $0x10] sm:$0xff]
    %v641 = vld [vmem:[%s637 + $0x18] sm:$0xff]
    %642 = vmatpush.bf16.msra.mxu0 %v206
    %643 = vmatpush.bf16.msra.mxu0 %v202
    %644 = vmatpush.bf16.msra.mxu0 %v198
    %645 = vmatpush.bf16.msra.mxu0 %v194
    %646 = vmatpush.bf16.msra.mxu0 %v190
    %647 = vmatpush.bf16.msra.mxu0 %v186
    %648 = vmatpush.bf16.msra.mxu0 %v182
    %649 = vmatpush.bf16.msra.mxu0 %v178
    %650 = vmatmul.bf16.gmra.mxu0 %v636
    %v651 = vpop.f32.mrf.mxu0
    %v652 = vadd.f32 0.0, %v651
    %v653 = vpop.f32.mrf.mxu0
    %654 = vdwg.mxu0
    %655 = vmatpush.bf16.msra.mxu0 %v207
    %656 = vmatpush.bf16.msra.mxu0 %v203
    %657 = vmatpush.bf16.msra.mxu0 %v199
    %658 = vmatpush.bf16.msra.mxu0 %v195
    %659 = vmatpush.bf16.msra.mxu0 %v191
    %660 = vmatpush.bf16.msra.mxu0 %v187
    %661 = vmatpush.bf16.msra.mxu0 %v183
    %662 = vmatpush.bf16.msra.mxu0 %v179
    %663 = vmatmul.bf16.gmra.mxu0 %v636
    %v664 = vpop.f32.mrf.mxu0
    %v665 = vadd.f32 0.0, %v664
    %v666 = vpop.f32.mrf.mxu0
    %667 = vdwg.mxu0
    %668 = vmatpush.bf16.msra.mxu0 %v208
    %669 = vmatpush.bf16.msra.mxu0 %v204
    %670 = vmatpush.bf16.msra.mxu0 %v200
    %671 = vmatpush.bf16.msra.mxu0 %v196
    %672 = vmatpush.bf16.msra.mxu0 %v192
    %673 = vmatpush.bf16.msra.mxu0 %v188
    %674 = vmatpush.bf16.msra.mxu0 %v184
    %675 = vmatpush.bf16.msra.mxu0 %v180
    %676 = vmatmul.bf16.gmra.mxu0 %v636
    %v677 = vpop.f32.mrf.mxu0
    %v678 = vadd.f32 0.0, %v677
    %v679 = vpop.f32.mrf.mxu0
    %680 = vdwg.mxu0
    %681 = vmatpush.bf16.msra.mxu0 %v209
    %682 = vmatpush.bf16.msra.mxu0 %v205
    %683 = vmatpush.bf16.msra.mxu0 %v201
    %684 = vmatpush.bf16.msra.mxu0 %v197
    %685 = vmatpush.bf16.msra.mxu0 %v193
    %686 = vmatpush.bf16.msra.mxu0 %v189
    %687 = vmatpush.bf16.msra.mxu0 %v185
    %688 = vmatpush.bf16.msra.mxu0 %v181
    %689 = vmatmul.bf16.gmra.mxu0 %v636
    %v690 = vpop.f32.mrf.mxu0
    %v691 = vadd.f32 0.0, %v690
    %v692 = vpop.f32.mrf.mxu0
    %693 = vdwg.mxu0
    %v694 = vadd.f32 %v638, %v652
    %v695 = vadd.f32 %v639, %v665
    %v696 = vadd.f32 %v640, %v678
    %v697 = vadd.f32 %v641, %v691
    %v698 = vmul.f32 %v694, 0.5
    %v699 = vtanh.pop %v698
    %v700 = vmul.f32 %v699, 0.5
    %v701 = vadd.f32 %v700, 0.5
    %v702 = vmul.f32 %v695, 0.5
    %v703 = vtanh.pop %v702
    %v704 = vmul.f32 %v703, 0.5
    %v705 = vadd.f32 %v704, 0.5
    %v706 = vtanh.pop %v696
    %v707 = vmul.f32 %v697, 0.5
    %v708 = vtanh.pop %v707
    %v709 = vmul.f32 %v708, 0.5
    %v710 = vadd.f32 %v709, 0.5
    %v711 = vmul.f32 %v705, %v633
    %v712 = vmul.f32 %v701, %v706
    %v713 = vadd.f32 %v711, %v712
    %v714 = vtanh.pop %v713
    %v715 = vmul.f32 %v710, %v714
    %v716 = vpack.c.bf16 %v715, %v715
    %s717 = scalar_lea.vmem %s0, 192
    %v718 = vld [vmem:[%s717] sm:$0xff]
    %v719 = vld [vmem:[%s717 + $0x8] sm:$0xff]
    %v720 = vld [vmem:[%s717 + $0x10] sm:$0xff]
    %v721 = vld [vmem:[%s717 + $0x18] sm:$0xff]
    %722 = vmatpush.bf16.msra.mxu0 %v206
    %723 = vmatpush.bf16.msra.mxu0 %v202
    %724 = vmatpush.bf16.msra.mxu0 %v198
    %725 = vmatpush.bf16.msra.mxu0 %v194
    %726 = vmatpush.bf16.msra.mxu0 %v190
    %727 = vmatpush.bf16.msra.mxu0 %v186
    %728 = vmatpush.bf16.msra.mxu0 %v182
    %729 = vmatpush.bf16.msra.mxu0 %v178
    %730 = vmatmul.bf16.gmra.mxu0 %v716
    %v731 = vpop.f32.mrf.mxu0
    %v732 = vadd.f32 0.0, %v731
    %v733 = vpop.f32.mrf.mxu0
    %734 = vdwg.mxu0
    %735 = vmatpush.bf16.msra.mxu0 %v207
    %736 = vmatpush.bf16.msra.mxu0 %v203
    %737 = vmatpush.bf16.msra.mxu0 %v199
    %738 = vmatpush.bf16.msra.mxu0 %v195
    %739 = vmatpush.bf16.msra.mxu0 %v191
    %740 = vmatpush.bf16.msra.mxu0 %v187
    %741 = vmatpush.bf16.msra.mxu0 %v183
    %742 = vmatpush.bf16.msra.mxu0 %v179
    %743 = vmatmul.bf16.gmra.mxu0 %v716
    %v744 = vpop.f32.mrf.mxu0
    %v745 = vadd.f32 0.0, %v744
    %v746 = vpop.f32.mrf.mxu0
    %747 = vdwg.mxu0
    %748 = vmatpush.bf16.msra.mxu0 %v208
    %749 = vmatpush.bf16.msra.mxu0 %v204
    %750 = vmatpush.bf16.msra.mxu0 %v200
    %751 = vmatpush.bf16.msra.mxu0 %v196
    %752 = vmatpush.bf16.msra.mxu0 %v192
    %753 = vmatpush.bf16.msra.mxu0 %v188
    %754 = vmatpush.bf16.msra.mxu0 %v184
    %755 = vmatpush.bf16.msra.mxu0 %v180
    %756 = vmatmul.bf16.gmra.mxu0 %v716
    %v757 = vpop.f32.mrf.mxu0
    %v758 = vadd.f32 0.0, %v757
    %v759 = vpop.f32.mrf.mxu0
    %760 = vdwg.mxu0
    %761 = vmatpush.bf16.msra.mxu0 %v209
    %762 = vmatpush.bf16.msra.mxu0 %v205
    %763 = vmatpush.bf16.msra.mxu0 %v201
    %764 = vmatpush.bf16.msra.mxu0 %v197
    %765 = vmatpush.bf16.msra.mxu0 %v193
    %766 = vmatpush.bf16.msra.mxu0 %v189
    %767 = vmatpush.bf16.msra.mxu0 %v185
    %768 = vmatpush.bf16.msra.mxu0 %v181
    %769 = vmatmul.bf16.gmra.mxu0 %v716
    %v770 = vpop.f32.mrf.mxu0
    %v771 = vadd.f32 0.0, %v770
    %v772 = vpop.f32.mrf.mxu0
    %773 = vdwg.mxu0
    %v774 = vadd.f32 %v718, %v732
    %v775 = vadd.f32 %v719, %v745
    %v776 = vadd.f32 %v720, %v758
    %v777 = vadd.f32 %v721, %v771
    %v778 = vmul.f32 %v774, 0.5
    %v779 = vtanh.pop %v778
    %v780 = vmul.f32 %v779, 0.5
    %v781 = vadd.f32 %v780, 0.5
    %v782 = vmul.f32 %v775, 0.5
    %v783 = vtanh.pop %v782
    %v784 = vmul.f32 %v783, 0.5
    %v785 = vadd.f32 %v784, 0.5
    %v786 = vtanh.pop %v776
    %v787 = vmul.f32 %v777, 0.5
    %v788 = vtanh.pop %v787
    %v789 = vmul.f32 %v788, 0.5
    %v790 = vadd.f32 %v789, 0.5
    %v791 = vmul.f32 %v785, %v713
    %v792 = vmul.f32 %v781, %v786
    %v793 = vadd.f32 %v791, %v792
    %v794 = vtanh.pop %v793
    %v795 = vmul.f32 %v790, %v794
    %v796 = vpack.c.bf16 %v795, %v795
    %s797 = scalar_lea.vmem %s0, 224
    %v798 = vld [vmem:[%s797] sm:$0xff]
    %v799 = vld [vmem:[%s797 + $0x8] sm:$0xff]
    %v800 = vld [vmem:[%s797 + $0x10] sm:$0xff]
    %v801 = vld [vmem:[%s797 + $0x18] sm:$0xff]
    %802 = vmatpush.bf16.msra.mxu0 %v206
    %803 = vmatpush.bf16.msra.mxu0 %v202
    %804 = vmatpush.bf16.msra.mxu0 %v198
    %805 = vmatpush.bf16.msra.mxu0 %v194
    %806 = vmatpush.bf16.msra.mxu0 %v190
    %807 = vmatpush.bf16.msra.mxu0 %v186
    %808 = vmatpush.bf16.msra.mxu0 %v182
    %809 = vmatpush.bf16.msra.mxu0 %v178
    %810 = vmatmul.bf16.gmra.mxu0 %v796
    %v811 = vpop.f32.mrf.mxu0
    %v812 = vadd.f32 0.0, %v811
    %v813 = vpop.f32.mrf.mxu0
    %814 = vdwg.mxu0
    %815 = vmatpush.bf16.msra.mxu0 %v207
    %816 = vmatpush.bf16.msra.mxu0 %v203
    %817 = vmatpush.bf16.msra.mxu0 %v199
    %818 = vmatpush.bf16.msra.mxu0 %v195
    %819 = vmatpush.bf16.msra.mxu0 %v191
    %820 = vmatpush.bf16.msra.mxu0 %v187
    %821 = vmatpush.bf16.msra.mxu0 %v183
    %822 = vmatpush.bf16.msra.mxu0 %v179
    %823 = vmatmul.bf16.gmra.mxu0 %v796
    %v824 = vpop.f32.mrf.mxu0
    %v825 = vadd.f32 0.0, %v824
    %v826 = vpop.f32.mrf.mxu0
    %827 = vdwg.mxu0
    %828 = vmatpush.bf16.msra.mxu0 %v208
    %829 = vmatpush.bf16.msra.mxu0 %v204
    %830 = vmatpush.bf16.msra.mxu0 %v200
    %831 = vmatpush.bf16.msra.mxu0 %v196
    %832 = vmatpush.bf16.msra.mxu0 %v192
    %833 = vmatpush.bf16.msra.mxu0 %v188
    %834 = vmatpush.bf16.msra.mxu0 %v184
    %835 = vmatpush.bf16.msra.mxu0 %v180
    %836 = vmatmul.bf16.gmra.mxu0 %v796
    %v837 = vpop.f32.mrf.mxu0
    %v838 = vadd.f32 0.0, %v837
    %v839 = vpop.f32.mrf.mxu0
    %840 = vdwg.mxu0
    %841 = vmatpush.bf16.msra.mxu0 %v209
    %842 = vmatpush.bf16.msra.mxu0 %v205
    %843 = vmatpush.bf16.msra.mxu0 %v201
    %844 = vmatpush.bf16.msra.mxu0 %v197
    %845 = vmatpush.bf16.msra.mxu0 %v193
    %846 = vmatpush.bf16.msra.mxu0 %v189
    %847 = vmatpush.bf16.msra.mxu0 %v185
    %848 = vmatpush.bf16.msra.mxu0 %v181
    %849 = vmatmul.bf16.gmra.mxu0 %v796
    %v850 = vpop.f32.mrf.mxu0
    %v851 = vadd.f32 0.0, %v850
    %v852 = vpop.f32.mrf.mxu0
    %853 = vdwg.mxu0
    %v854 = vadd.f32 %v798, %v812
    %v855 = vadd.f32 %v799, %v825
    %v856 = vadd.f32 %v800, %v838
    %v857 = vadd.f32 %v801, %v851
    %v858 = vmul.f32 %v854, 0.5
    %v859 = vtanh.pop %v858
    %v860 = vmul.f32 %v859, 0.5
    %v861 = vadd.f32 %v860, 0.5
    %v862 = vmul.f32 %v855, 0.5
    %v863 = vtanh.pop %v862
    %v864 = vmul.f32 %v863, 0.5
    %v865 = vadd.f32 %v864, 0.5
    %v866 = vtanh.pop %v856
    %v867 = vmul.f32 %v857, 0.5
    %v868 = vtanh.pop %v867
    %v869 = vmul.f32 %v868, 0.5
    %v870 = vadd.f32 %v869, 0.5
    %v871 = vmul.f32 %v865, %v793
    %v872 = vmul.f32 %v861, %v866
    %v873 = vadd.f32 %v871, %v872
    %v874 = vtanh.pop %v873
    %v875 = vmul.f32 %v870, %v874
    %v876 = vpack.c.bf16 %v875, %v875
    %877 = vst [vmem:[#allocation2] sm:$0xf] %v876
    %878 = vst [vmem:[#allocation3] sm:$0xff] %v873
    // Predicated region
    $region26: #{seq2seq_forward.7} parent=1 // pred_check
      %p879 = pneg %p35
    $region27: #{seq2seq_forward.7} parent=1 // pred_check_branch
      %881 = sbr.rel (%p879) target = $region29
    $region28: #{seq2seq_forward.7} parent=1 // pred_region
      %v882 = vunpack.c.l.bf16 %v876
      %883 = vst [vmem:[%s4] sm:$0xff] %v882
      %884 = vst [vmem:[%s5] sm:$0xff] %v873
    $region29: #{seq2seq_forward.7} parent=1 // pred_fallthru
      _
    // Predicated region
    $region30: #{seq2seq_forward.7} parent=1 // pred_check
      _
    $region31: #{seq2seq_forward.7} parent=1 // pred_check_branch
      %886 = sbr.rel (0) target = $region33
    $region32: #{seq2seq_forward.7} parent=1 // pred_region
      _
    $region33: #{seq2seq_forward.7} parent=1 // pred_fallthru
      _
    // Predicated region
    $region34: #{seq2seq_forward.7} parent=1 // pred_check
      _
    $region35: #{seq2seq_forward.7} parent=1 // pred_check_branch
      %888 = sbr.rel (0) target = $region37
    $region36: #{seq2seq_forward.7} parent=1 // pred_region
      _
    $region37: #{seq2seq_forward.7} parent=1 // pred_fallthru
      _
    // Predicated region
    $region38: #{seq2seq_forward.7} parent=1 // pred_check
      _
    $region39: #{seq2seq_forward.7} parent=1 // pred_check_branch
      %890 = sbr.rel (0) target = $region41
    $region40: #{seq2seq_forward.7} parent=1 // pred_region
      _
    $region41: #{seq2seq_forward.7} parent=1 // pred_fallthru
      _
    // Predicated region
    $region42: #{seq2seq_forward.7} parent=1 // pred_check
      _
    $region43: #{seq2seq_forward.7} parent=1 // pred_check_branch
      %892 = sbr.rel (0) target = $region45
    $region44: #{seq2seq_forward.7} parent=1 // pred_region
      _
    $region45: #{seq2seq_forward.7} parent=1 // pred_fallthru
      _
    %893 = vsyncpa [#allocation5], 1

// kernel: seq2seq_forward.8
$region0: #{seq2seq_forward.8}
  #allocation0 [shape = 'u32[]', space=smem, size = 0x4, offset = 0x4, fixed_abs, tag = 'smem constant byte address 0x4 - core index']
  #allocation1 [shape = 'u32[72,128]{1,0:T(1,128)}', space=vmem, size = 0x9000, scoped, tag = 'internal scratch']
  #allocation2 [shape = 'bf16[8,128]{1,0:T(8,128)(2,1)}', space=vmem, size = 0x800, scoped, tag = 'scratch operand']
  #allocation3 [shape = 'f32[8,128]{1,0:T(8,128)}', space=vmem, size = 0x1000, scoped, tag = 'scratch operand']
  %s0 = inlined_call_operand.vmem [shape: f32[8,8,512], index: 0, kind: input, shape index: {}]
  %s1 = inlined_call_operand.hbm [shape: bf16[128,512], index: 1, kind: input, shape index: {}]
  %s2 = inlined_call_operand.vmem [shape: f32[8,128], index: 2, kind: input, shape index: {}]
  %s3 = inlined_call_operand.vmem [shape: f32[8,128], index: 3, kind: input, shape index: {}]
  %s4 = inlined_call_operand.vmem [shape: bf16[8,8,128], index: 4, kind: output, shape index: {0}]
  %s5 = inlined_call_operand.hbm [shape: f32[8,128], index: 5, kind: output, shape index: {1}]
  %s6 = inlined_call_operand.hbm [shape: f32[8,128], index: 6, kind: output, shape index: {2}]
  %7 = xla_tuple %s4, %s5, %s6
  %s8 = sld [smem:[#allocation0]]
  $region54: #{seq2seq_forward.8} parent=0
    _
  %s10 = ssub.s32 1, %s8
  %s11 = scalar_select 0, %s10, %s8
  $region1: #{seq2seq_forward.8} parent=0
    #allocation4 [shape = 'u8[131072]{0}', space=vmem, size = 0x20000, scoped, tag = 'input window, operand 1, single buffered']
    #allocation5 [shape = 's32[1]{0}', space=sflag, size = 0x4, scoped, tag = 'scoped memory for seq2seq_forward.8']
    #allocation6 [shape = 's32[1]{0}', space=sflag, size = 0x4, scoped, tag = 'scoped memory for seq2seq_forward.8']
    #allocation7 [shape = 'u8[4096]{0}', space=vmem, size = 0x1000, scoped, tag = 'output window, operand 1, single buffered']
    #allocation8 [shape = 'u8[4096]{0}', space=vmem, size = 0x1000, scoped, tag = 'output window, operand 2, single buffered']
    #allocation9 [shape = 's32[1]{0}', space=sflag, size = 0x4, scoped, tag = 'scoped memory for seq2seq_forward.8']
    %12 = vsyncpa [#allocation5], 0
    %13 = vsyncpa [#allocation6], 0
    %14 = vsyncpa [#allocation9], 0
    // Predicated region
    $region2: #{seq2seq_forward.8} parent=1 // pred_check
      _
    $region3: #{seq2seq_forward.8} parent=1 // pred_check_branch
      %16 = sbr.rel (0) target = $region5
    $region4: #{seq2seq_forward.8} parent=1 // pred_region
      _
    $region5: #{seq2seq_forward.8} parent=1 // pred_fallthru
      _
    // Predicated region
    $region6: #{seq2seq_forward.8} parent=1 // pred_check
      _
    $region7: #{seq2seq_forward.8} parent=1 // pred_check_branch
      %18 = sbr.rel (0) target = $region9
    $region8: #{seq2seq_forward.8} parent=1 // pred_region
      %20 = vsyncadd [#allocation5], 0
      %s21 = sshll.u32 %s1, 4
      %s22 = int_to_ptr.hbm [resolvable:$true] %s21
      %s23 = sshll.u32 [#allocation4], 4
      %s24 = int_to_ptr.vmem [resolvable:$true] %s23
      %29 = dma.hbm_to_vmem [thread:$0]  %s22, 4096, %s24, [#allocation5], 256, 256, 16
    $region9: #{seq2seq_forward.8} parent=1 // pred_fallthru
      _
    // Predicated region
    $region10: #{seq2seq_forward.8} parent=1 // pred_check
      _
    $region11: #{seq2seq_forward.8} parent=1 // pred_check_branch
      %31 = sbr.rel (0) target = $region13
    $region12: #{seq2seq_forward.8} parent=1 // pred_region
      _
    $region13: #{seq2seq_forward.8} parent=1 // pred_fallthru
      _
    // Predicated region
    $region14: #{seq2seq_forward.8} parent=1 // pred_check
      _
    $region15: #{seq2seq_forward.8} parent=1 // pred_check_branch
      %33 = sbr.rel (0) target = $region17
    $region16: #{seq2seq_forward.8} parent=1 // pred_region
      _
    $region17: #{seq2seq_forward.8} parent=1 // pred_fallthru
      _
    // Predicated region
    $region18: #{seq2seq_forward.8} parent=1 // pred_check
      _
    $region19: #{seq2seq_forward.8} parent=1 // pred_check_branch
      %35 = sbr.rel (0) target = $region21
    $region20: #{seq2seq_forward.8} parent=1 // pred_region
      %37 = dma.done [#allocation5], 4096
    $region21: #{seq2seq_forward.8} parent=1 // pred_fallthru
      _
    %p38 = scmp.eq.s32.totalorder 0, 0
    // Predicated region
    $region22: #{seq2seq_forward.8} parent=1 // pred_check
      %p39 = pneg %p38
    $region23: #{seq2seq_forward.8} parent=1 // pred_check_branch
      %41 = sbr.rel (%p39) target = $region25
    $region24: #{seq2seq_forward.8} parent=1 // pred_region
      %v42 = vld [vmem:[%s2] sm:$0xff]
      %v43 = vpack.c.bf16 %v42, %v42
      %44 = vst [vmem:[#allocation2] sm:$0xf] %v43
      %v45 = vld [vmem:[%s3] sm:$0xff]
      %46 = vst [vmem:[#allocation3] sm:$0xff] %v45
    $region25: #{seq2seq_forward.8} parent=1 // pred_fallthru
      _
    %v47 = vld [vmem:[#allocation4] sm:$0xff]
    %v48 = vld [vmem:[#allocation4 + $0x8] sm:$0xff]
    %v49 = vld [vmem:[#allocation4 + $0x10] sm:$0xff]
    %v50 = vld [vmem:[#allocation4 + $0x18] sm:$0xff]
    %v51 = vld [vmem:[#allocation4 + $0x20] sm:$0xff]
    %v52 = vld [vmem:[#allocation4 + $0x28] sm:$0xff]
    %v53 = vld [vmem:[#allocation4 + $0x30] sm:$0xff]
    %v54 = vld [vmem:[#allocation4 + $0x38] sm:$0xff]
    %v55 = vld [vmem:[#allocation4 + $0x40] sm:$0xff]
    %v56 = vld [vmem:[#allocation4 + $0x48] sm:$0xff]
    %v57 = vld [vmem:[#allocation4 + $0x50] sm:$0xff]
    %v58 = vld [vmem:[#allocation4 + $0x58] sm:$0xff]
    %v59 = vld [vmem:[#allocation4 + $0x60] sm:$0xff]
    %v60 = vld [vmem:[#allocation4 + $0x68] sm:$0xff]
    %v61 = vld [vmem:[#allocation4 + $0x70] sm:$0xff]
    %v62 = vld [vmem:[#allocation4 + $0x78] sm:$0xff]
    %v63 = vld [vmem:[#allocation4 + $0x80] sm:$0xff]
    %v64 = vld [vmem:[#allocation4 + $0x88] sm:$0xff]
    %v65 = vld [vmem:[#allocation4 + $0x90] sm:$0xff]
    %v66 = vld [vmem:[#allocation4 + $0x98] sm:$0xff]
    %v67 = vld [vmem:[#allocation4 + $0xa0] sm:$0xff]
    %v68 = vld [vmem:[#allocation4 + $0xa8] sm:$0xff]
    %v69 = vld [vmem:[#allocation4 + $0xb0] sm:$0xff]
    %v70 = vld [vmem:[#allocation4 + $0xb8] sm:$0xff]
    %v71 = vld [vmem:[#allocation4 + $0xc0] sm:$0xff]
    %v72 = vld [vmem:[#allocation4 + $0xc8] sm:$0xff]
    %v73 = vld [vmem:[#allocation4 + $0xd0] sm:$0xff]
    %v74 = vld [vmem:[#allocation4 + $0xd8] sm:$0xff]
    %v75 = vld [vmem:[#allocation4 + $0xe0] sm:$0xff]
    %v76 = vld [vmem:[#allocation4 + $0xe8] sm:$0xff]
    %v77 = vld [vmem:[#allocation4 + $0xf0] sm:$0xff]
    %v78 = vld [vmem:[#allocation4 + $0xf8] sm:$0xff]
    %v79 = vld [vmem:[#allocation2] sm:$0xf]
    %v80 = vld [vmem:[#allocation3] sm:$0xff]
    %v81 = vld [vmem:[%s0] sm:$0xff]
    %v82 = vld [vmem:[%s0 + $0x8] sm:$0xff]
    %v83 = vld [vmem:[%s0 + $0x10] sm:$0xff]
    %v84 = vld [vmem:[%s0 + $0x18] sm:$0xff]
    %v117 = vunpack.c.l.b16 %v47
    %v118 = vunpack.c.h.b16 %v47
    %v119 = vunpack.c.l.b16 %v48
    %v120 = vunpack.c.h.b16 %v48
    %v121 = vunpack.c.l.b16 %v49
    %v122 = vunpack.c.h.b16 %v49
    %v123 = vunpack.c.l.b16 %v50
    %v124 = vunpack.c.h.b16 %v50
    %v125 = vunpack.c.l.b16 %v51
    %v126 = vunpack.c.h.b16 %v51
    %v127 = vunpack.c.l.b16 %v52
    %v128 = vunpack.c.h.b16 %v52
    %v129 = vunpack.c.l.b16 %v53
    %v130 = vunpack.c.h.b16 %v53
    %v131 = vunpack.c.l.b16 %v54
    %v132 = vunpack.c.h.b16 %v54
    %v133 = vunpack.c.l.b16 %v55
    %v134 = vunpack.c.h.b16 %v55
    %v135 = vunpack.c.l.b16 %v56
    %v136 = vunpack.c.h.b16 %v56
    %v137 = vunpack.c.l.b16 %v57
    %v138 = vunpack.c.h.b16 %v57
    %v139 = vunpack.c.l.b16 %v58
    %v140 = vunpack.c.h.b16 %v58
    %v141 = vunpack.c.l.b16 %v59
    %v142 = vunpack.c.h.b16 %v59
    %v143 = vunpack.c.l.b16 %v60
    %v144 = vunpack.c.h.b16 %v60
    %v145 = vunpack.c.l.b16 %v61
    %v146 = vunpack.c.h.b16 %v61
    %v147 = vunpack.c.l.b16 %v62
    %v148 = vunpack.c.h.b16 %v62
    %v149 = vunpack.c.l.b16 %v63
    %v150 = vunpack.c.h.b16 %v63
    %v151 = vunpack.c.l.b16 %v64
    %v152 = vunpack.c.h.b16 %v64
    %v153 = vunpack.c.l.b16 %v65
    %v154 = vunpack.c.h.b16 %v65
    %v155 = vunpack.c.l.b16 %v66
    %v156 = vunpack.c.h.b16 %v66
    %v157 = vunpack.c.l.b16 %v67
    %v158 = vunpack.c.h.b16 %v67
    %v159 = vunpack.c.l.b16 %v68
    %v160 = vunpack.c.h.b16 %v68
    %v161 = vunpack.c.l.b16 %v69
    %v162 = vunpack.c.h.b16 %v69
    %v163 = vunpack.c.l.b16 %v70
    %v164 = vunpack.c.h.b16 %v70
    %v165 = vunpack.c.l.b16 %v71
    %v166 = vunpack.c.h.b16 %v71
    %v167 = vunpack.c.l.b16 %v72
    %v168 = vunpack.c.h.b16 %v72
    %v169 = vunpack.c.l.b16 %v73
    %v170 = vunpack.c.h.b16 %v73
    %v171 = vunpack.c.l.b16 %v74
    %v172 = vunpack.c.h.b16 %v74
    %v173 = vunpack.c.l.b16 %v75
    %v174 = vunpack.c.h.b16 %v75
    %v175 = vunpack.c.l.b16 %v76
    %v176 = vunpack.c.h.b16 %v76
    %v177 = vunpack.c.l.b16 %v77
    %v178 = vunpack.c.h.b16 %v77
    %v179 = vunpack.c.l.b16 %v78
    %v180 = vunpack.c.h.b16 %v78
    %v181 = vpack.c.b16 %v121, %v117
    %v182 = vpack.c.b16 %v122, %v118
    %v183 = vpack.c.b16 %v123, %v119
    %v184 = vpack.c.b16 %v124, %v120
    %v185 = vpack.c.b16 %v129, %v125
    %v186 = vpack.c.b16 %v130, %v126
    %v187 = vpack.c.b16 %v131, %v127
    %v188 = vpack.c.b16 %v132, %v128
    %v189 = vpack.c.b16 %v137, %v133
    %v190 = vpack.c.b16 %v138, %v134
    %v191 = vpack.c.b16 %v139, %v135
    %v192 = vpack.c.b16 %v140, %v136
    %v193 = vpack.c.b16 %v145, %v141
    %v194 = vpack.c.b16 %v146, %v142
    %v195 = vpack.c.b16 %v147, %v143
    %v196 = vpack.c.b16 %v148, %v144
    %v197 = vpack.c.b16 %v153, %v149
    %v198 = vpack.c.b16 %v154, %v150
    %v199 = vpack.c.b16 %v155, %v151
    %v200 = vpack.c.b16 %v156, %v152
    %v201 = vpack.c.b16 %v161, %v157
    %v202 = vpack.c.b16 %v162, %v158
    %v203 = vpack.c.b16 %v163, %v159
    %v204 = vpack.c.b16 %v164, %v160
    %v205 = vpack.c.b16 %v169, %v165
    %v206 = vpack.c.b16 %v170, %v166
    %v207 = vpack.c.b16 %v171, %v167
    %v208 = vpack.c.b16 %v172, %v168
    %v209 = vpack.c.b16 %v177, %v173
    %v210 = vpack.c.b16 %v178, %v174
    %v211 = vpack.c.b16 %v179, %v175
    %v212 = vpack.c.b16 %v180, %v176
    %245 = vmatpush.bf16.msra.mxu0 %v209
    %246 = vmatpush.bf16.msra.mxu0 %v205
    %247 = vmatpush.bf16.msra.mxu0 %v201
    %248 = vmatpush.bf16.msra.mxu0 %v197
    %249 = vmatpush.bf16.msra.mxu0 %v193
    %250 = vmatpush.bf16.msra.mxu0 %v189
    %251 = vmatpush.bf16.msra.mxu0 %v185
    %252 = vmatpush.bf16.msra.mxu0 %v181
    %253 = vmatmul.bf16.gmra.mxu0 %v79
    %v254 = vpop.f32.mrf.mxu0
    %v255 = vadd.f32 0.0, %v254
    %v256 = vpop.f32.mrf.mxu0
    %257 = vdwg.mxu0
    %258 = vmatpush.bf16.msra.mxu0 %v210
    %259 = vmatpush.bf16.msra.mxu0 %v206
    %260 = vmatpush.bf16.msra.mxu0 %v202
    %261 = vmatpush.bf16.msra.mxu0 %v198
    %262 = vmatpush.bf16.msra.mxu0 %v194
    %263 = vmatpush.bf16.msra.mxu0 %v190
    %264 = vmatpush.bf16.msra.mxu0 %v186
    %265 = vmatpush.bf16.msra.mxu0 %v182
    %266 = vmatmul.bf16.gmra.mxu0 %v79
    %v267 = vpop.f32.mrf.mxu0
    %v268 = vadd.f32 0.0, %v267
    %v269 = vpop.f32.mrf.mxu0
    %270 = vdwg.mxu0
    %271 = vmatpush.bf16.msra.mxu0 %v211
    %272 = vmatpush.bf16.msra.mxu0 %v207
    %273 = vmatpush.bf16.msra.mxu0 %v203
    %274 = vmatpush.bf16.msra.mxu0 %v199
    %275 = vmatpush.bf16.msra.mxu0 %v195
    %276 = vmatpush.bf16.msra.mxu0 %v191
    %277 = vmatpush.bf16.msra.mxu0 %v187
    %278 = vmatpush.bf16.msra.mxu0 %v183
    %279 = vmatmul.bf16.gmra.mxu0 %v79
    %v280 = vpop.f32.mrf.mxu0
    %v281 = vadd.f32 0.0, %v280
    %v282 = vpop.f32.mrf.mxu0
    %283 = vdwg.mxu0
    %284 = vmatpush.bf16.msra.mxu0 %v212
    %285 = vmatpush.bf16.msra.mxu0 %v208
    %286 = vmatpush.bf16.msra.mxu0 %v204
    %287 = vmatpush.bf16.msra.mxu0 %v200
    %288 = vmatpush.bf16.msra.mxu0 %v196
    %289 = vmatpush.bf16.msra.mxu0 %v192
    %290 = vmatpush.bf16.msra.mxu0 %v188
    %291 = vmatpush.bf16.msra.mxu0 %v184
    %292 = vmatmul.bf16.gmra.mxu0 %v79
    %v293 = vpop.f32.mrf.mxu0
    %v294 = vadd.f32 0.0, %v293
    %v295 = vpop.f32.mrf.mxu0
    %296 = vdwg.mxu0
    %v297 = vadd.f32 %v81, %v255
    %v298 = vadd.f32 %v82, %v268
    %v299 = vadd.f32 %v83, %v281
    %v300 = vadd.f32 %v84, %v294
    %v301 = vmul.f32 %v297, 0.5
    %v302 = vtanh.pop %v301
    %v303 = vmul.f32 %v302, 0.5
    %v304 = vadd.f32 %v303, 0.5
    %v305 = vmul.f32 %v298, 0.5
    %v306 = vtanh.pop %v305
    %v307 = vmul.f32 %v306, 0.5
    %v308 = vadd.f32 %v307, 0.5
    %v309 = vtanh.pop %v299
    %v310 = vmul.f32 %v300, 0.5
    %v311 = vtanh.pop %v310
    %v312 = vmul.f32 %v311, 0.5
    %v313 = vadd.f32 %v312, 0.5
    %v314 = vmul.f32 %v308, %v80
    %v315 = vmul.f32 %v304, %v309
    %v316 = vadd.f32 %v314, %v315
    %v317 = vtanh.pop %v316
    %v318 = vmul.f32 %v313, %v317
    %v319 = vpack.c.bf16 %v318, %v318
    %320 = vst [vmem:[%s4] sm:$0xf] %v319
    %s321 = scalar_lea.vmem %s0, 32
    %v322 = vld [vmem:[%s321] sm:$0xff]
    %v323 = vld [vmem:[%s321 + $0x8] sm:$0xff]
    %v324 = vld [vmem:[%s321 + $0x10] sm:$0xff]
    %v325 = vld [vmem:[%s321 + $0x18] sm:$0xff]
    %326 = vmatpush.bf16.msra.mxu0 %v209
    %327 = vmatpush.bf16.msra.mxu0 %v205
    %328 = vmatpush.bf16.msra.mxu0 %v201
    %329 = vmatpush.bf16.msra.mxu0 %v197
    %330 = vmatpush.bf16.msra.mxu0 %v193
    %331 = vmatpush.bf16.msra.mxu0 %v189
    %332 = vmatpush.bf16.msra.mxu0 %v185
    %333 = vmatpush.bf16.msra.mxu0 %v181
    %334 = vmatmul.bf16.gmra.mxu0 %v319
    %v335 = vpop.f32.mrf.mxu0
    %v336 = vadd.f32 0.0, %v335
    %v337 = vpop.f32.mrf.mxu0
    %338 = vdwg.mxu0
    %339 = vmatpush.bf16.msra.mxu0 %v210
    %340 = vmatpush.bf16.msra.mxu0 %v206
    %341 = vmatpush.bf16.msra.mxu0 %v202
    %342 = vmatpush.bf16.msra.mxu0 %v198
    %343 = vmatpush.bf16.msra.mxu0 %v194
    %344 = vmatpush.bf16.msra.mxu0 %v190
    %345 = vmatpush.bf16.msra.mxu0 %v186
    %346 = vmatpush.bf16.msra.mxu0 %v182
    %347 = vmatmul.bf16.gmra.mxu0 %v319
    %v348 = vpop.f32.mrf.mxu0
    %v349 = vadd.f32 0.0, %v348
    %v350 = vpop.f32.mrf.mxu0
    %351 = vdwg.mxu0
    %352 = vmatpush.bf16.msra.mxu0 %v211
    %353 = vmatpush.bf16.msra.mxu0 %v207
    %354 = vmatpush.bf16.msra.mxu0 %v203
    %355 = vmatpush.bf16.msra.mxu0 %v199
    %356 = vmatpush.bf16.msra.mxu0 %v195
    %357 = vmatpush.bf16.msra.mxu0 %v191
    %358 = vmatpush.bf16.msra.mxu0 %v187
    %359 = vmatpush.bf16.msra.mxu0 %v183
    %360 = vmatmul.bf16.gmra.mxu0 %v319
    %v361 = vpop.f32.mrf.mxu0
    %v362 = vadd.f32 0.0, %v361
    %v363 = vpop.f32.mrf.mxu0
    %364 = vdwg.mxu0
    %365 = vmatpush.bf16.msra.mxu0 %v212
    %366 = vmatpush.bf16.msra.mxu0 %v208
    %367 = vmatpush.bf16.msra.mxu0 %v204
    %368 = vmatpush.bf16.msra.mxu0 %v200
    %369 = vmatpush.bf16.msra.mxu0 %v196
    %370 = vmatpush.bf16.msra.mxu0 %v192
    %371 = vmatpush.bf16.msra.mxu0 %v188
    %372 = vmatpush.bf16.msra.mxu0 %v184
    %373 = vmatmul.bf16.gmra.mxu0 %v319
    %v374 = vpop.f32.mrf.mxu0
    %v375 = vadd.f32 0.0, %v374
    %v376 = vpop.f32.mrf.mxu0
    %377 = vdwg.mxu0
    %v378 = vadd.f32 %v322, %v336
    %v379 = vadd.f32 %v323, %v349
    %v380 = vadd.f32 %v324, %v362
    %v381 = vadd.f32 %v325, %v375
    %v382 = vmul.f32 %v378, 0.5
    %v383 = vtanh.pop %v382
    %v384 = vmul.f32 %v383, 0.5
    %v385 = vadd.f32 %v384, 0.5
    %v386 = vmul.f32 %v379, 0.5
    %v387 = vtanh.pop %v386
    %v388 = vmul.f32 %v387, 0.5
    %v389 = vadd.f32 %v388, 0.5
    %v390 = vtanh.pop %v380
    %v391 = vmul.f32 %v381, 0.5
    %v392 = vtanh.pop %v391
    %v393 = vmul.f32 %v392, 0.5
    %v394 = vadd.f32 %v393, 0.5
    %v395 = vmul.f32 %v389, %v316
    %v396 = vmul.f32 %v385, %v390
    %v397 = vadd.f32 %v395, %v396
    %v398 = vtanh.pop %v397
    %v399 = vmul.f32 %v394, %v398
    %v400 = vpack.c.bf16 %v399, %v399
    %s401 = scalar_lea.vmem %s4, 4
    %402 = vst [vmem:[%s401] sm:$0xf] %v400
    %s403 = scalar_lea.vmem %s0, 64
    %v404 = vld [vmem:[%s403] sm:$0xff]
    %v405 = vld [vmem:[%s403 + $0x8] sm:$0xff]
    %v406 = vld [vmem:[%s403 + $0x10] sm:$0xff]
    %v407 = vld [vmem:[%s403 + $0x18] sm:$0xff]
    %408 = vmatpush.bf16.msra.mxu0 %v209
    %409 = vmatpush.bf16.msra.mxu0 %v205
    %410 = vmatpush.bf16.msra.mxu0 %v201
    %411 = vmatpush.bf16.msra.mxu0 %v197
    %412 = vmatpush.bf16.msra.mxu0 %v193
    %413 = vmatpush.bf16.msra.mxu0 %v189
    %414 = vmatpush.bf16.msra.mxu0 %v185
    %415 = vmatpush.bf16.msra.mxu0 %v181
    %416 = vmatmul.bf16.gmra.mxu0 %v400
    %v417 = vpop.f32.mrf.mxu0
    %v418 = vadd.f32 0.0, %v417
    %v419 = vpop.f32.mrf.mxu0
    %420 = vdwg.mxu0
    %421 = vmatpush.bf16.msra.mxu0 %v210
    %422 = vmatpush.bf16.msra.mxu0 %v206
    %423 = vmatpush.bf16.msra.mxu0 %v202
    %424 = vmatpush.bf16.msra.mxu0 %v198
    %425 = vmatpush.bf16.msra.mxu0 %v194
    %426 = vmatpush.bf16.msra.mxu0 %v190
    %427 = vmatpush.bf16.msra.mxu0 %v186
    %428 = vmatpush.bf16.msra.mxu0 %v182
    %429 = vmatmul.bf16.gmra.mxu0 %v400
    %v430 = vpop.f32.mrf.mxu0
    %v431 = vadd.f32 0.0, %v430
    %v432 = vpop.f32.mrf.mxu0
    %433 = vdwg.mxu0
    %434 = vmatpush.bf16.msra.mxu0 %v211
    %435 = vmatpush.bf16.msra.mxu0 %v207
    %436 = vmatpush.bf16.msra.mxu0 %v203
    %437 = vmatpush.bf16.msra.mxu0 %v199
    %438 = vmatpush.bf16.msra.mxu0 %v195
    %439 = vmatpush.bf16.msra.mxu0 %v191
    %440 = vmatpush.bf16.msra.mxu0 %v187
    %441 = vmatpush.bf16.msra.mxu0 %v183
    %442 = vmatmul.bf16.gmra.mxu0 %v400
    %v443 = vpop.f32.mrf.mxu0
    %v444 = vadd.f32 0.0, %v443
    %v445 = vpop.f32.mrf.mxu0
    %446 = vdwg.mxu0
    %447 = vmatpush.bf16.msra.mxu0 %v212
    %448 = vmatpush.bf16.msra.mxu0 %v208
    %449 = vmatpush.bf16.msra.mxu0 %v204
    %450 = vmatpush.bf16.msra.mxu0 %v200
    %451 = vmatpush.bf16.msra.mxu0 %v196
    %452 = vmatpush.bf16.msra.mxu0 %v192
    %453 = vmatpush.bf16.msra.mxu0 %v188
    %454 = vmatpush.bf16.msra.mxu0 %v184
    %455 = vmatmul.bf16.gmra.mxu0 %v400
    %v456 = vpop.f32.mrf.mxu0
    %v457 = vadd.f32 0.0, %v456
    %v458 = vpop.f32.mrf.mxu0
    %459 = vdwg.mxu0
    %v460 = vadd.f32 %v404, %v418
    %v461 = vadd.f32 %v405, %v431
    %v462 = vadd.f32 %v406, %v444
    %v463 = vadd.f32 %v407, %v457
    %v464 = vmul.f32 %v460, 0.5
    %v465 = vtanh.pop %v464
    %v466 = vmul.f32 %v465, 0.5
    %v467 = vadd.f32 %v466, 0.5
    %v468 = vmul.f32 %v461, 0.5
    %v469 = vtanh.pop %v468
    %v470 = vmul.f32 %v469, 0.5
    %v471 = vadd.f32 %v470, 0.5
    %v472 = vtanh.pop %v462
    %v473 = vmul.f32 %v463, 0.5
    %v474 = vtanh.pop %v473
    %v475 = vmul.f32 %v474, 0.5
    %v476 = vadd.f32 %v475, 0.5
    %v477 = vmul.f32 %v471, %v397
    %v478 = vmul.f32 %v467, %v472
    %v479 = vadd.f32 %v477, %v478
    %v480 = vtanh.pop %v479
    %v481 = vmul.f32 %v476, %v480
    %v482 = vpack.c.bf16 %v481, %v481
    %s483 = scalar_lea.vmem %s4, 8
    %484 = vst [vmem:[%s483] sm:$0xf] %v482
    %s485 = scalar_lea.vmem %s0, 96
    %v486 = vld [vmem:[%s485] sm:$0xff]
    %v487 = vld [vmem:[%s485 + $0x8] sm:$0xff]
    %v488 = vld [vmem:[%s485 + $0x10] sm:$0xff]
    %v489 = vld [vmem:[%s485 + $0x18] sm:$0xff]
    %490 = vmatpush.bf16.msra.mxu0 %v209
    %491 = vmatpush.bf16.msra.mxu0 %v205
    %492 = vmatpush.bf16.msra.mxu0 %v201
    %493 = vmatpush.bf16.msra.mxu0 %v197
    %494 = vmatpush.bf16.msra.mxu0 %v193
    %495 = vmatpush.bf16.msra.mxu0 %v189
    %496 = vmatpush.bf16.msra.mxu0 %v185
    %497 = vmatpush.bf16.msra.mxu0 %v181
    %498 = vmatmul.bf16.gmra.mxu0 %v482
    %v499 = vpop.f32.mrf.mxu0
    %v500 = vadd.f32 0.0, %v499
    %v501 = vpop.f32.mrf.mxu0
    %502 = vdwg.mxu0
    %503 = vmatpush.bf16.msra.mxu0 %v210
    %504 = vmatpush.bf16.msra.mxu0 %v206
    %505 = vmatpush.bf16.msra.mxu0 %v202
    %506 = vmatpush.bf16.msra.mxu0 %v198
    %507 = vmatpush.bf16.msra.mxu0 %v194
    %508 = vmatpush.bf16.msra.mxu0 %v190
    %509 = vmatpush.bf16.msra.mxu0 %v186
    %510 = vmatpush.bf16.msra.mxu0 %v182
    %511 = vmatmul.bf16.gmra.mxu0 %v482
    %v512 = vpop.f32.mrf.mxu0
    %v513 = vadd.f32 0.0, %v512
    %v514 = vpop.f32.mrf.mxu0
    %515 = vdwg.mxu0
    %516 = vmatpush.bf16.msra.mxu0 %v211
    %517 = vmatpush.bf16.msra.mxu0 %v207
    %518 = vmatpush.bf16.msra.mxu0 %v203
    %519 = vmatpush.bf16.msra.mxu0 %v199
    %520 = vmatpush.bf16.msra.mxu0 %v195
    %521 = vmatpush.bf16.msra.mxu0 %v191
    %522 = vmatpush.bf16.msra.mxu0 %v187
    %523 = vmatpush.bf16.msra.mxu0 %v183
    %524 = vmatmul.bf16.gmra.mxu0 %v482
    %v525 = vpop.f32.mrf.mxu0
    %v526 = vadd.f32 0.0, %v525
    %v527 = vpop.f32.mrf.mxu0
    %528 = vdwg.mxu0
    %529 = vmatpush.bf16.msra.mxu0 %v212
    %530 = vmatpush.bf16.msra.mxu0 %v208
    %531 = vmatpush.bf16.msra.mxu0 %v204
    %532 = vmatpush.bf16.msra.mxu0 %v200
    %533 = vmatpush.bf16.msra.mxu0 %v196
    %534 = vmatpush.bf16.msra.mxu0 %v192
    %535 = vmatpush.bf16.msra.mxu0 %v188
    %536 = vmatpush.bf16.msra.mxu0 %v184
    %537 = vmatmul.bf16.gmra.mxu0 %v482
    %v538 = vpop.f32.mrf.mxu0
    %v539 = vadd.f32 0.0, %v538
    %v540 = vpop.f32.mrf.mxu0
    %541 = vdwg.mxu0
    %v542 = vadd.f32 %v486, %v500
    %v543 = vadd.f32 %v487, %v513
    %v544 = vadd.f32 %v488, %v526
    %v545 = vadd.f32 %v489, %v539
    %v546 = vmul.f32 %v542, 0.5
    %v547 = vtanh.pop %v546
    %v548 = vmul.f32 %v547, 0.5
    %v549 = vadd.f32 %v548, 0.5
    %v550 = vmul.f32 %v543, 0.5
    %v551 = vtanh.pop %v550
    %v552 = vmul.f32 %v551, 0.5
    %v553 = vadd.f32 %v552, 0.5
    %v554 = vtanh.pop %v544
    %v555 = vmul.f32 %v545, 0.5
    %v556 = vtanh.pop %v555
    %v557 = vmul.f32 %v556, 0.5
    %v558 = vadd.f32 %v557, 0.5
    %v559 = vmul.f32 %v553, %v479
    %v560 = vmul.f32 %v549, %v554
    %v561 = vadd.f32 %v559, %v560
    %v562 = vtanh.pop %v561
    %v563 = vmul.f32 %v558, %v562
    %v564 = vpack.c.bf16 %v563, %v563
    %s565 = scalar_lea.vmem %s4, 12
    %566 = vst [vmem:[%s565] sm:$0xf] %v564
    %s567 = scalar_lea.vmem %s0, 128
    %v568 = vld [vmem:[%s567] sm:$0xff]
    %v569 = vld [vmem:[%s567 + $0x8] sm:$0xff]
    %v570 = vld [vmem:[%s567 + $0x10] sm:$0xff]
    %v571 = vld [vmem:[%s567 + $0x18] sm:$0xff]
    %572 = vmatpush.bf16.msra.mxu0 %v209
    %573 = vmatpush.bf16.msra.mxu0 %v205
    %574 = vmatpush.bf16.msra.mxu0 %v201
    %575 = vmatpush.bf16.msra.mxu0 %v197
    %576 = vmatpush.bf16.msra.mxu0 %v193
    %577 = vmatpush.bf16.msra.mxu0 %v189
    %578 = vmatpush.bf16.msra.mxu0 %v185
    %579 = vmatpush.bf16.msra.mxu0 %v181
    %580 = vmatmul.bf16.gmra.mxu0 %v564
    %v581 = vpop.f32.mrf.mxu0
    %v582 = vadd.f32 0.0, %v581
    %v583 = vpop.f32.mrf.mxu0
    %584 = vdwg.mxu0
    %585 = vmatpush.bf16.msra.mxu0 %v210
    %586 = vmatpush.bf16.msra.mxu0 %v206
    %587 = vmatpush.bf16.msra.mxu0 %v202
    %588 = vmatpush.bf16.msra.mxu0 %v198
    %589 = vmatpush.bf16.msra.mxu0 %v194
    %590 = vmatpush.bf16.msra.mxu0 %v190
    %591 = vmatpush.bf16.msra.mxu0 %v186
    %592 = vmatpush.bf16.msra.mxu0 %v182
    %593 = vmatmul.bf16.gmra.mxu0 %v564
    %v594 = vpop.f32.mrf.mxu0
    %v595 = vadd.f32 0.0, %v594
    %v596 = vpop.f32.mrf.mxu0
    %597 = vdwg.mxu0
    %598 = vmatpush.bf16.msra.mxu0 %v211
    %599 = vmatpush.bf16.msra.mxu0 %v207
    %600 = vmatpush.bf16.msra.mxu0 %v203
    %601 = vmatpush.bf16.msra.mxu0 %v199
    %602 = vmatpush.bf16.msra.mxu0 %v195
    %603 = vmatpush.bf16.msra.mxu0 %v191
    %604 = vmatpush.bf16.msra.mxu0 %v187
    %605 = vmatpush.bf16.msra.mxu0 %v183
    %606 = vmatmul.bf16.gmra.mxu0 %v564
    %v607 = vpop.f32.mrf.mxu0
    %v608 = vadd.f32 0.0, %v607
    %v609 = vpop.f32.mrf.mxu0
    %610 = vdwg.mxu0
    %611 = vmatpush.bf16.msra.mxu0 %v212
    %612 = vmatpush.bf16.msra.mxu0 %v208
    %613 = vmatpush.bf16.msra.mxu0 %v204
    %614 = vmatpush.bf16.msra.mxu0 %v200
    %615 = vmatpush.bf16.msra.mxu0 %v196
    %616 = vmatpush.bf16.msra.mxu0 %v192
    %617 = vmatpush.bf16.msra.mxu0 %v188
    %618 = vmatpush.bf16.msra.mxu0 %v184
    %619 = vmatmul.bf16.gmra.mxu0 %v564
    %v620 = vpop.f32.mrf.mxu0
    %v621 = vadd.f32 0.0, %v620
    %v622 = vpop.f32.mrf.mxu0
    %623 = vdwg.mxu0
    %v624 = vadd.f32 %v568, %v582
    %v625 = vadd.f32 %v569, %v595
    %v626 = vadd.f32 %v570, %v608
    %v627 = vadd.f32 %v571, %v621
    %v628 = vmul.f32 %v624, 0.5
    %v629 = vtanh.pop %v628
    %v630 = vmul.f32 %v629, 0.5
    %v631 = vadd.f32 %v630, 0.5
    %v632 = vmul.f32 %v625, 0.5
    %v633 = vtanh.pop %v632
    %v634 = vmul.f32 %v633, 0.5
    %v635 = vadd.f32 %v634, 0.5
    %v636 = vtanh.pop %v626
    %v637 = vmul.f32 %v627, 0.5
    %v638 = vtanh.pop %v637
    %v639 = vmul.f32 %v638, 0.5
    %v640 = vadd.f32 %v639, 0.5
    %v641 = vmul.f32 %v635, %v561
    %v642 = vmul.f32 %v631, %v636
    %v643 = vadd.f32 %v641, %v642
    %v644 = vtanh.pop %v643
    %v645 = vmul.f32 %v640, %v644
    %v646 = vpack.c.bf16 %v645, %v645
    %s647 = scalar_lea.vmem %s4, 16
    %648 = vst [vmem:[%s647] sm:$0xf] %v646
    %s649 = scalar_lea.vmem %s0, 160
    %v650 = vld [vmem:[%s649] sm:$0xff]
    %v651 = vld [vmem:[%s649 + $0x8] sm:$0xff]
    %v652 = vld [vmem:[%s649 + $0x10] sm:$0xff]
    %v653 = vld [vmem:[%s649 + $0x18] sm:$0xff]
    %654 = vmatpush.bf16.msra.mxu0 %v209
    %655 = vmatpush.bf16.msra.mxu0 %v205
    %656 = vmatpush.bf16.msra.mxu0 %v201
    %657 = vmatpush.bf16.msra.mxu0 %v197
    %658 = vmatpush.bf16.msra.mxu0 %v193
    %659 = vmatpush.bf16.msra.mxu0 %v189
    %660 = vmatpush.bf16.msra.mxu0 %v185
    %661 = vmatpush.bf16.msra.mxu0 %v181
    %662 = vmatmul.bf16.gmra.mxu0 %v646
    %v663 = vpop.f32.mrf.mxu0
    %v664 = vadd.f32 0.0, %v663
    %v665 = vpop.f32.mrf.mxu0
    %666 = vdwg.mxu0
    %667 = vmatpush.bf16.msra.mxu0 %v210
    %668 = vmatpush.bf16.msra.mxu0 %v206
    %669 = vmatpush.bf16.msra.mxu0 %v202
    %670 = vmatpush.bf16.msra.mxu0 %v198
    %671 = vmatpush.bf16.msra.mxu0 %v194
    %672 = vmatpush.bf16.msra.mxu0 %v190
    %673 = vmatpush.bf16.msra.mxu0 %v186
    %674 = vmatpush.bf16.msra.mxu0 %v182
    %675 = vmatmul.bf16.gmra.mxu0 %v646
    %v676 = vpop.f32.mrf.mxu0
    %v677 = vadd.f32 0.0, %v676
    %v678 = vpop.f32.mrf.mxu0
    %679 = vdwg.mxu0
    %680 = vmatpush.bf16.msra.mxu0 %v211
    %681 = vmatpush.bf16.msra.mxu0 %v207
    %682 = vmatpush.bf16.msra.mxu0 %v203
    %683 = vmatpush.bf16.msra.mxu0 %v199
    %684 = vmatpush.bf16.msra.mxu0 %v195
    %685 = vmatpush.bf16.msra.mxu0 %v191
    %686 = vmatpush.bf16.msra.mxu0 %v187
    %687 = vmatpush.bf16.msra.mxu0 %v183
    %688 = vmatmul.bf16.gmra.mxu0 %v646
    %v689 = vpop.f32.mrf.mxu0
    %v690 = vadd.f32 0.0, %v689
    %v691 = vpop.f32.mrf.mxu0
    %692 = vdwg.mxu0
    %693 = vmatpush.bf16.msra.mxu0 %v212
    %694 = vmatpush.bf16.msra.mxu0 %v208
    %695 = vmatpush.bf16.msra.mxu0 %v204
    %696 = vmatpush.bf16.msra.mxu0 %v200
    %697 = vmatpush.bf16.msra.mxu0 %v196
    %698 = vmatpush.bf16.msra.mxu0 %v192
    %699 = vmatpush.bf16.msra.mxu0 %v188
    %700 = vmatpush.bf16.msra.mxu0 %v184
    %701 = vmatmul.bf16.gmra.mxu0 %v646
    %v702 = vpop.f32.mrf.mxu0
    %v703 = vadd.f32 0.0, %v702
    %v704 = vpop.f32.mrf.mxu0
    %705 = vdwg.mxu0
    %v706 = vadd.f32 %v650, %v664
    %v707 = vadd.f32 %v651, %v677
    %v708 = vadd.f32 %v652, %v690
    %v709 = vadd.f32 %v653, %v703
    %v710 = vmul.f32 %v706, 0.5
    %v711 = vtanh.pop %v710
    %v712 = vmul.f32 %v711, 0.5
    %v713 = vadd.f32 %v712, 0.5
    %v714 = vmul.f32 %v707, 0.5
    %v715 = vtanh.pop %v714
    %v716 = vmul.f32 %v715, 0.5
    %v717 = vadd.f32 %v716, 0.5
    %v718 = vtanh.pop %v708
    %v719 = vmul.f32 %v709, 0.5
    %v720 = vtanh.pop %v719
    %v721 = vmul.f32 %v720, 0.5
    %v722 = vadd.f32 %v721, 0.5
    %v723 = vmul.f32 %v717, %v643
    %v724 = vmul.f32 %v713, %v718
    %v725 = vadd.f32 %v723, %v724
    %v726 = vtanh.pop %v725
    %v727 = vmul.f32 %v722, %v726
    %v728 = vpack.c.bf16 %v727, %v727
    %s729 = scalar_lea.vmem %s4, 20
    %730 = vst [vmem:[%s729] sm:$0xf] %v728
    %s731 = scalar_lea.vmem %s0, 192
    %v732 = vld [vmem:[%s731] sm:$0xff]
    %v733 = vld [vmem:[%s731 + $0x8] sm:$0xff]
    %v734 = vld [vmem:[%s731 + $0x10] sm:$0xff]
    %v735 = vld [vmem:[%s731 + $0x18] sm:$0xff]
    %736 = vmatpush.bf16.msra.mxu0 %v209
    %737 = vmatpush.bf16.msra.mxu0 %v205
    %738 = vmatpush.bf16.msra.mxu0 %v201
    %739 = vmatpush.bf16.msra.mxu0 %v197
    %740 = vmatpush.bf16.msra.mxu0 %v193
    %741 = vmatpush.bf16.msra.mxu0 %v189
    %742 = vmatpush.bf16.msra.mxu0 %v185
    %743 = vmatpush.bf16.msra.mxu0 %v181
    %744 = vmatmul.bf16.gmra.mxu0 %v728
    %v745 = vpop.f32.mrf.mxu0
    %v746 = vadd.f32 0.0, %v745
    %v747 = vpop.f32.mrf.mxu0
    %748 = vdwg.mxu0
    %749 = vmatpush.bf16.msra.mxu0 %v210
    %750 = vmatpush.bf16.msra.mxu0 %v206
    %751 = vmatpush.bf16.msra.mxu0 %v202
    %752 = vmatpush.bf16.msra.mxu0 %v198
    %753 = vmatpush.bf16.msra.mxu0 %v194
    %754 = vmatpush.bf16.msra.mxu0 %v190
    %755 = vmatpush.bf16.msra.mxu0 %v186
    %756 = vmatpush.bf16.msra.mxu0 %v182
    %757 = vmatmul.bf16.gmra.mxu0 %v728
    %v758 = vpop.f32.mrf.mxu0
    %v759 = vadd.f32 0.0, %v758
    %v760 = vpop.f32.mrf.mxu0
    %761 = vdwg.mxu0
    %762 = vmatpush.bf16.msra.mxu0 %v211
    %763 = vmatpush.bf16.msra.mxu0 %v207
    %764 = vmatpush.bf16.msra.mxu0 %v203
    %765 = vmatpush.bf16.msra.mxu0 %v199
    %766 = vmatpush.bf16.msra.mxu0 %v195
    %767 = vmatpush.bf16.msra.mxu0 %v191
    %768 = vmatpush.bf16.msra.mxu0 %v187
    %769 = vmatpush.bf16.msra.mxu0 %v183
    %770 = vmatmul.bf16.gmra.mxu0 %v728
    %v771 = vpop.f32.mrf.mxu0
    %v772 = vadd.f32 0.0, %v771
    %v773 = vpop.f32.mrf.mxu0
    %774 = vdwg.mxu0
    %775 = vmatpush.bf16.msra.mxu0 %v212
    %776 = vmatpush.bf16.msra.mxu0 %v208
    %777 = vmatpush.bf16.msra.mxu0 %v204
    %778 = vmatpush.bf16.msra.mxu0 %v200
    %779 = vmatpush.bf16.msra.mxu0 %v196
    %780 = vmatpush.bf16.msra.mxu0 %v192
    %781 = vmatpush.bf16.msra.mxu0 %v188
    %782 = vmatpush.bf16.msra.mxu0 %v184
    %783 = vmatmul.bf16.gmra.mxu0 %v728
    %v784 = vpop.f32.mrf.mxu0
    %v785 = vadd.f32 0.0, %v784
    %v786 = vpop.f32.mrf.mxu0
    %787 = vdwg.mxu0
    %v788 = vadd.f32 %v732, %v746
    %v789 = vadd.f32 %v733, %v759
    %v790 = vadd.f32 %v734, %v772
    %v791 = vadd.f32 %v735, %v785
    %v792 = vmul.f32 %v788, 0.5
    %v793 = vtanh.pop %v792
    %v794 = vmul.f32 %v793, 0.5
    %v795 = vadd.f32 %v794, 0.5
    %v796 = vmul.f32 %v789, 0.5
    %v797 = vtanh.pop %v796
    %v798 = vmul.f32 %v797, 0.5
    %v799 = vadd.f32 %v798, 0.5
    %v800 = vtanh.pop %v790
    %v801 = vmul.f32 %v791, 0.5
    %v802 = vtanh.pop %v801
    %v803 = vmul.f32 %v802, 0.5
    %v804 = vadd.f32 %v803, 0.5
    %v805 = vmul.f32 %v799, %v725
    %v806 = vmul.f32 %v795, %v800
    %v807 = vadd.f32 %v805, %v806
    %v808 = vtanh.pop %v807
    %v809 = vmul.f32 %v804, %v808
    %v810 = vpack.c.bf16 %v809, %v809
    %s811 = scalar_lea.vmem %s4, 24
    %812 = vst [vmem:[%s811] sm:$0xf] %v810
    %s813 = scalar_lea.vmem %s0, 224
    %v814 = vld [vmem:[%s813] sm:$0xff]
    %v815 = vld [vmem:[%s813 + $0x8] sm:$0xff]
    %v816 = vld [vmem:[%s813 + $0x10] sm:$0xff]
    %v817 = vld [vmem:[%s813 + $0x18] sm:$0xff]
    %818 = vmatpush.bf16.msra.mxu0 %v209
    %819 = vmatpush.bf16.msra.mxu0 %v205
    %820 = vmatpush.bf16.msra.mxu0 %v201
    %821 = vmatpush.bf16.msra.mxu0 %v197
    %822 = vmatpush.bf16.msra.mxu0 %v193
    %823 = vmatpush.bf16.msra.mxu0 %v189
    %824 = vmatpush.bf16.msra.mxu0 %v185
    %825 = vmatpush.bf16.msra.mxu0 %v181
    %826 = vmatmul.bf16.gmra.mxu0 %v810
    %v827 = vpop.f32.mrf.mxu0
    %v828 = vadd.f32 0.0, %v827
    %v829 = vpop.f32.mrf.mxu0
    %830 = vdwg.mxu0
    %831 = vmatpush.bf16.msra.mxu0 %v210
    %832 = vmatpush.bf16.msra.mxu0 %v206
    %833 = vmatpush.bf16.msra.mxu0 %v202
    %834 = vmatpush.bf16.msra.mxu0 %v198
    %835 = vmatpush.bf16.msra.mxu0 %v194
    %836 = vmatpush.bf16.msra.mxu0 %v190
    %837 = vmatpush.bf16.msra.mxu0 %v186
    %838 = vmatpush.bf16.msra.mxu0 %v182
    %839 = vmatmul.bf16.gmra.mxu0 %v810
    %v840 = vpop.f32.mrf.mxu0
    %v841 = vadd.f32 0.0, %v840
    %v842 = vpop.f32.mrf.mxu0
    %843 = vdwg.mxu0
    %844 = vmatpush.bf16.msra.mxu0 %v211
    %845 = vmatpush.bf16.msra.mxu0 %v207
    %846 = vmatpush.bf16.msra.mxu0 %v203
    %847 = vmatpush.bf16.msra.mxu0 %v199
    %848 = vmatpush.bf16.msra.mxu0 %v195
    %849 = vmatpush.bf16.msra.mxu0 %v191
    %850 = vmatpush.bf16.msra.mxu0 %v187
    %851 = vmatpush.bf16.msra.mxu0 %v183
    %852 = vmatmul.bf16.gmra.mxu0 %v810
    %v853 = vpop.f32.mrf.mxu0
    %v854 = vadd.f32 0.0, %v853
    %v855 = vpop.f32.mrf.mxu0
    %856 = vdwg.mxu0
    %857 = vmatpush.bf16.msra.mxu0 %v212
    %858 = vmatpush.bf16.msra.mxu0 %v208
    %859 = vmatpush.bf16.msra.mxu0 %v204
    %860 = vmatpush.bf16.msra.mxu0 %v200
    %861 = vmatpush.bf16.msra.mxu0 %v196
    %862 = vmatpush.bf16.msra.mxu0 %v192
    %863 = vmatpush.bf16.msra.mxu0 %v188
    %864 = vmatpush.bf16.msra.mxu0 %v184
    %865 = vmatmul.bf16.gmra.mxu0 %v810
    %v866 = vpop.f32.mrf.mxu0
    %v867 = vadd.f32 0.0, %v866
    %v868 = vpop.f32.mrf.mxu0
    %869 = vdwg.mxu0
    %v870 = vadd.f32 %v814, %v828
    %v871 = vadd.f32 %v815, %v841
    %v872 = vadd.f32 %v816, %v854
    %v873 = vadd.f32 %v817, %v867
    %v874 = vmul.f32 %v870, 0.5
    %v875 = vtanh.pop %v874
    %v876 = vmul.f32 %v875, 0.5
    %v877 = vadd.f32 %v876, 0.5
    %v878 = vmul.f32 %v871, 0.5
    %v879 = vtanh.pop %v878
    %v880 = vmul.f32 %v879, 0.5
    %v881 = vadd.f32 %v880, 0.5
    %v882 = vtanh.pop %v872
    %v883 = vmul.f32 %v873, 0.5
    %v884 = vtanh.pop %v883
    %v885 = vmul.f32 %v884, 0.5
    %v886 = vadd.f32 %v885, 0.5
    %v887 = vmul.f32 %v881, %v807
    %v888 = vmul.f32 %v877, %v882
    %v889 = vadd.f32 %v887, %v888
    %v890 = vtanh.pop %v889
    %v891 = vmul.f32 %v886, %v890
    %v892 = vpack.c.bf16 %v891, %v891
    %s893 = scalar_lea.vmem %s4, 28
    %894 = vst [vmem:[%s893] sm:$0xf] %v892
    %895 = vst [vmem:[#allocation2] sm:$0xf] %v892
    %896 = vst [vmem:[#allocation3] sm:$0xff] %v889
    // Predicated region
    $region26: #{seq2seq_forward.8} parent=1 // pred_check
      %p897 = pneg %p38
    $region27: #{seq2seq_forward.8} parent=1 // pred_check_branch
      %899 = sbr.rel (%p897) target = $region29
    $region28: #{seq2seq_forward.8} parent=1 // pred_region
      %v900 = vunpack.c.l.bf16 %v892
      %901 = vst [vmem:[#allocation7] sm:$0xff] %v900
      %902 = vst [vmem:[#allocation8] sm:$0xff] %v889
    $region29: #{seq2seq_forward.8} parent=1 // pred_fallthru
      _
    // Predicated region
    $region30: #{seq2seq_forward.8} parent=1 // pred_check
      _
    $region31: #{seq2seq_forward.8} parent=1 // pred_check_branch
      %904 = sbr.rel (0) target = $region33
    $region32: #{seq2seq_forward.8} parent=1 // pred_region
      _
    $region33: #{seq2seq_forward.8} parent=1 // pred_fallthru
      _
    // Predicated region
    $region34: #{seq2seq_forward.8} parent=1 // pred_check
      _
    $region35: #{seq2seq_forward.8} parent=1 // pred_check_branch
      %906 = sbr.rel (0) target = $region37
    $region36: #{seq2seq_forward.8} parent=1 // pred_region
      %908 = vsyncadd [#allocation6], 0
      %s910 = sshll.u32 [#allocation7], 4
      %s911 = int_to_ptr.vmem [resolvable:$true] %s910
      %s912 = sshll.u32 %s5, 4
      %s913 = int_to_ptr.hbm [resolvable:$true] %s912
      %915 = dma.vmem_to_hbm [thread:$0]  %s911, 128, %s913, [#allocation6]
    $region37: #{seq2seq_forward.8} parent=1 // pred_fallthru
      _
    // Predicated region
    $region38: #{seq2seq_forward.8} parent=1 // pred_check
      _
    $region39: #{seq2seq_forward.8} parent=1 // pred_check_branch
      %917 = sbr.rel (0) target = $region41
    $region40: #{seq2seq_forward.8} parent=1 // pred_region
      %919 = vsyncadd [#allocation9], 0
      %s921 = sshll.u32 [#allocation8], 4
      %s922 = int_to_ptr.vmem [resolvable:$true] %s921
      %s923 = sshll.u32 %s6, 4
      %s924 = int_to_ptr.hbm [resolvable:$true] %s923
      %926 = dma.vmem_to_hbm [thread:$0]  %s922, 128, %s924, [#allocation9]
    $region41: #{seq2seq_forward.8} parent=1 // pred_fallthru
      _
    // Predicated region
    $region42: #{seq2seq_forward.8} parent=1 // pred_check
      _
    $region43: #{seq2seq_forward.8} parent=1 // pred_check_branch
      %928 = sbr.rel (0) target = $region45
    $region44: #{seq2seq_forward.8} parent=1 // pred_region
      _
    $region45: #{seq2seq_forward.8} parent=1 // pred_fallthru
      _
    // Predicated region
    $region46: #{seq2seq_forward.8} parent=1 // pred_check
      _
    $region47: #{seq2seq_forward.8} parent=1 // pred_check_branch
      %930 = sbr.rel (0) target = $region49
    $region48: #{seq2seq_forward.8} parent=1 // pred_region
      %932 = dma.done [#allocation6], 128
    $region49: #{seq2seq_forward.8} parent=1 // pred_fallthru
      _
    // Predicated region
    $region50: #{seq2seq_forward.8} parent=1 // pred_check
      _
    $region51: #{seq2seq_forward.8} parent=1 // pred_check_branch
      %934 = sbr.rel (0) target = $region53
    $region52: #{seq2seq_forward.8} parent=1 // pred_region
      %936 = dma.done [#allocation9], 128
    $region53: #{seq2seq_forward.8} parent=1 // pred_fallthru
      _
    %937 = vsyncpa [#allocation5], 1
    %938 = vsyncpa [#allocation6], 1
    %939 = vsyncpa [#allocation9], 1

</llo_original>
